<compile_context>
chip_gen: v7x
topology: tpu7x:2x2x1
jax: 0.10.0
libtpu: 0.0.40
codegen_flags: <defaults>
</compile_context>

<pallas_src>
import math
import jax
import jax.numpy as jnp
from jax.experimental import pallas as pl
from jax.experimental.pallas import tpu as pltpu

# ---- small synthetic ESM2 config --------------------------------------------
NUM_LAYERS = 2
EMBED_DIM = 128
NUM_HEADS = 2
HEAD_DIM = EMBED_DIM // NUM_HEADS          # 64, same head_dim as real ESM2
FFN_DIM = 4 * EMBED_DIM
ALPHABET_SIZE = 33                         # ESM-1b alphabet
VOCAB_PAD = 128                            # lane-dense padded vocab for the LM head
LM_SMALL_W = max(EMBED_DIM, VOCAB_PAD)     # lane width of the packed LM-head vectors
PADDING_IDX = 1
MASK_IDX = 32
CLS_IDX = 0
EOS_IDX = 2
LN_EPS = 1e-5
TOKEN_DROPOUT = True

BF16 = jnp.bfloat16

assert FFN_DIM >= 3 * EMBED_DIM            # packed-bias row layout relies on this


# ---- math helpers (usable both inside kernels and in the pure-JAX reference) -
def _erf(x):
    # TODO(synk): exact lax.erf lowering on Mosaic is not guaranteed; using the
    # Abramowitz & Stegun 7.1.26 approximation (|err| < 1.5e-7).
    a1, a2, a3, a4, a5 = 0.254829592, -0.284496736, 1.421413741, -1.453152027, 1.061405429
    p = 0.3275911
    s = jnp.where(x >= 0.0, 1.0, -1.0)
    ax = jnp.abs(x)
    t = 1.0 / (1.0 + p * ax)
    poly = ((((a5 * t + a4) * t + a3) * t + a2) * t + a1) * t
    return s * (1.0 - poly * jnp.exp(-ax * ax))


def _gelu(x):
    # ESM uses exact-erf gelu: x * 0.5 * (1 + erf(x / sqrt(2)))
    return 0.5 * x * (1.0 + _erf(x * 0.7071067811865476))


def _layer_norm(x, w, b):
    mu = jnp.mean(x, axis=-1, keepdims=True)
    xc = x - mu
    var = jnp.mean(xc * xc, axis=-1, keepdims=True)
    return xc * jax.lax.rsqrt(var + LN_EPS) * w + b


def _rotate_half(z):
    d = HEAD_DIM // 2
    return jnp.concatenate([-z[..., d:], z[..., :d]], axis=-1)


def _mm(a, w):
    # Reference-side matmul that mirrors the kernel precision policy:
    # bf16 MXU operands, f32 accumulation.
    return jnp.dot(a.astype(BF16), w.astype(BF16), preferred_element_type=jnp.float32)


# ---- fused Pallas kernel: all layers + final LN + LM head --------------------
def esm2_stack_kernel(x_ref, pad_ref, cos_ref, sin_ref, rotm_ref,
                      wqkv_ref, wo_ref, w1_ref, w2_ref, small_ref,
                      dw_ref, ewT_ref, lm_small_ref, out_ref):
    x = x_ref[0]                       # (T, E) f32 residual stream (stays in VMEM)
    pad_bias = pad_ref[0]              # (1, T) additive key-padding bias
    cos = cos_ref[...]                 # (T, E) per-head-tiled rotary tables (f32)
    sin = sin_ref[...]
    rotm = rotm_ref[...]               # (E, E) bf16 block-diag signed permutation

    T, E = x.shape

    for l in range(NUM_LAYERS):        # static unroll; residual never leaves VMEM
        wqkv = wqkv_ref[l]             # (E, 3E) bf16, q columns pre-scaled by 1/sqrt(Dh)
        wo = wo_ref[l]                 # (E, E)  bf16
        w1 = w1_ref[l]                 # (E, F)  bf16
        w2 = w2_ref[l]                 # (F, E)  bf16
        small = small_ref[l]           # (8, F)  f32 packed LN weights / biases
        ln1w, ln1b = small[0:1, :E], small[1:2, :E]
        ln2w, ln2b = small[2:3, :E], small[3:4, :E]
        bo, b2 = small[4:5, :E], small[5:6, :E]
        b1 = small[6:7, :]
        bqkv = small[7:8, :3 * E]

        # --- self-attention (pre-LN, rotary embeddings, fairseq-style MHA) ---
        h = _layer_norm(x, ln1w, ln1b)
        qkv = jnp.dot(h.astype(BF16), wqkv, preferred_element_type=jnp.float32) + bqkv
        q, k, v = qkv[:, :E], qkv[:, E:2 * E], qkv[:, 2 * E:]

        # rotate_half == z @ (block-diag +-1 permutation): runs on the MXU,
        # lane-dense on the full (T, E) tensor (all heads at once).
        q_rh = jnp.dot(q.astype(BF16), rotm, preferred_element_type=jnp.float32)
        k_rh = jnp.dot(k.astype(BF16), rotm, preferred_element_type=jnp.float32)
        q = q * cos + q_rh * sin
        k = k * cos + k_rh * sin

        # head-batched attention: (T, E) -> (H, T, Dh) via reshape + einshape
        qh = pltpu.einshape("thd->htd", q.reshape(T, NUM_HEADS, HEAD_DIM)).astype(BF16)
        kh = pltpu.einshape("thd->htd", k.reshape(T, NUM_HEADS, HEAD_DIM)).astype(BF16)
        vh = pltpu.einshape("thd->htd", v.reshape(T, NUM_HEADS, HEAD_DIM)).astype(BF16)

        scores = jnp.einsum("htd,hsd->hts", qh, kh,
                            preferred_element_type=jnp.float32)     # (H, T, T) f32
        scores = scores + pad_bias[None, :, :]                       # key-padding bias
        m = jnp.max(scores, axis=-1, keepdims=True)
        e = jnp.exp(scores - m)
        denom = jnp.sum(e, axis=-1, keepdims=True)
        p = e * pl.reciprocal(denom, approx=True)                    # EUP reciprocal

        ctx = jnp.einsum("hts,hsd->htd", p.astype(BF16), vh,
                         preferred_element_type=jnp.float32)         # (H, T, Dh) f32
        ctx = pltpu.einshape("htd->thd", ctx).reshape(T, E)          # (T, E)
        x = x + jnp.dot(ctx.astype(BF16), wo, preferred_element_type=jnp.float32) + bo

        # --- feed-forward (pre-LN, erf-gelu) ---
        h2 = _layer_norm(x, ln2w, ln2b)
        f = jnp.dot(h2.astype(BF16), w1, preferred_element_type=jnp.float32) + b1
        f = _gelu(f)                                                 # f32 elementwise
        f = jnp.dot(f.astype(BF16), w2, preferred_element_type=jnp.float32) + b2
        x = x + f

    # --- emb_layer_norm_after + RobertaLMHead (vocab padded to 128 lanes) ---
    lm = lm_small_ref[...]             # (6, LM_SMALL_W) f32 packed head vectors
    h = _layer_norm(x, lm[0:1, :E], lm[1:2, :E])
    h = jnp.dot(h.astype(BF16), dw_ref[...], preferred_element_type=jnp.float32) + lm[2:3, :E]
    h = _gelu(h)
    h = _layer_norm(h, lm[3:4, :E], lm[4:5, :E])
    out_ref[0] = (jnp.dot(h.astype(BF16), ewT_ref[...], preferred_element_type=jnp.float32)
                  + lm[5:6, :VOCAB_PAD])


# ---- pallas_call wrapper ------------------------------------------------------
_COMPILER_PARAMS = pltpu.CompilerParams(
    # Keep a "parallel" batch axis so both TensorCores get work on v7x.
    # (On v5e/v6e a single TC just loops over it, which is equally fine.)
    dimension_semantics=("parallel",),
    vmem_limit_bytes=16 * 1024 * 1024,   # footprint here is <1.5 MiB; ample v7x headroom
)


def _const_spec(shape):
    """Full-array block with a constant index map; single-buffered since the
    block never changes across grid steps (avoids a dead second weight copy)."""
    n = len(shape)
    idx = lambda b, _n=n: (0,) * _n
    try:
        return pl.BlockSpec(shape, idx, pipeline_mode=pl.Buffered(1))
    except Exception:  # pragma: no cover - older jax without pipeline_mode
        return pl.BlockSpec(shape, idx)


def run_esm2_stack(x, pad_bias, prep):
    B, T, E = x.shape
    consts = [prep["cos"], prep["sin"], prep["rotm"],
              prep["wqkv"], prep["wo"], prep["w1"], prep["w2"], prep["small"],
              prep["dw"], prep["ewT"], prep["lm_small"]]
    in_specs = [
        pl.BlockSpec((1, T, E), lambda b: (b, 0, 0)),
        pl.BlockSpec((1, 1, T), lambda b: (b, 0, 0)),
    ] + [_const_spec(c.shape) for c in consts]
    out = pl.pallas_call(
        esm2_stack_kernel,
        out_shape=jax.ShapeDtypeStruct((B, T, VOCAB_PAD), jnp.float32),
        grid=(B,),
        in_specs=in_specs,
        out_specs=pl.BlockSpec((1, T, VOCAB_PAD), lambda b: (b, 0, 0)),
        compiler_params=_COMPILER_PARAMS,
    )(x, pad_bias, *consts)
    return out[:, :, :ALPHABET_SIZE]     # drop the lane padding outside the kernel


# ---- parameter init (deterministic, synthetic) -------------------------------
def init_params(key):
    def nrm(k, shape, scale=0.02):
        return scale * jax.random.normal(k, shape, jnp.float32)

    keys = iter(jax.random.split(key, 16 * NUM_LAYERS + 16))
    E, F = EMBED_DIM, FFN_DIM

    embed = nrm(next(keys), (ALPHABET_SIZE, E))
    embed = embed.at[PADDING_IDX].set(0.0)          # nn.Embedding padding_idx row is zero

    layers = []
    for _ in range(NUM_LAYERS):
        layers.append((
            1.0 + nrm(next(keys), (1, E), 0.1), nrm(next(keys), (1, E), 0.05),   # ln1 w,b
            nrm(next(keys), (E, E)), nrm(next(keys), (1, E)),                    # q_proj
            nrm(next(keys), (E, E)), nrm(next(keys), (1, E)),                    # k_proj
            nrm(next(keys), (E, E)), nrm(next(keys), (1, E)),                    # v_proj
            nrm(next(keys), (E, E)), nrm(next(keys), (1, E)),                    # out_proj
            1.0 + nrm(next(keys), (1, E), 0.1), nrm(next(keys), (1, E), 0.05),   # ln2 w,b
            nrm(next(keys), (E, F)), nrm(next(keys), (1, F)),                    # fc1
            nrm(next(keys), (F, E)), nrm(next(keys), (1, E)),                    # fc2
        ))

    lm = (
        1.0 + nrm(next(keys), (1, E), 0.1), nrm(next(keys), (1, E), 0.05),       # emb_layer_norm_after
        nrm(next(keys), (E, E)), nrm(next(keys), (1, E)),                        # lm_head.dense
        1.0 + nrm(next(keys), (1, E), 0.1), nrm(next(keys), (1, E), 0.05),       # lm_head.layer_norm
        jnp.transpose(embed), jnp.zeros((1, ALPHABET_SIZE), jnp.float32),        # tied weight^T, bias
    )
    return {"embed": embed, "layers": layers, "lm": lm}


# ---- one-time (hoisted) kernel-side parameter preparation ---------------------
def make_rot_half_matrix():
    # Block-diagonal signed permutation R such that (z @ R) == rotate_half(z)
    # applied independently to every HEAD_DIM-wide head slice of z.
    d = HEAD_DIM // 2
    idx = jnp.arange(d)
    blk = jnp.zeros((HEAD_DIM, HEAD_DIM), jnp.float32)
    blk = blk.at[idx + d, idx].set(-1.0)     # out[j]   = -z[j+d]   (j < d)
    blk = blk.at[idx, idx + d].set(1.0)      # out[j+d] =  z[j]
    mat = jnp.zeros((EMBED_DIM, EMBED_DIM), jnp.float32)
    for h in range(NUM_HEADS):
        sl = slice(h * HEAD_DIM, (h + 1) * HEAD_DIM)
        mat = mat.at[sl, sl].set(blk)
    return mat.astype(BF16)                   # +-1 / 0 entries are exact in bf16


def rotary_tables(T, D):
    inv_freq = 1.0 / (10000.0 ** (jnp.arange(0, D, 2, dtype=jnp.float32) / D))
    t = jnp.arange(T, dtype=jnp.float32)
    freqs = jnp.einsum("i,j->ij", t, inv_freq)
    emb = jnp.concatenate([freqs, freqs], axis=-1)
    return jnp.cos(emb), jnp.sin(emb)


def prepare_kernel_params(params, T):
    """Hoisted, compute-once prep: fuse QKV (with the 1/sqrt(Dh) scale folded
    into the q columns/bias — exact, scale is a power of two), cast MXU
    operands to bf16, pack the small LayerNorm/bias vectors, pad the vocab to
    128 lanes, and build the rotary tables / rotate-half permutation."""
    E, F = EMBED_DIM, FFN_DIM
    scaling = 1.0 / math.sqrt(HEAD_DIM)

    wqkv_l, wo_l, w1_l, w2_l, small_l = [], [], [], [], []
    for p in params["layers"]:
        (ln1w, ln1b, wq, bq, wk, bk, wv, bv, wo, bo, ln2w, ln2b, w1, b1, w2, b2) = p
        wqkv_l.append(jnp.concatenate([wq * scaling, wk, wv], axis=1).astype(BF16))
        bqkv = jnp.concatenate([bq * scaling, bk, bv], axis=1)           # (1, 3E) f32
        small = jnp.zeros((8, F), jnp.float32)
        small = small.at[0, :E].set(ln1w[0]).at[1, :E].set(ln1b[0])
        small = small.at[2, :E].set(ln2w[0]).at[3, :E].set(ln2b[0])
        small = small.at[4, :E].set(bo[0]).at[5, :E].set(b2[0])
        small = small.at[6, :].set(b1[0]).at[7, :3 * E].set(bqkv[0])
        small_l.append(small)
        wo_l.append(wo.astype(BF16))
        w1_l.append(w1.astype(BF16))
        w2_l.append(w2.astype(BF16))

    (lnaw, lnab, dw, db, hlnw, hlnb, ewT, hb) = params["lm"]
    ewT_pad = jnp.zeros((E, VOCAB_PAD), jnp.float32).at[:, :ALPHABET_SIZE].set(ewT).astype(BF16)
    lm_small = jnp.zeros((6, LM_SMALL_W), jnp.float32)
    lm_small = lm_small.at[0, :E].set(lnaw[0]).at[1, :E].set(lnab[0])
    lm_small = lm_small.at[2, :E].set(db[0])
    lm_small = lm_small.at[3, :E].set(hlnw[0]).at[4, :E].set(hlnb[0])
    lm_small = lm_small.at[5, :ALPHABET_SIZE].set(hb[0])

    cos_h, sin_h = rotary_tables(T, HEAD_DIM)
    return {
        "wqkv": jnp.stack(wqkv_l), "wo": jnp.stack(wo_l),
        "w1": jnp.stack(w1_l), "w2": jnp.stack(w2_l), "small": jnp.stack(small_l),
        "dw": dw.astype(BF16), "ewT": ewT_pad, "lm_small": lm_small,
        "cos": jnp.tile(cos_h, (1, NUM_HEADS)),     # (T, E) per-head-tiled tables
        "sin": jnp.tile(sin_h, (1, NUM_HEADS)),
        "rotm": make_rot_half_matrix(),
    }


# ---- embedding / token-dropout glue (matches ESM2.forward preamble) ----------
def _embed_and_prepare(tokens, embed_w):
    padding_mask = tokens == PADDING_IDX
    x = jnp.take(embed_w, tokens, axis=0)                       # embed_scale = 1
    if TOKEN_DROPOUT:
        is_mask = tokens == MASK_IDX
        x = jnp.where(is_mask[..., None], 0.0, x)
        mask_ratio_train = 0.15 * 0.8
        src_lengths = jnp.sum(~padding_mask, axis=-1)
        mask_ratio_observed = jnp.sum(is_mask, axis=-1).astype(x.dtype) / src_lengths
        x = x * (1 - mask_ratio_train) / (1 - mask_ratio_observed)[:, None, None]
    x = x * (1.0 - padding_mask[..., None].astype(x.dtype))
    pad_bias = jnp.where(padding_mask, -1e30, 0.0).astype(jnp.float32)[:, None, :]  # (B,1,T)
    return x.astype(jnp.float32), pad_bias


def esm2_forward(tokens, params, prep):
    x, pad_bias = _embed_and_prepare(tokens, params["embed"])
    return run_esm2_stack(x, pad_bias, prep)      # logits (B, T, alphabet_size)


# ---- pure-JAX reference (same math & precision policy, no Pallas) -------------
def _layer_ref(x, pad_bias, cos, sin, p):
    (ln1w, ln1b, wq, bq, wk, bk, wv, bv, wo, bo, ln2w, ln2b, w1, b1, w2, b2) = p
    h = _layer_norm(x, ln1w, ln1b)
    scaling = 1.0 / math.sqrt(HEAD_DIM)
    q = (_mm(h, wq) + bq) * scaling
    k = _mm(h, wk) + bk
    v = _mm(h, wv) + bv
    outs = []
    for hh in range(NUM_HEADS):
        sl = slice(hh * HEAD_DIM, (hh + 1) * HEAD_DIM)
        qh, kh, vh = q[..., sl], k[..., sl], v[..., sl]
        qh = qh * cos + _rotate_half(qh) * sin
        kh = kh * cos + _rotate_half(kh) * sin
        s = jnp.einsum("btd,bsd->bts", qh.astype(BF16), kh.astype(BF16),
                       preferred_element_type=jnp.float32) + pad_bias
        pr = jax.nn.softmax(s, axis=-1)
        outs.append(jnp.einsum("bts,bsd->btd", pr.astype(BF16), vh.astype(BF16),
                               preferred_element_type=jnp.float32))
    ctx = jnp.concatenate(outs, axis=-1)
    x = x + _mm(ctx, wo) + bo
    h2 = _layer_norm(x, ln2w, ln2b)
    return x + _mm(_gelu(_mm(h2, w1) + b1), w2) + b2


def esm2_forward_ref(tokens, params):
    x, pad_bias = _embed_and_prepare(tokens, params["embed"])
    cos, sin = rotary_tables(tokens.shape[1], HEAD_DIM)
    for lp in params["layers"]:
        x = _layer_ref(x, pad_bias, cos, sin, lp)
    lnaw, lnab, dw, db, hlnw, hlnb, ewT, hb = params["lm"]
    h = _layer_norm(x, lnaw, lnab)
    h = _gelu(_mm(h, dw) + db)
    h = _layer_norm(h, hlnw, hlnb)
    return _mm(h, ewT) + hb


# ---- main ---------------------------------------------------------------------
if __name__ == "__main__":
    key = jax.random.PRNGKey(0)
    pkey, tkey = jax.random.split(key)
    params = init_params(pkey)

    B, T = 2, 8
    body = jax.random.randint(tkey, (B, T - 2), 4, 30, dtype=jnp.int32)
    tokens = jnp.concatenate(
        [jnp.full((B, 1), CLS_IDX, jnp.int32), body, jnp.full((B, 1), EOS_IDX, jnp.int32)],
        axis=1,
    )

    # Hoisted one-time parameter preparation (not part of the per-call forward).
    prep = prepare_kernel_params(params, T)
    prep = jax.tree_util.tree_map(jax.block_until_ready, prep)

    logits = esm2_forward(tokens, params, prep)
    logits = jax.block_until_ready(logits)
    assert logits.shape == (B, T, ALPHABET_SIZE)

    ref = esm2_forward_ref(tokens, params)
    # Both paths use bf16 MXU operands with f32 accumulation; residual diffs come
    # from the approx reciprocal and the bf16 rotate-half permutation matmul.
    err = float(jnp.max(jnp.abs(logits - ref)))
    assert err < 1e-2, f"mismatch vs reference: {err}"

    print("KERNEL_OK")
</pallas_src>

<mosaic_0001>
module attributes {stable_mosaic.version = 11 : i64} {
  func.func @esm2_stack_kernel(%arg0: i32, %arg1: memref<1x8x128xf32, #tpu.memory_space<vmem>>, %arg2: memref<1x1x8xf32, #tpu.memory_space<vmem>>, %arg3: memref<8x128xf32, #tpu.memory_space<vmem>>, %arg4: memref<8x128xf32, #tpu.memory_space<vmem>>, %arg5: memref<128x128xbf16, #tpu.memory_space<vmem>>, %arg6: memref<2x128x384xbf16, #tpu.memory_space<vmem>>, %arg7: memref<2x128x128xbf16, #tpu.memory_space<vmem>>, %arg8: memref<2x128x512xbf16, #tpu.memory_space<vmem>>, %arg9: memref<2x512x128xbf16, #tpu.memory_space<vmem>>, %arg10: memref<2x8x512xf32, #tpu.memory_space<vmem>>, %arg11: memref<128x128xbf16, #tpu.memory_space<vmem>>, %arg12: memref<128x128xbf16, #tpu.memory_space<vmem>>, %arg13: memref<6x128xf32, #tpu.memory_space<vmem>>, %arg14: memref<1x8x128xf32, #tpu.memory_space<vmem>>) attributes {dimension_semantics = [#tpu.dimension_semantics<parallel>], iteration_bounds = array<i64: 2>, scalar_prefetch = 0 : i64, scratch_operands = 0 : i64, tpu.core_type = #tpu.core_type<tc>, window_params = [{transform_indices = @transform_0, window_bounds = array<i64: 1, 8, 128>}, {transform_indices = @transform_1, window_bounds = array<i64: 1, 1, 8>}, {pipeline_mode = #tpu.pipeline_mode<synchronous>, transform_indices = @transform_2, window_bounds = array<i64: 8, 128>}, {pipeline_mode = #tpu.pipeline_mode<synchronous>, transform_indices = @transform_3, window_bounds = array<i64: 8, 128>}, {pipeline_mode = #tpu.pipeline_mode<synchronous>, transform_indices = @transform_4, window_bounds = array<i64: 128, 128>}, {pipeline_mode = #tpu.pipeline_mode<synchronous>, transform_indices = @transform_5, window_bounds = array<i64: 2, 128, 384>}, {pipeline_mode = #tpu.pipeline_mode<synchronous>, transform_indices = @transform_6, window_bounds = array<i64: 2, 128, 128>}, {pipeline_mode = #tpu.pipeline_mode<synchronous>, transform_indices = @transform_7, window_bounds = array<i64: 2, 128, 512>}, {pipeline_mode = #tpu.pipeline_mode<synchronous>, transform_indices = @transform_8, window_bounds = array<i64: 2, 512, 128>}, {pipeline_mode = #tpu.pipeline_mode<synchronous>, transform_indices = @transform_9, window_bounds = array<i64: 2, 8, 512>}, {pipeline_mode = #tpu.pipeline_mode<synchronous>, transform_indices = @transform_10, window_bounds = array<i64: 128, 128>}, {pipeline_mode = #tpu.pipeline_mode<synchronous>, transform_indices = @transform_11, window_bounds = array<i64: 128, 128>}, {pipeline_mode = #tpu.pipeline_mode<synchronous>, transform_indices = @transform_12, window_bounds = array<i64: 6, 128>}, {transform_indices = @transform_13, window_bounds = array<i64: 1, 8, 128>}]} {
    %c0 = arith.constant 0 : index
    %c0_0 = arith.constant 0 : index
    %c0_1 = arith.constant 0 : index
    %0 = vector.load %arg1[%c0, %c0_0, %c0_1] : memref<1x8x128xf32, #tpu.memory_space<vmem>>, vector<1x8x128xf32>
    %1 = vector.shape_cast %0 : vector<1x8x128xf32> to vector<8x128xf32>
    %c0_2 = arith.constant 0 : index
    %c0_3 = arith.constant 0 : index
    %c0_4 = arith.constant 0 : index
    %2 = vector.load %arg2[%c0_2, %c0_3, %c0_4] : memref<1x1x8xf32, #tpu.memory_space<vmem>>, vector<1x1x8xf32>
    %3 = vector.shape_cast %2 : vector<1x1x8xf32> to vector<1x8xf32>
    %c0_5 = arith.constant 0 : index
    %c0_6 = arith.constant 0 : index
    %4 = vector.load %arg3[%c0_5, %c0_6] : memref<8x128xf32, #tpu.memory_space<vmem>>, vector<8x128xf32>
    %c0_7 = arith.constant 0 : index
    %c0_8 = arith.constant 0 : index
    %5 = vector.load %arg4[%c0_7, %c0_8] : memref<8x128xf32, #tpu.memory_space<vmem>>, vector<8x128xf32>
    %c0_9 = arith.constant 0 : index
    %c0_10 = arith.constant 0 : index
    %6 = vector.load %arg5[%c0_9, %c0_10] : memref<128x128xbf16, #tpu.memory_space<vmem>>, vector<128x128xbf16>
    %c0_11 = arith.constant 0 : index
    %c0_12 = arith.constant 0 : index
    %c0_13 = arith.constant 0 : index
    %7 = vector.load %arg6[%c0_11, %c0_12, %c0_13] : memref<2x128x384xbf16, #tpu.memory_space<vmem>>, vector<1x128x384xbf16>
    %8 = vector.shape_cast %7 : vector<1x128x384xbf16> to vector<128x384xbf16>
    %c0_14 = arith.constant 0 : index
    %c0_15 = arith.constant 0 : index
    %c0_16 = arith.constant 0 : index
    %9 = vector.load %arg7[%c0_14, %c0_15, %c0_16] : memref<2x128x128xbf16, #tpu.memory_space<vmem>>, vector<1x128x128xbf16>
    %10 = vector.shape_cast %9 : vector<1x128x128xbf16> to vector<128x128xbf16>
    %c0_17 = arith.constant 0 : index
    %c0_18 = arith.constant 0 : index
    %c0_19 = arith.constant 0 : index
    %11 = vector.load %arg8[%c0_17, %c0_18, %c0_19] : memref<2x128x512xbf16, #tpu.memory_space<vmem>>, vector<1x128x512xbf16>
    %12 = vector.shape_cast %11 : vector<1x128x512xbf16> to vector<128x512xbf16>
    %c0_20 = arith.constant 0 : index
    %c0_21 = arith.constant 0 : index
    %c0_22 = arith.constant 0 : index
    %13 = vector.load %arg9[%c0_20, %c0_21, %c0_22] : memref<2x512x128xbf16, #tpu.memory_space<vmem>>, vector<1x512x128xbf16>
    %14 = vector.shape_cast %13 : vector<1x512x128xbf16> to vector<512x128xbf16>
    %c0_23 = arith.constant 0 : index
    %c0_24 = arith.constant 0 : index
    %c0_25 = arith.constant 0 : index
    %15 = vector.load %arg10[%c0_23, %c0_24, %c0_25] : memref<2x8x512xf32, #tpu.memory_space<vmem>>, vector<1x8x512xf32>
    %16 = vector.shape_cast %15 : vector<1x8x512xf32> to vector<8x512xf32>
    %17 = vector.extract_strided_slice %16 {offsets = [0, 0], sizes = [1, 128], strides = [1, 1]} : vector<8x512xf32> to vector<1x128xf32>
    %18 = vector.extract_strided_slice %16 {offsets = [1, 0], sizes = [1, 128], strides = [1, 1]} : vector<8x512xf32> to vector<1x128xf32>
    %19 = vector.extract_strided_slice %16 {offsets = [2, 0], sizes = [1, 128], strides = [1, 1]} : vector<8x512xf32> to vector<1x128xf32>
    %20 = vector.extract_strided_slice %16 {offsets = [3, 0], sizes = [1, 128], strides = [1, 1]} : vector<8x512xf32> to vector<1x128xf32>
    %21 = vector.extract_strided_slice %16 {offsets = [4, 0], sizes = [1, 128], strides = [1, 1]} : vector<8x512xf32> to vector<1x128xf32>
    %22 = vector.extract_strided_slice %16 {offsets = [5, 0], sizes = [1, 128], strides = [1, 1]} : vector<8x512xf32> to vector<1x128xf32>
    %23 = vector.extract_strided_slice %16 {offsets = [6, 0], sizes = [1, 512], strides = [1, 1]} : vector<8x512xf32> to vector<1x512xf32>
    %24 = vector.extract_strided_slice %16 {offsets = [7, 0], sizes = [1, 384], strides = [1, 1]} : vector<8x512xf32> to vector<1x384xf32>
    %cst = arith.constant dense<0.000000e+00> : vector<8xf32>
    %25 = vector.multi_reduction <add>, %1, %cst [1] : vector<8x128xf32> to vector<8xf32>
    %26 = vector.shape_cast %25 : vector<8xf32> to vector<8x1xf32>
    %cst_26 = arith.constant 1.280000e+02 : f32
    %27 = vector.broadcast %cst_26 : f32 to vector<8x1xf32>
    %28 = arith.divf %26, %27 : vector<8x1xf32>
    %29 = vector.broadcast %28 : vector<8x1xf32> to vector<8x128xf32>
    %30 = arith.subf %1, %29 : vector<8x128xf32>
    %31 = arith.mulf %30, %30 : vector<8x128xf32>
    %cst_27 = arith.constant dense<0.000000e+00> : vector<8xf32>
    %32 = vector.multi_reduction <add>, %31, %cst_27 [1] : vector<8x128xf32> to vector<8xf32>
    %33 = vector.shape_cast %32 : vector<8xf32> to vector<8x1xf32>
    %cst_28 = arith.constant 1.280000e+02 : f32
    %34 = vector.broadcast %cst_28 : f32 to vector<8x1xf32>
    %35 = arith.divf %33, %34 : vector<8x1xf32>
    %cst_29 = arith.constant 9.99999974E-6 : f32
    %36 = vector.broadcast %cst_29 : f32 to vector<8x1xf32>
    %37 = arith.addf %35, %36 : vector<8x1xf32>
    %38 = math.rsqrt %37 : vector<8x1xf32>
    %39 = vector.broadcast %38 : vector<8x1xf32> to vector<8x128xf32>
    %40 = arith.mulf %30, %39 : vector<8x128xf32>
    %41 = vector.broadcast %17 : vector<1x128xf32> to vector<8x128xf32>
    %42 = arith.mulf %40, %41 : vector<8x128xf32>
    %43 = vector.broadcast %18 : vector<1x128xf32> to vector<8x128xf32>
    %44 = arith.addf %42, %43 : vector<8x128xf32>
    %45 = arith.truncf %44 : vector<8x128xf32> to vector<8x128xbf16>
    %cst_30 = arith.constant dense<0.000000e+00> : vector<8x384xf32>
    %46 = tpu.matmul %45, %8, %cst_30 {dimension_numbers = #tpu.dot_dimension_numbers<[1], [0], [0], [1], [0, 0, 1, 1], [], []>} : vector<8x128xbf16>, vector<128x384xbf16>, vector<8x384xf32> -> vector<8x384xf32>
    %47 = vector.broadcast %24 : vector<1x384xf32> to vector<8x384xf32>
    %48 = arith.addf %46, %47 : vector<8x384xf32>
    %49 = vector.extract_strided_slice %48 {offsets = [0, 0], sizes = [8, 128], strides = [1, 1]} : vector<8x384xf32> to vector<8x128xf32>
    %50 = vector.extract_strided_slice %48 {offsets = [0, 128], sizes = [8, 128], strides = [1, 1]} : vector<8x384xf32> to vector<8x128xf32>
    %51 = vector.extract_strided_slice %48 {offsets = [0, 256], sizes = [8, 128], strides = [1, 1]} : vector<8x384xf32> to vector<8x128xf32>
    %52 = arith.truncf %49 : vector<8x128xf32> to vector<8x128xbf16>
    %cst_31 = arith.constant dense<0.000000e+00> : vector<8x128xf32>
    %53 = tpu.matmul %52, %6, %cst_31 {dimension_numbers = #tpu.dot_dimension_numbers<[1], [0], [0], [1], [0, 0, 1, 1], [], []>} : vector<8x128xbf16>, vector<128x128xbf16>, vector<8x128xf32> -> vector<8x128xf32>
    %54 = arith.truncf %50 : vector<8x128xf32> to vector<8x128xbf16>
    %cst_32 = arith.constant dense<0.000000e+00> : vector<8x128xf32>
    %55 = tpu.matmul %54, %6, %cst_32 {dimension_numbers = #tpu.dot_dimension_numbers<[1], [0], [0], [1], [0, 0, 1, 1], [], []>} : vector<8x128xbf16>, vector<128x128xbf16>, vector<8x128xf32> -> vector<8x128xf32>
    %56 = arith.mulf %49, %4 : vector<8x128xf32>
    %57 = arith.mulf %53, %5 : vector<8x128xf32>
    %58 = arith.addf %56, %57 : vector<8x128xf32>
    %59 = arith.mulf %50, %4 : vector<8x128xf32>
    %60 = arith.mulf %55, %5 : vector<8x128xf32>
    %61 = arith.addf %59, %60 : vector<8x128xf32>
    %62 = vector.shape_cast %58 : vector<8x128xf32> to vector<8x2x64xf32>
    %63 = tpu.transpose %62, [1, 0, 2] : vector<8x2x64xf32> -> vector<2x8x64xf32>
    %64 = arith.truncf %63 : vector<2x8x64xf32> to vector<2x8x64xbf16>
    %65 = vector.shape_cast %61 : vector<8x128xf32> to vector<8x2x64xf32>
    %66 = tpu.transpose %65, [1, 0, 2] : vector<8x2x64xf32> -> vector<2x8x64xf32>
    %67 = arith.truncf %66 : vector<2x8x64xf32> to vector<2x8x64xbf16>
    %68 = vector.shape_cast %51 : vector<8x128xf32> to vector<8x2x64xf32>
    %69 = tpu.transpose %68, [1, 0, 2] : vector<8x2x64xf32> -> vector<2x8x64xf32>
    %70 = arith.truncf %69 : vector<2x8x64xf32> to vector<2x8x64xbf16>
    "tpu.trace_start"() <{level = 10 : i32, message = "htd,hsd->hts"}> : () -> ()
    %cst_33 = arith.constant dense<0.000000e+00> : vector<2x8x8xf32>
    %71 = tpu.matmul %64, %67, %cst_33 {dimension_numbers = #tpu.dot_dimension_numbers<[2], [2], [1], [1], [0, 0, 0, 1, 1, 1], [0], [0]>} : vector<2x8x64xbf16>, vector<2x8x64xbf16>, vector<2x8x8xf32> -> vector<2x8x8xf32>
    "tpu.trace_stop"() : () -> ()
    %72 = vector.shape_cast %3 : vector<1x8xf32> to vector<1x1x8xf32>
    %73 = vector.broadcast %72 : vector<1x1x8xf32> to vector<2x8x8xf32>
    %74 = arith.addf %71, %73 : vector<2x8x8xf32>
    %cst_34 = arith.constant dense<0xFF800000> : vector<2x8xf32>
    %75 = vector.multi_reduction <maximumf>, %74, %cst_34 [2] : vector<2x8x8xf32> to vector<2x8xf32>
    %76 = vector.shape_cast %75 : vector<2x8xf32> to vector<2x8x1xf32>
    %77 = vector.broadcast %76 : vector<2x8x1xf32> to vector<2x8x8xf32>
    %78 = arith.subf %74, %77 : vector<2x8x8xf32>
    %79 = math.exp %78 : vector<2x8x8xf32>
    %cst_35 = arith.constant dense<0.000000e+00> : vector<2x8xf32>
    %80 = vector.multi_reduction <add>, %79, %cst_35 [2] : vector<2x8x8xf32> to vector<2x8xf32>
    %81 = vector.shape_cast %80 : vector<2x8xf32> to vector<2x8x1xf32>
    %82 = tpu.reciprocal %81 {approx = true} : vector<2x8x1xf32> -> vector<2x8x1xf32>
    %83 = vector.broadcast %82 : vector<2x8x1xf32> to vector<2x8x8xf32>
    %84 = arith.mulf %79, %83 : vector<2x8x8xf32>
    %85 = arith.truncf %84 : vector<2x8x8xf32> to vector<2x8x8xbf16>
    "tpu.trace_start"() <{level = 10 : i32, message = "hts,hsd->htd"}> : () -> ()
    %cst_36 = arith.constant dense<0.000000e+00> : vector<2x8x64xf32>
    %86 = tpu.matmul %85, %70, %cst_36 {dimension_numbers = #tpu.dot_dimension_numbers<[2], [1], [1], [2], [0, 0, 0, 1, 1, 2], [0], [0]>} : vector<2x8x8xbf16>, vector<2x8x64xbf16>, vector<2x8x64xf32> -> vector<2x8x64xf32>
    "tpu.trace_stop"() : () -> ()
    %87 = tpu.transpose %86, [1, 0, 2] : vector<2x8x64xf32> -> vector<8x2x64xf32>
    %88 = vector.shape_cast %87 : vector<8x2x64xf32> to vector<8x128xf32>
    %89 = arith.truncf %88 : vector<8x128xf32> to vector<8x128xbf16>
    %cst_37 = arith.constant dense<0.000000e+00> : vector<8x128xf32>
    %90 = tpu.matmul %89, %10, %cst_37 {dimension_numbers = #tpu.dot_dimension_numbers<[1], [0], [0], [1], [0, 0, 1, 1], [], []>} : vector<8x128xbf16>, vector<128x128xbf16>, vector<8x128xf32> -> vector<8x128xf32>
    %91 = arith.addf %1, %90 : vector<8x128xf32>
    %92 = vector.broadcast %21 : vector<1x128xf32> to vector<8x128xf32>
    %93 = arith.addf %91, %92 : vector<8x128xf32>
    %cst_38 = arith.constant dense<0.000000e+00> : vector<8xf32>
    %94 = vector.multi_reduction <add>, %93, %cst_38 [1] : vector<8x128xf32> to vector<8xf32>
    %95 = vector.shape_cast %94 : vector<8xf32> to vector<8x1xf32>
    %cst_39 = arith.constant 1.280000e+02 : f32
    %96 = vector.broadcast %cst_39 : f32 to vector<8x1xf32>
    %97 = arith.divf %95, %96 : vector<8x1xf32>
    %98 = vector.broadcast %97 : vector<8x1xf32> to vector<8x128xf32>
    %99 = arith.subf %93, %98 : vector<8x128xf32>
    %100 = arith.mulf %99, %99 : vector<8x128xf32>
    %cst_40 = arith.constant dense<0.000000e+00> : vector<8xf32>
    %101 = vector.multi_reduction <add>, %100, %cst_40 [1] : vector<8x128xf32> to vector<8xf32>
    %102 = vector.shape_cast %101 : vector<8xf32> to vector<8x1xf32>
    %cst_41 = arith.constant 1.280000e+02 : f32
    %103 = vector.broadcast %cst_41 : f32 to vector<8x1xf32>
    %104 = arith.divf %102, %103 : vector<8x1xf32>
    %cst_42 = arith.constant 9.99999974E-6 : f32
    %105 = vector.broadcast %cst_42 : f32 to vector<8x1xf32>
    %106 = arith.addf %104, %105 : vector<8x1xf32>
    %107 = math.rsqrt %106 : vector<8x1xf32>
    %108 = vector.broadcast %107 : vector<8x1xf32> to vector<8x128xf32>
    %109 = arith.mulf %99, %108 : vector<8x128xf32>
    %110 = vector.broadcast %19 : vector<1x128xf32> to vector<8x128xf32>
    %111 = arith.mulf %109, %110 : vector<8x128xf32>
    %112 = vector.broadcast %20 : vector<1x128xf32> to vector<8x128xf32>
    %113 = arith.addf %111, %112 : vector<8x128xf32>
    %114 = arith.truncf %113 : vector<8x128xf32> to vector<8x128xbf16>
    %cst_43 = arith.constant dense<0.000000e+00> : vector<8x512xf32>
    %115 = tpu.matmul %114, %12, %cst_43 {dimension_numbers = #tpu.dot_dimension_numbers<[1], [0], [0], [1], [0, 0, 1, 1], [], []>} : vector<8x128xbf16>, vector<128x512xbf16>, vector<8x512xf32> -> vector<8x512xf32>
    %116 = vector.broadcast %23 : vector<1x512xf32> to vector<8x512xf32>
    %117 = arith.addf %115, %116 : vector<8x512xf32>
    %cst_44 = arith.constant 5.000000e-01 : f32
    %118 = vector.broadcast %cst_44 : f32 to vector<8x512xf32>
    %119 = arith.mulf %118, %117 : vector<8x512xf32>
    %cst_45 = arith.constant 0.707106769 : f32
    %120 = vector.broadcast %cst_45 : f32 to vector<8x512xf32>
    %121 = arith.mulf %117, %120 : vector<8x512xf32>
    %cst_46 = arith.constant 0.000000e+00 : f32
    %122 = vector.broadcast %cst_46 : f32 to vector<8x512xf32>
    %123 = arith.cmpf oge, %121, %122 : vector<8x512xf32>
    %cst_47 = arith.constant 1.000000e+00 : f32
    %cst_48 = arith.constant -1.000000e+00 : f32
    %124 = vector.broadcast %cst_47 : f32 to vector<8x512xf32>
    %125 = vector.broadcast %cst_48 : f32 to vector<8x512xf32>
    %126 = arith.select %123, %124, %125 : vector<8x512xi1>, vector<8x512xf32>
    %127 = math.absf %121 : vector<8x512xf32>
    %cst_49 = arith.constant 0.327591091 : f32
    %128 = vector.broadcast %cst_49 : f32 to vector<8x512xf32>
    %129 = arith.mulf %128, %127 : vector<8x512xf32>
    %cst_50 = arith.constant 1.000000e+00 : f32
    %130 = vector.broadcast %cst_50 : f32 to vector<8x512xf32>
    %131 = arith.addf %130, %129 : vector<8x512xf32>
    %cst_51 = arith.constant 1.000000e+00 : f32
    %132 = vector.broadcast %cst_51 : f32 to vector<8x512xf32>
    %133 = arith.divf %132, %131 : vector<8x512xf32>
    %cst_52 = arith.constant 1.06140542 : f32
    %134 = vector.broadcast %cst_52 : f32 to vector<8x512xf32>
    %135 = arith.mulf %134, %133 : vector<8x512xf32>
    %cst_53 = arith.constant -1.45315206 : f32
    %136 = vector.broadcast %cst_53 : f32 to vector<8x512xf32>
    %137 = arith.addf %135, %136 : vector<8x512xf32>
    %138 = arith.mulf %137, %133 : vector<8x512xf32>
    %cst_54 = arith.constant 1.42141378 : f32
    %139 = vector.broadcast %cst_54 : f32 to vector<8x512xf32>
    %140 = arith.addf %138, %139 : vector<8x512xf32>
    %141 = arith.mulf %140, %133 : vector<8x512xf32>
    %cst_55 = arith.constant -0.284496725 : f32
    %142 = vector.broadcast %cst_55 : f32 to vector<8x512xf32>
    %143 = arith.addf %141, %142 : vector<8x512xf32>
    %144 = arith.mulf %143, %133 : vector<8x512xf32>
    %cst_56 = arith.constant 0.254829586 : f32
    %145 = vector.broadcast %cst_56 : f32 to vector<8x512xf32>
    %146 = arith.addf %144, %145 : vector<8x512xf32>
    %147 = arith.mulf %146, %133 : vector<8x512xf32>
    %cst_57 = arith.constant 0.000000e+00 : f32
    %148 = vector.broadcast %cst_57 : f32 to vector<8x512xf32>
    %149 = arith.subf %148, %127 : vector<8x512xf32>
    %150 = arith.mulf %149, %127 : vector<8x512xf32>
    %151 = math.exp %150 : vector<8x512xf32>
    %152 = arith.mulf %147, %151 : vector<8x512xf32>
    %cst_58 = arith.constant 1.000000e+00 : f32
    %153 = vector.broadcast %cst_58 : f32 to vector<8x512xf32>
    %154 = arith.subf %153, %152 : vector<8x512xf32>
    %155 = arith.mulf %126, %154 : vector<8x512xf32>
    %cst_59 = arith.constant 1.000000e+00 : f32
    %156 = vector.broadcast %cst_59 : f32 to vector<8x512xf32>
    %157 = arith.addf %156, %155 : vector<8x512xf32>
    %158 = arith.mulf %119, %157 : vector<8x512xf32>
    %159 = arith.truncf %158 : vector<8x512xf32> to vector<8x512xbf16>
    %cst_60 = arith.constant dense<0.000000e+00> : vector<8x128xf32>
    %160 = tpu.matmul %159, %14, %cst_60 {dimension_numbers = #tpu.dot_dimension_numbers<[1], [0], [0], [1], [0, 0, 1, 1], [], []>} : vector<8x512xbf16>, vector<512x128xbf16>, vector<8x128xf32> -> vector<8x128xf32>
    %161 = vector.broadcast %22 : vector<1x128xf32> to vector<8x128xf32>
    %162 = arith.addf %160, %161 : vector<8x128xf32>
    %163 = arith.addf %93, %162 : vector<8x128xf32>
    %c1 = arith.constant 1 : index
    %c0_61 = arith.constant 0 : index
    %c0_62 = arith.constant 0 : index
    %164 = vector.load %arg6[%c1, %c0_61, %c0_62] : memref<2x128x384xbf16, #tpu.memory_space<vmem>>, vector<1x128x384xbf16>
    %165 = vector.shape_cast %164 : vector<1x128x384xbf16> to vector<128x384xbf16>
    %c1_63 = arith.constant 1 : index
    %c0_64 = arith.constant 0 : index
    %c0_65 = arith.constant 0 : index
    %166 = vector.load %arg7[%c1_63, %c0_64, %c0_65] : memref<2x128x128xbf16, #tpu.memory_space<vmem>>, vector<1x128x128xbf16>
    %167 = vector.shape_cast %166 : vector<1x128x128xbf16> to vector<128x128xbf16>
    %c1_66 = arith.constant 1 : index
    %c0_67 = arith.constant 0 : index
    %c0_68 = arith.constant 0 : index
    %168 = vector.load %arg8[%c1_66, %c0_67, %c0_68] : memref<2x128x512xbf16, #tpu.memory_space<vmem>>, vector<1x128x512xbf16>
    %169 = vector.shape_cast %168 : vector<1x128x512xbf16> to vector<128x512xbf16>
    %c1_69 = arith.constant 1 : index
    %c0_70 = arith.constant 0 : index
    %c0_71 = arith.constant 0 : index
    %170 = vector.load %arg9[%c1_69, %c0_70, %c0_71] : memref<2x512x128xbf16, #tpu.memory_space<vmem>>, vector<1x512x128xbf16>
    %171 = vector.shape_cast %170 : vector<1x512x128xbf16> to vector<512x128xbf16>
    %c1_72 = arith.constant 1 : index
    %c0_73 = arith.constant 0 : index
    %c0_74 = arith.constant 0 : index
    %172 = vector.load %arg10[%c1_72, %c0_73, %c0_74] : memref<2x8x512xf32, #tpu.memory_space<vmem>>, vector<1x8x512xf32>
    %173 = vector.shape_cast %172 : vector<1x8x512xf32> to vector<8x512xf32>
    %174 = vector.extract_strided_slice %173 {offsets = [0, 0], sizes = [1, 128], strides = [1, 1]} : vector<8x512xf32> to vector<1x128xf32>
    %175 = vector.extract_strided_slice %173 {offsets = [1, 0], sizes = [1, 128], strides = [1, 1]} : vector<8x512xf32> to vector<1x128xf32>
    %176 = vector.extract_strided_slice %173 {offsets = [2, 0], sizes = [1, 128], strides = [1, 1]} : vector<8x512xf32> to vector<1x128xf32>
    %177 = vector.extract_strided_slice %173 {offsets = [3, 0], sizes = [1, 128], strides = [1, 1]} : vector<8x512xf32> to vector<1x128xf32>
    %178 = vector.extract_strided_slice %173 {offsets = [4, 0], sizes = [1, 128], strides = [1, 1]} : vector<8x512xf32> to vector<1x128xf32>
    %179 = vector.extract_strided_slice %173 {offsets = [5, 0], sizes = [1, 128], strides = [1, 1]} : vector<8x512xf32> to vector<1x128xf32>
    %180 = vector.extract_strided_slice %173 {offsets = [6, 0], sizes = [1, 512], strides = [1, 1]} : vector<8x512xf32> to vector<1x512xf32>
    %181 = vector.extract_strided_slice %173 {offsets = [7, 0], sizes = [1, 384], strides = [1, 1]} : vector<8x512xf32> to vector<1x384xf32>
    %cst_75 = arith.constant dense<0.000000e+00> : vector<8xf32>
    %182 = vector.multi_reduction <add>, %163, %cst_75 [1] : vector<8x128xf32> to vector<8xf32>
    %183 = vector.shape_cast %182 : vector<8xf32> to vector<8x1xf32>
    %cst_76 = arith.constant 1.280000e+02 : f32
    %184 = vector.broadcast %cst_76 : f32 to vector<8x1xf32>
    %185 = arith.divf %183, %184 : vector<8x1xf32>
    %186 = vector.broadcast %185 : vector<8x1xf32> to vector<8x128xf32>
    %187 = arith.subf %163, %186 : vector<8x128xf32>
    %188 = arith.mulf %187, %187 : vector<8x128xf32>
    %cst_77 = arith.constant dense<0.000000e+00> : vector<8xf32>
    %189 = vector.multi_reduction <add>, %188, %cst_77 [1] : vector<8x128xf32> to vector<8xf32>
    %190 = vector.shape_cast %189 : vector<8xf32> to vector<8x1xf32>
    %cst_78 = arith.constant 1.280000e+02 : f32
    %191 = vector.broadcast %cst_78 : f32 to vector<8x1xf32>
    %192 = arith.divf %190, %191 : vector<8x1xf32>
    %cst_79 = arith.constant 9.99999974E-6 : f32
    %193 = vector.broadcast %cst_79 : f32 to vector<8x1xf32>
    %194 = arith.addf %192, %193 : vector<8x1xf32>
    %195 = math.rsqrt %194 : vector<8x1xf32>
    %196 = vector.broadcast %195 : vector<8x1xf32> to vector<8x128xf32>
    %197 = arith.mulf %187, %196 : vector<8x128xf32>
    %198 = vector.broadcast %174 : vector<1x128xf32> to vector<8x128xf32>
    %199 = arith.mulf %197, %198 : vector<8x128xf32>
    %200 = vector.broadcast %175 : vector<1x128xf32> to vector<8x128xf32>
    %201 = arith.addf %199, %200 : vector<8x128xf32>
    %202 = arith.truncf %201 : vector<8x128xf32> to vector<8x128xbf16>
    %cst_80 = arith.constant dense<0.000000e+00> : vector<8x384xf32>
    %203 = tpu.matmul %202, %165, %cst_80 {dimension_numbers = #tpu.dot_dimension_numbers<[1], [0], [0], [1], [0, 0, 1, 1], [], []>} : vector<8x128xbf16>, vector<128x384xbf16>, vector<8x384xf32> -> vector<8x384xf32>
    %204 = vector.broadcast %181 : vector<1x384xf32> to vector<8x384xf32>
    %205 = arith.addf %203, %204 : vector<8x384xf32>
    %206 = vector.extract_strided_slice %205 {offsets = [0, 0], sizes = [8, 128], strides = [1, 1]} : vector<8x384xf32> to vector<8x128xf32>
    %207 = vector.extract_strided_slice %205 {offsets = [0, 128], sizes = [8, 128], strides = [1, 1]} : vector<8x384xf32> to vector<8x128xf32>
    %208 = vector.extract_strided_slice %205 {offsets = [0, 256], sizes = [8, 128], strides = [1, 1]} : vector<8x384xf32> to vector<8x128xf32>
    %209 = arith.truncf %206 : vector<8x128xf32> to vector<8x128xbf16>
    %cst_81 = arith.constant dense<0.000000e+00> : vector<8x128xf32>
    %210 = tpu.matmul %209, %6, %cst_81 {dimension_numbers = #tpu.dot_dimension_numbers<[1], [0], [0], [1], [0, 0, 1, 1], [], []>} : vector<8x128xbf16>, vector<128x128xbf16>, vector<8x128xf32> -> vector<8x128xf32>
    %211 = arith.truncf %207 : vector<8x128xf32> to vector<8x128xbf16>
    %cst_82 = arith.constant dense<0.000000e+00> : vector<8x128xf32>
    %212 = tpu.matmul %211, %6, %cst_82 {dimension_numbers = #tpu.dot_dimension_numbers<[1], [0], [0], [1], [0, 0, 1, 1], [], []>} : vector<8x128xbf16>, vector<128x128xbf16>, vector<8x128xf32> -> vector<8x128xf32>
    %213 = arith.mulf %206, %4 : vector<8x128xf32>
    %214 = arith.mulf %210, %5 : vector<8x128xf32>
    %215 = arith.addf %213, %214 : vector<8x128xf32>
    %216 = arith.mulf %207, %4 : vector<8x128xf32>
    %217 = arith.mulf %212, %5 : vector<8x128xf32>
    %218 = arith.addf %216, %217 : vector<8x128xf32>
    %219 = vector.shape_cast %215 : vector<8x128xf32> to vector<8x2x64xf32>
    %220 = tpu.transpose %219, [1, 0, 2] : vector<8x2x64xf32> -> vector<2x8x64xf32>
    %221 = arith.truncf %220 : vector<2x8x64xf32> to vector<2x8x64xbf16>
    %222 = vector.shape_cast %218 : vector<8x128xf32> to vector<8x2x64xf32>
    %223 = tpu.transpose %222, [1, 0, 2] : vector<8x2x64xf32> -> vector<2x8x64xf32>
    %224 = arith.truncf %223 : vector<2x8x64xf32> to vector<2x8x64xbf16>
    %225 = vector.shape_cast %208 : vector<8x128xf32> to vector<8x2x64xf32>
    %226 = tpu.transpose %225, [1, 0, 2] : vector<8x2x64xf32> -> vector<2x8x64xf32>
    %227 = arith.truncf %226 : vector<2x8x64xf32> to vector<2x8x64xbf16>
    "tpu.trace_start"() <{level = 10 : i32, message = "htd,hsd->hts"}> : () -> ()
    %cst_83 = arith.constant dense<0.000000e+00> : vector<2x8x8xf32>
    %228 = tpu.matmul %221, %224, %cst_83 {dimension_numbers = #tpu.dot_dimension_numbers<[2], [2], [1], [1], [0, 0, 0, 1, 1, 1], [0], [0]>} : vector<2x8x64xbf16>, vector<2x8x64xbf16>, vector<2x8x8xf32> -> vector<2x8x8xf32>
    "tpu.trace_stop"() : () -> ()
    %229 = vector.shape_cast %3 : vector<1x8xf32> to vector<1x1x8xf32>
    %230 = vector.broadcast %229 : vector<1x1x8xf32> to vector<2x8x8xf32>
    %231 = arith.addf %228, %230 : vector<2x8x8xf32>
    %cst_84 = arith.constant dense<0xFF800000> : vector<2x8xf32>
    %232 = vector.multi_reduction <maximumf>, %231, %cst_84 [2] : vector<2x8x8xf32> to vector<2x8xf32>
    %233 = vector.shape_cast %232 : vector<2x8xf32> to vector<2x8x1xf32>
    %234 = vector.broadcast %233 : vector<2x8x1xf32> to vector<2x8x8xf32>
    %235 = arith.subf %231, %234 : vector<2x8x8xf32>
    %236 = math.exp %235 : vector<2x8x8xf32>
    %cst_85 = arith.constant dense<0.000000e+00> : vector<2x8xf32>
    %237 = vector.multi_reduction <add>, %236, %cst_85 [2] : vector<2x8x8xf32> to vector<2x8xf32>
    %238 = vector.shape_cast %237 : vector<2x8xf32> to vector<2x8x1xf32>
    %239 = tpu.reciprocal %238 {approx = true} : vector<2x8x1xf32> -> vector<2x8x1xf32>
    %240 = vector.broadcast %239 : vector<2x8x1xf32> to vector<2x8x8xf32>
    %241 = arith.mulf %236, %240 : vector<2x8x8xf32>
    %242 = arith.truncf %241 : vector<2x8x8xf32> to vector<2x8x8xbf16>
    "tpu.trace_start"() <{level = 10 : i32, message = "hts,hsd->htd"}> : () -> ()
    %cst_86 = arith.constant dense<0.000000e+00> : vector<2x8x64xf32>
    %243 = tpu.matmul %242, %227, %cst_86 {dimension_numbers = #tpu.dot_dimension_numbers<[2], [1], [1], [2], [0, 0, 0, 1, 1, 2], [0], [0]>} : vector<2x8x8xbf16>, vector<2x8x64xbf16>, vector<2x8x64xf32> -> vector<2x8x64xf32>
    "tpu.trace_stop"() : () -> ()
    %244 = tpu.transpose %243, [1, 0, 2] : vector<2x8x64xf32> -> vector<8x2x64xf32>
    %245 = vector.shape_cast %244 : vector<8x2x64xf32> to vector<8x128xf32>
    %246 = arith.truncf %245 : vector<8x128xf32> to vector<8x128xbf16>
    %cst_87 = arith.constant dense<0.000000e+00> : vector<8x128xf32>
    %247 = tpu.matmul %246, %167, %cst_87 {dimension_numbers = #tpu.dot_dimension_numbers<[1], [0], [0], [1], [0, 0, 1, 1], [], []>} : vector<8x128xbf16>, vector<128x128xbf16>, vector<8x128xf32> -> vector<8x128xf32>
    %248 = arith.addf %163, %247 : vector<8x128xf32>
    %249 = vector.broadcast %178 : vector<1x128xf32> to vector<8x128xf32>
    %250 = arith.addf %248, %249 : vector<8x128xf32>
    %cst_88 = arith.constant dense<0.000000e+00> : vector<8xf32>
    %251 = vector.multi_reduction <add>, %250, %cst_88 [1] : vector<8x128xf32> to vector<8xf32>
    %252 = vector.shape_cast %251 : vector<8xf32> to vector<8x1xf32>
    %cst_89 = arith.constant 1.280000e+02 : f32
    %253 = vector.broadcast %cst_89 : f32 to vector<8x1xf32>
    %254 = arith.divf %252, %253 : vector<8x1xf32>
    %255 = vector.broadcast %254 : vector<8x1xf32> to vector<8x128xf32>
    %256 = arith.subf %250, %255 : vector<8x128xf32>
    %257 = arith.mulf %256, %256 : vector<8x128xf32>
    %cst_90 = arith.constant dense<0.000000e+00> : vector<8xf32>
    %258 = vector.multi_reduction <add>, %257, %cst_90 [1] : vector<8x128xf32> to vector<8xf32>
    %259 = vector.shape_cast %258 : vector<8xf32> to vector<8x1xf32>
    %cst_91 = arith.constant 1.280000e+02 : f32
    %260 = vector.broadcast %cst_91 : f32 to vector<8x1xf32>
    %261 = arith.divf %259, %260 : vector<8x1xf32>
    %cst_92 = arith.constant 9.99999974E-6 : f32
    %262 = vector.broadcast %cst_92 : f32 to vector<8x1xf32>
    %263 = arith.addf %261, %262 : vector<8x1xf32>
    %264 = math.rsqrt %263 : vector<8x1xf32>
    %265 = vector.broadcast %264 : vector<8x1xf32> to vector<8x128xf32>
    %266 = arith.mulf %256, %265 : vector<8x128xf32>
    %267 = vector.broadcast %176 : vector<1x128xf32> to vector<8x128xf32>
    %268 = arith.mulf %266, %267 : vector<8x128xf32>
    %269 = vector.broadcast %177 : vector<1x128xf32> to vector<8x128xf32>
    %270 = arith.addf %268, %269 : vector<8x128xf32>
    %271 = arith.truncf %270 : vector<8x128xf32> to vector<8x128xbf16>
    %cst_93 = arith.constant dense<0.000000e+00> : vector<8x512xf32>
    %272 = tpu.matmul %271, %169, %cst_93 {dimension_numbers = #tpu.dot_dimension_numbers<[1], [0], [0], [1], [0, 0, 1, 1], [], []>} : vector<8x128xbf16>, vector<128x512xbf16>, vector<8x512xf32> -> vector<8x512xf32>
    %273 = vector.broadcast %180 : vector<1x512xf32> to vector<8x512xf32>
    %274 = arith.addf %272, %273 : vector<8x512xf32>
    %cst_94 = arith.constant 5.000000e-01 : f32
    %275 = vector.broadcast %cst_94 : f32 to vector<8x512xf32>
    %276 = arith.mulf %275, %274 : vector<8x512xf32>
    %cst_95 = arith.constant 0.707106769 : f32
    %277 = vector.broadcast %cst_95 : f32 to vector<8x512xf32>
    %278 = arith.mulf %274, %277 : vector<8x512xf32>
    %cst_96 = arith.constant 0.000000e+00 : f32
    %279 = vector.broadcast %cst_96 : f32 to vector<8x512xf32>
    %280 = arith.cmpf oge, %278, %279 : vector<8x512xf32>
    %cst_97 = arith.constant 1.000000e+00 : f32
    %cst_98 = arith.constant -1.000000e+00 : f32
    %281 = vector.broadcast %cst_97 : f32 to vector<8x512xf32>
    %282 = vector.broadcast %cst_98 : f32 to vector<8x512xf32>
    %283 = arith.select %280, %281, %282 : vector<8x512xi1>, vector<8x512xf32>
    %284 = math.absf %278 : vector<8x512xf32>
    %cst_99 = arith.constant 0.327591091 : f32
    %285 = vector.broadcast %cst_99 : f32 to vector<8x512xf32>
    %286 = arith.mulf %285, %284 : vector<8x512xf32>
    %cst_100 = arith.constant 1.000000e+00 : f32
    %287 = vector.broadcast %cst_100 : f32 to vector<8x512xf32>
    %288 = arith.addf %287, %286 : vector<8x512xf32>
    %cst_101 = arith.constant 1.000000e+00 : f32
    %289 = vector.broadcast %cst_101 : f32 to vector<8x512xf32>
    %290 = arith.divf %289, %288 : vector<8x512xf32>
    %cst_102 = arith.constant 1.06140542 : f32
    %291 = vector.broadcast %cst_102 : f32 to vector<8x512xf32>
    %292 = arith.mulf %291, %290 : vector<8x512xf32>
    %cst_103 = arith.constant -1.45315206 : f32
    %293 = vector.broadcast %cst_103 : f32 to vector<8x512xf32>
    %294 = arith.addf %292, %293 : vector<8x512xf32>
    %295 = arith.mulf %294, %290 : vector<8x512xf32>
    %cst_104 = arith.constant 1.42141378 : f32
    %296 = vector.broadcast %cst_104 : f32 to vector<8x512xf32>
    %297 = arith.addf %295, %296 : vector<8x512xf32>
    %298 = arith.mulf %297, %290 : vector<8x512xf32>
    %cst_105 = arith.constant -0.284496725 : f32
    %299 = vector.broadcast %cst_105 : f32 to vector<8x512xf32>
    %300 = arith.addf %298, %299 : vector<8x512xf32>
    %301 = arith.mulf %300, %290 : vector<8x512xf32>
    %cst_106 = arith.constant 0.254829586 : f32
    %302 = vector.broadcast %cst_106 : f32 to vector<8x512xf32>
    %303 = arith.addf %301, %302 : vector<8x512xf32>
    %304 = arith.mulf %303, %290 : vector<8x512xf32>
    %cst_107 = arith.constant 0.000000e+00 : f32
    %305 = vector.broadcast %cst_107 : f32 to vector<8x512xf32>
    %306 = arith.subf %305, %284 : vector<8x512xf32>
    %307 = arith.mulf %306, %284 : vector<8x512xf32>
    %308 = math.exp %307 : vector<8x512xf32>
    %309 = arith.mulf %304, %308 : vector<8x512xf32>
    %cst_108 = arith.constant 1.000000e+00 : f32
    %310 = vector.broadcast %cst_108 : f32 to vector<8x512xf32>
    %311 = arith.subf %310, %309 : vector<8x512xf32>
    %312 = arith.mulf %283, %311 : vector<8x512xf32>
    %cst_109 = arith.constant 1.000000e+00 : f32
    %313 = vector.broadcast %cst_109 : f32 to vector<8x512xf32>
    %314 = arith.addf %313, %312 : vector<8x512xf32>
    %315 = arith.mulf %276, %314 : vector<8x512xf32>
    %316 = arith.truncf %315 : vector<8x512xf32> to vector<8x512xbf16>
    %cst_110 = arith.constant dense<0.000000e+00> : vector<8x128xf32>
    %317 = tpu.matmul %316, %171, %cst_110 {dimension_numbers = #tpu.dot_dimension_numbers<[1], [0], [0], [1], [0, 0, 1, 1], [], []>} : vector<8x512xbf16>, vector<512x128xbf16>, vector<8x128xf32> -> vector<8x128xf32>
    %318 = vector.broadcast %179 : vector<1x128xf32> to vector<8x128xf32>
    %319 = arith.addf %317, %318 : vector<8x128xf32>
    %320 = arith.addf %250, %319 : vector<8x128xf32>
    %c0_111 = arith.constant 0 : index
    %c0_112 = arith.constant 0 : index
    %321 = vector.load %arg13[%c0_111, %c0_112] : memref<6x128xf32, #tpu.memory_space<vmem>>, vector<6x128xf32>
    %322 = vector.extract_strided_slice %321 {offsets = [0, 0], sizes = [1, 128], strides = [1, 1]} : vector<6x128xf32> to vector<1x128xf32>
    %323 = vector.extract_strided_slice %321 {offsets = [1, 0], sizes = [1, 128], strides = [1, 1]} : vector<6x128xf32> to vector<1x128xf32>
    %cst_113 = arith.constant dense<0.000000e+00> : vector<8xf32>
    %324 = vector.multi_reduction <add>, %320, %cst_113 [1] : vector<8x128xf32> to vector<8xf32>
    %325 = vector.shape_cast %324 : vector<8xf32> to vector<8x1xf32>
    %cst_114 = arith.constant 1.280000e+02 : f32
    %326 = vector.broadcast %cst_114 : f32 to vector<8x1xf32>
    %327 = arith.divf %325, %326 : vector<8x1xf32>
    %328 = vector.broadcast %327 : vector<8x1xf32> to vector<8x128xf32>
    %329 = arith.subf %320, %328 : vector<8x128xf32>
    %330 = arith.mulf %329, %329 : vector<8x128xf32>
    %cst_115 = arith.constant dense<0.000000e+00> : vector<8xf32>
    %331 = vector.multi_reduction <add>, %330, %cst_115 [1] : vector<8x128xf32> to vector<8xf32>
    %332 = vector.shape_cast %331 : vector<8xf32> to vector<8x1xf32>
    %cst_116 = arith.constant 1.280000e+02 : f32
    %333 = vector.broadcast %cst_116 : f32 to vector<8x1xf32>
    %334 = arith.divf %332, %333 : vector<8x1xf32>
    %cst_117 = arith.constant 9.99999974E-6 : f32
    %335 = vector.broadcast %cst_117 : f32 to vector<8x1xf32>
    %336 = arith.addf %334, %335 : vector<8x1xf32>
    %337 = math.rsqrt %336 : vector<8x1xf32>
    %338 = vector.broadcast %337 : vector<8x1xf32> to vector<8x128xf32>
    %339 = arith.mulf %329, %338 : vector<8x128xf32>
    %340 = vector.broadcast %322 : vector<1x128xf32> to vector<8x128xf32>
    %341 = arith.mulf %339, %340 : vector<8x128xf32>
    %342 = vector.broadcast %323 : vector<1x128xf32> to vector<8x128xf32>
    %343 = arith.addf %341, %342 : vector<8x128xf32>
    %344 = arith.truncf %343 : vector<8x128xf32> to vector<8x128xbf16>
    %c0_118 = arith.constant 0 : index
    %c0_119 = arith.constant 0 : index
    %345 = vector.load %arg11[%c0_118, %c0_119] : memref<128x128xbf16, #tpu.memory_space<vmem>>, vector<128x128xbf16>
    %cst_120 = arith.constant dense<0.000000e+00> : vector<8x128xf32>
    %346 = tpu.matmul %344, %345, %cst_120 {dimension_numbers = #tpu.dot_dimension_numbers<[1], [0], [0], [1], [0, 0, 1, 1], [], []>} : vector<8x128xbf16>, vector<128x128xbf16>, vector<8x128xf32> -> vector<8x128xf32>
    %347 = vector.extract_strided_slice %321 {offsets = [2, 0], sizes = [1, 128], strides = [1, 1]} : vector<6x128xf32> to vector<1x128xf32>
    %348 = vector.broadcast %347 : vector<1x128xf32> to vector<8x128xf32>
    %349 = arith.addf %346, %348 : vector<8x128xf32>
    %cst_121 = arith.constant 5.000000e-01 : f32
    %350 = vector.broadcast %cst_121 : f32 to vector<8x128xf32>
    %351 = arith.mulf %350, %349 : vector<8x128xf32>
    %cst_122 = arith.constant 0.707106769 : f32
    %352 = vector.broadcast %cst_122 : f32 to vector<8x128xf32>
    %353 = arith.mulf %349, %352 : vector<8x128xf32>
    %cst_123 = arith.constant 0.000000e+00 : f32
    %354 = vector.broadcast %cst_123 : f32 to vector<8x128xf32>
    %355 = arith.cmpf oge, %353, %354 : vector<8x128xf32>
    %cst_124 = arith.constant 1.000000e+00 : f32
    %cst_125 = arith.constant -1.000000e+00 : f32
    %356 = vector.broadcast %cst_124 : f32 to vector<8x128xf32>
    %357 = vector.broadcast %cst_125 : f32 to vector<8x128xf32>
    %358 = arith.select %355, %356, %357 : vector<8x128xi1>, vector<8x128xf32>
    %359 = math.absf %353 : vector<8x128xf32>
    %cst_126 = arith.constant 0.327591091 : f32
    %360 = vector.broadcast %cst_126 : f32 to vector<8x128xf32>
    %361 = arith.mulf %360, %359 : vector<8x128xf32>
    %cst_127 = arith.constant 1.000000e+00 : f32
    %362 = vector.broadcast %cst_127 : f32 to vector<8x128xf32>
    %363 = arith.addf %362, %361 : vector<8x128xf32>
    %cst_128 = arith.constant 1.000000e+00 : f32
    %364 = vector.broadcast %cst_128 : f32 to vector<8x128xf32>
    %365 = arith.divf %364, %363 : vector<8x128xf32>
    %cst_129 = arith.constant 1.06140542 : f32
    %366 = vector.broadcast %cst_129 : f32 to vector<8x128xf32>
    %367 = arith.mulf %366, %365 : vector<8x128xf32>
    %cst_130 = arith.constant -1.45315206 : f32
    %368 = vector.broadcast %cst_130 : f32 to vector<8x128xf32>
    %369 = arith.addf %367, %368 : vector<8x128xf32>
    %370 = arith.mulf %369, %365 : vector<8x128xf32>
    %cst_131 = arith.constant 1.42141378 : f32
    %371 = vector.broadcast %cst_131 : f32 to vector<8x128xf32>
    %372 = arith.addf %370, %371 : vector<8x128xf32>
    %373 = arith.mulf %372, %365 : vector<8x128xf32>
    %cst_132 = arith.constant -0.284496725 : f32
    %374 = vector.broadcast %cst_132 : f32 to vector<8x128xf32>
    %375 = arith.addf %373, %374 : vector<8x128xf32>
    %376 = arith.mulf %375, %365 : vector<8x128xf32>
    %cst_133 = arith.constant 0.254829586 : f32
    %377 = vector.broadcast %cst_133 : f32 to vector<8x128xf32>
    %378 = arith.addf %376, %377 : vector<8x128xf32>
    %379 = arith.mulf %378, %365 : vector<8x128xf32>
    %cst_134 = arith.constant 0.000000e+00 : f32
    %380 = vector.broadcast %cst_134 : f32 to vector<8x128xf32>
    %381 = arith.subf %380, %359 : vector<8x128xf32>
    %382 = arith.mulf %381, %359 : vector<8x128xf32>
    %383 = math.exp %382 : vector<8x128xf32>
    %384 = arith.mulf %379, %383 : vector<8x128xf32>
    %cst_135 = arith.constant 1.000000e+00 : f32
    %385 = vector.broadcast %cst_135 : f32 to vector<8x128xf32>
    %386 = arith.subf %385, %384 : vector<8x128xf32>
    %387 = arith.mulf %358, %386 : vector<8x128xf32>
    %cst_136 = arith.constant 1.000000e+00 : f32
    %388 = vector.broadcast %cst_136 : f32 to vector<8x128xf32>
    %389 = arith.addf %388, %387 : vector<8x128xf32>
    %390 = arith.mulf %351, %389 : vector<8x128xf32>
    %391 = vector.extract_strided_slice %321 {offsets = [3, 0], sizes = [1, 128], strides = [1, 1]} : vector<6x128xf32> to vector<1x128xf32>
    %392 = vector.extract_strided_slice %321 {offsets = [4, 0], sizes = [1, 128], strides = [1, 1]} : vector<6x128xf32> to vector<1x128xf32>
    %cst_137 = arith.constant dense<0.000000e+00> : vector<8xf32>
    %393 = vector.multi_reduction <add>, %390, %cst_137 [1] : vector<8x128xf32> to vector<8xf32>
    %394 = vector.shape_cast %393 : vector<8xf32> to vector<8x1xf32>
    %cst_138 = arith.constant 1.280000e+02 : f32
    %395 = vector.broadcast %cst_138 : f32 to vector<8x1xf32>
    %396 = arith.divf %394, %395 : vector<8x1xf32>
    %397 = vector.broadcast %396 : vector<8x1xf32> to vector<8x128xf32>
    %398 = arith.subf %390, %397 : vector<8x128xf32>
    %399 = arith.mulf %398, %398 : vector<8x128xf32>
    %cst_139 = arith.constant dense<0.000000e+00> : vector<8xf32>
    %400 = vector.multi_reduction <add>, %399, %cst_139 [1] : vector<8x128xf32> to vector<8xf32>
    %401 = vector.shape_cast %400 : vector<8xf32> to vector<8x1xf32>
    %cst_140 = arith.constant 1.280000e+02 : f32
    %402 = vector.broadcast %cst_140 : f32 to vector<8x1xf32>
    %403 = arith.divf %401, %402 : vector<8x1xf32>
    %cst_141 = arith.constant 9.99999974E-6 : f32
    %404 = vector.broadcast %cst_141 : f32 to vector<8x1xf32>
    %405 = arith.addf %403, %404 : vector<8x1xf32>
    %406 = math.rsqrt %405 : vector<8x1xf32>
    %407 = vector.broadcast %406 : vector<8x1xf32> to vector<8x128xf32>
    %408 = arith.mulf %398, %407 : vector<8x128xf32>
    %409 = vector.broadcast %391 : vector<1x128xf32> to vector<8x128xf32>
    %410 = arith.mulf %408, %409 : vector<8x128xf32>
    %411 = vector.broadcast %392 : vector<1x128xf32> to vector<8x128xf32>
    %412 = arith.addf %410, %411 : vector<8x128xf32>
    %413 = arith.truncf %412 : vector<8x128xf32> to vector<8x128xbf16>
    %c0_142 = arith.constant 0 : index
    %c0_143 = arith.constant 0 : index
    %414 = vector.load %arg12[%c0_142, %c0_143] : memref<128x128xbf16, #tpu.memory_space<vmem>>, vector<128x128xbf16>
    %cst_144 = arith.constant dense<0.000000e+00> : vector<8x128xf32>
    %415 = tpu.matmul %413, %414, %cst_144 {dimension_numbers = #tpu.dot_dimension_numbers<[1], [0], [0], [1], [0, 0, 1, 1], [], []>} : vector<8x128xbf16>, vector<128x128xbf16>, vector<8x128xf32> -> vector<8x128xf32>
    %416 = vector.extract_strided_slice %321 {offsets = [5, 0], sizes = [1, 128], strides = [1, 1]} : vector<6x128xf32> to vector<1x128xf32>
    %417 = vector.broadcast %416 : vector<1x128xf32> to vector<8x128xf32>
    %418 = arith.addf %415, %417 : vector<8x128xf32>
    %c0_145 = arith.constant 0 : index
    %c0_146 = arith.constant 0 : index
    %c0_147 = arith.constant 0 : index
    %419 = vector.load %arg14[%c0_145, %c0_146, %c0_147] : memref<1x8x128xf32, #tpu.memory_space<vmem>>, vector<1x8x128xf32>
    %420 = vector.shape_cast %419 : vector<1x8x128xf32> to vector<8x128xf32>
    %421 = vector.shape_cast %418 : vector<8x128xf32> to vector<1x8x128xf32>
    tpu.vector_store %arg14[%c0_145, %c0_146, %c0_147], %421 {strides = array<i32>} : memref<1x8x128xf32, #tpu.memory_space<vmem>>, vector<1x8x128xf32>,
    return
  }
  func.func @transform_0(%arg0: i32) -> (i32, i32, i32) {
    %c0_i32 = arith.constant 0 : i32
    %c0_i32_0 = arith.constant 0 : i32
    %c0_i32_1 = arith.constant 0 : i32
    return %arg0, %c0_i32, %c0_i32_0 : i32, i32, i32
  }
  func.func @transform_1(%arg0: i32) -> (i32, i32, i32) {
    %c0_i32 = arith.constant 0 : i32
    %c0_i32_0 = arith.constant 0 : i32
    %c0_i32_1 = arith.constant 0 : i32
    return %arg0, %c0_i32, %c0_i32_0 : i32, i32, i32
  }
  func.func @transform_2(%arg0: i32) -> (i32, i32) {
    %c0_i32 = arith.constant 0 : i32
    %c0_i32_0 = arith.constant 0 : i32
    %c0_i32_1 = arith.constant 0 : i32
    return %c0_i32, %c0_i32_0 : i32, i32
  }
  func.func @transform_3(%arg0: i32) -> (i32, i32) {
    %c0_i32 = arith.constant 0 : i32
    %c0_i32_0 = arith.constant 0 : i32
    %c0_i32_1 = arith.constant 0 : i32
    return %c0_i32, %c0_i32_0 : i32, i32
  }
  func.func @transform_4(%arg0: i32) -> (i32, i32) {
    %c0_i32 = arith.constant 0 : i32
    %c0_i32_0 = arith.constant 0 : i32
    %c0_i32_1 = arith.constant 0 : i32
    return %c0_i32, %c0_i32_0 : i32, i32
  }
  func.func @transform_5(%arg0: i32) -> (i32, i32, i32) {
    %c0_i32 = arith.constant 0 : i32
    %c0_i32_0 = arith.constant 0 : i32
    %c0_i32_1 = arith.constant 0 : i32
    %c0_i32_2 = arith.constant 0 : i32
    return %c0_i32, %c0_i32_0, %c0_i32_1 : i32, i32, i32
  }
  func.func @transform_6(%arg0: i32) -> (i32, i32, i32) {
    %c0_i32 = arith.constant 0 : i32
    %c0_i32_0 = arith.constant 0 : i32
    %c0_i32_1 = arith.constant 0 : i32
    %c0_i32_2 = arith.constant 0 : i32
    return %c0_i32, %c0_i32_0, %c0_i32_1 : i32, i32, i32
  }
  func.func @transform_7(%arg0: i32) -> (i32, i32, i32) {
    %c0_i32 = arith.constant 0 : i32
    %c0_i32_0 = arith.constant 0 : i32
    %c0_i32_1 = arith.constant 0 : i32
    %c0_i32_2 = arith.constant 0 : i32
    return %c0_i32, %c0_i32_0, %c0_i32_1 : i32, i32, i32
  }
  func.func @transform_8(%arg0: i32) -> (i32, i32, i32) {
    %c0_i32 = arith.constant 0 : i32
    %c0_i32_0 = arith.constant 0 : i32
    %c0_i32_1 = arith.constant 0 : i32
    %c0_i32_2 = arith.constant 0 : i32
    return %c0_i32, %c0_i32_0, %c0_i32_1 : i32, i32, i32
  }
  func.func @transform_9(%arg0: i32) -> (i32, i32, i32) {
    %c0_i32 = arith.constant 0 : i32
    %c0_i32_0 = arith.constant 0 : i32
    %c0_i32_1 = arith.constant 0 : i32
    %c0_i32_2 = arith.constant 0 : i32
    return %c0_i32, %c0_i32_0, %c0_i32_1 : i32, i32, i32
  }
  func.func @transform_10(%arg0: i32) -> (i32, i32) {
    %c0_i32 = arith.constant 0 : i32
    %c0_i32_0 = arith.constant 0 : i32
    %c0_i32_1 = arith.constant 0 : i32
    return %c0_i32, %c0_i32_0 : i32, i32
  }
  func.func @transform_11(%arg0: i32) -> (i32, i32) {
    %c0_i32 = arith.constant 0 : i32
    %c0_i32_0 = arith.constant 0 : i32
    %c0_i32_1 = arith.constant 0 : i32
    return %c0_i32, %c0_i32_0 : i32, i32
  }
  func.func @transform_12(%arg0: i32) -> (i32, i32) {
    %c0_i32 = arith.constant 0 : i32
    %c0_i32_0 = arith.constant 0 : i32
    %c0_i32_1 = arith.constant 0 : i32
    return %c0_i32, %c0_i32_0 : i32, i32
  }
  func.func @transform_13(%arg0: i32) -> (i32, i32, i32) {
    %c0_i32 = arith.constant 0 : i32
    %c0_i32_0 = arith.constant 0 : i32
    %c0_i32_1 = arith.constant 0 : i32
    return %arg0, %c0_i32, %c0_i32_0 : i32, i32, i32
  }
}

</mosaic_0001>

<llo_original>
// kernel: tpu_custom_call.1
$region0: #{tpu_custom_call.1}
  #allocation0 [shape = 'u32[]', space=smem, size = 0x4, offset = 0x4, fixed_abs, tag = 'smem constant byte address 0x4 - core index']
  #allocation1 [shape = 'u32[144,128]{1,0:T(1,128)}', space=vmem, size = 0x12000, scoped, tag = 'internal scratch']
  %s0 = inlined_call_operand.hbm [shape: f32[2,8,128], index: 0, kind: input, shape index: {}]
  %s1 = inlined_call_operand.vmem [shape: f32[2,1,8], index: 1, kind: input, shape index: {}]
  %s2 = inlined_call_operand.hbm [shape: f32[8,128], index: 2, kind: input, shape index: {}]
  %s3 = inlined_call_operand.vmem [shape: f32[8,128], index: 3, kind: input, shape index: {}]
  %s4 = inlined_call_operand.hbm [shape: bf16[128,128], index: 4, kind: input, shape index: {}]
  %s5 = inlined_call_operand.hbm [shape: bf16[2,128,384], index: 5, kind: input, shape index: {}]
  %s6 = inlined_call_operand.hbm [shape: bf16[2,128,128], index: 6, kind: input, shape index: {}]
  %s7 = inlined_call_operand.hbm [shape: bf16[2,128,512], index: 7, kind: input, shape index: {}]
  %s8 = inlined_call_operand.hbm [shape: bf16[2,512,128], index: 8, kind: input, shape index: {}]
  %s9 = inlined_call_operand.hbm [shape: f32[2,8,512], index: 9, kind: input, shape index: {}]
  %s10 = inlined_call_operand.hbm [shape: bf16[128,128], index: 10, kind: input, shape index: {}]
  %s11 = inlined_call_operand.hbm [shape: bf16[128,128], index: 11, kind: input, shape index: {}]
  %s12 = inlined_call_operand.vmem [shape: f32[6,128], index: 12, kind: input, shape index: {}]
  %s13 = inlined_call_operand.hbm [shape: f32[2,8,128], index: 13, kind: output, shape index: {}]
  %s14 = sld [smem:[#allocation0]]
  $region125: #{tpu_custom_call.1} parent=0
    _
  %s16 = ssub.s32 1, %s14
  %s17 = scalar_select 0, %s16, %s14
  $region1: #{tpu_custom_call.1} parent=0
    #allocation2 [shape = 'u8[8192]{0}', space=vmem, size = 0x2000, scoped, tag = 'input window, operand 0']
    #allocation3 [shape = 's32[2]{0}', space=sflag, size = 0x8, scoped, tag = 'scoped memory for tpu_custom_call.1']
    #allocation4 [shape = 's32[2]{0}', space=sflag, size = 0x8, scoped, tag = 'scoped memory for tpu_custom_call.1']
    #allocation5 [shape = 'u8[4096]{0}', space=vmem, size = 0x1000, scoped, tag = 'input window, operand 2, single buffered']
    #allocation6 [shape = 's32[1]{0}', space=sflag, size = 0x4, scoped, tag = 'scoped memory for tpu_custom_call.1']
    #allocation7 [shape = 'u8[32768]{0}', space=vmem, size = 0x8000, scoped, tag = 'input window, operand 4, single buffered']
    #allocation8 [shape = 'u8[196608]{0}', space=vmem, size = 0x30000, scoped, tag = 'input window, operand 5, single buffered']
    #allocation9 [shape = 's32[1]{0}', space=sflag, size = 0x4, scoped, tag = 'scoped memory for tpu_custom_call.1']
    #allocation10 [shape = 'u8[65536]{0}', space=vmem, size = 0x10000, scoped, tag = 'input window, operand 6, single buffered']
    #allocation11 [shape = 'u8[262144]{0}', space=vmem, size = 0x40000, scoped, tag = 'input window, operand 7, single buffered']
    #allocation12 [shape = 's32[1]{0}', space=sflag, size = 0x4, scoped, tag = 'scoped memory for tpu_custom_call.1']
    #allocation13 [shape = 'u8[262144]{0}', space=vmem, size = 0x40000, scoped, tag = 'input window, operand 8, single buffered']
    #allocation14 [shape = 'u8[32768]{0}', space=vmem, size = 0x8000, scoped, tag = 'input window, operand 9, single buffered']
    #allocation15 [shape = 's32[1]{0}', space=sflag, size = 0x4, scoped, tag = 'scoped memory for tpu_custom_call.1']
    #allocation16 [shape = 'u8[32768]{0}', space=vmem, size = 0x8000, scoped, tag = 'input window, operand 10, single buffered']
    #allocation17 [shape = 'u8[32768]{0}', space=vmem, size = 0x8000, scoped, tag = 'input window, operand 11, single buffered']
    #allocation18 [shape = 's32[1]{0}', space=sflag, size = 0x4, scoped, tag = 'scoped memory for tpu_custom_call.1']
    #allocation19 [shape = 'u8[8192]{0}', space=vmem, size = 0x2000, scoped, tag = 'output window, operand 0']
    %18 = vsyncpa [#allocation3], 0
    %s19 = scalar_lea.sflag [#allocation3], 1
    %20 = vsyncpa %s19, 0
    %21 = vsyncpa [#allocation6], 0
    %22 = vsyncpa [#allocation9], 0
    %23 = vsyncpa [#allocation12], 0
    %24 = vsyncpa [#allocation15], 0
    %25 = vsyncpa [#allocation18], 0
    %26 = vsyncpa [#allocation4], 0
    %s27 = scalar_lea.sflag [#allocation4], 1
    %28 = vsyncpa %s27, 0
    loop: start=0, step=1, limit=4
    $region2: #{tpu_custom_call.1} parent=1 // loop_pre_header
      _
    $region3: #{tpu_custom_call.1} parent=1 // loop_header
      %s30 = sphi 0, %s34
      %p31 = scmp.ge.s32.totalorder %s30, 4
      %s40 = sphi 0, %s42
      %s43 = sphi 0, %s40
      %s44 = sphi 0, %s43
      %s60 = sphi 0, %s44
      %s66 = sphi 0, %s68
      %s69 = sphi 0, %s66
      %s70 = sphi 0, %s69
      %s86 = sphi 0, %s70
      %s90 = sphi 0, %s90
      %s92 = sphi 0, %s90
      %s93 = sphi 0, %s92
      %s107 = sphi 0, %s93
      %s111 = sphi 0, %s111
      %s113 = sphi 0, %s111
      %s114 = sphi 0, %s113
      %s128 = sphi 0, %s114
      %s132 = sphi 0, %s132
      %s134 = sphi 0, %s132
      %s135 = sphi 0, %s134
      %s149 = sphi 0, %s135
      %s153 = sphi 0, %s153
      %s155 = sphi 0, %s153
      %s156 = sphi 0, %s155
      %s170 = sphi 0, %s156
      %s174 = sphi 0, %s174
      %s176 = sphi 0, %s174
      %s177 = sphi 0, %s176
      %s191 = sphi 0, %s177
      %s195 = sphi 0, %s195
      %s197 = sphi 0, %s195
      %s198 = sphi 0, %s197
      %s212 = sphi 0, %s198
      %s216 = sphi 0, %s216
      %s218 = sphi 0, %s216
      %s219 = sphi 0, %s218
      %s233 = sphi 0, %s219
      %s237 = sphi 0, %s237
      %s239 = sphi 0, %s237
      %s240 = sphi 0, %s239
      %s254 = sphi 0, %s240
      %s258 = sphi 0, %s258
      %s260 = sphi 0, %s258
      %s261 = sphi 0, %s260
      %s275 = sphi 0, %s261
      %s279 = sphi 0, %s279
      %s281 = sphi 0, %s279
      %s282 = sphi 0, %s281
      %s296 = sphi 0, %s282
      %s300 = sphi 0, %s300
      %s302 = sphi 0, %s300
      %s303 = sphi 0, %s302
      %s317 = sphi 0, %s303
      %s323 = sphi 0, %s325
      %s326 = sphi 0, %s323
      %s327 = sphi 0, %s326
      %s343 = sphi 0, %s327
    $region4: #{tpu_custom_call.1} parent=1 // loop_header_branch
      %33 = sbr.rel (%p31) target = $region8
    $region5: #{tpu_custom_call.1} parent=1 // loop_body
      %s35 = ssub.s32 %s30, 1
      %s36 = ssub.s32 %s30, 2
      %s37 = sadd.s32 %s30, 1
      %s38 = ssub.s32 %s30, %s37
      %p39 = scmp.eq.s32.totalorder %s38, 0
      %s41 = sadd.s32 %s40, 1
      %s42 = scalar_select %p39, %s40, %s41
      %p45 = pneg %p39
      %p46 = scmp.eq.s32.totalorder %s30, 1
      %p47 = por %p45, %p46
      %p48 = scmp.ne.s32.totalorder %s40, %s43
      %p49 = scmp.eq.s32.totalorder %s30, 0
      %p50 = por %p48, %p49
      %p51 = scmp.ne.s32.totalorder %s40, %s43
      %p52 = scmp.eq.s32.totalorder %s35, 1
      %p53 = por %p51, %p52
      %p54 = scmp.ne.s32.totalorder %s43, %s44
      %p55 = scmp.eq.s32.totalorder %s35, 0
      %p56 = por %p54, %p55
      %p57 = scmp.ne.s32.totalorder %s43, %s44
      %p58 = scmp.eq.s32.totalorder %s36, 1
      %p59 = por %p57, %p58
      %p61 = scmp.ne.s32.totalorder %s44, %s60
      %p62 = scmp.eq.s32.totalorder %s36, 0
      %p63 = por %p61, %p62
      %s64 = ssub.s32 %s30, %s37
      %p65 = scmp.eq.s32.totalorder %s64, 0
      %s67 = sadd.s32 %s66, 1
      %s68 = scalar_select %p65, %s66, %s67
      %p71 = pneg %p65
      %p72 = scmp.eq.s32.totalorder %s30, 1
      %p73 = por %p71, %p72
      %p74 = scmp.ne.s32.totalorder %s66, %s69
      %p75 = scmp.eq.s32.totalorder %s30, 0
      %p76 = por %p74, %p75
      %p77 = scmp.ne.s32.totalorder %s66, %s69
      %p78 = scmp.eq.s32.totalorder %s35, 1
      %p79 = por %p77, %p78
      %p80 = scmp.ne.s32.totalorder %s69, %s70
      %p81 = scmp.eq.s32.totalorder %s35, 0
      %p82 = por %p80, %p81
      %p83 = scmp.ne.s32.totalorder %s69, %s70
      %p84 = scmp.eq.s32.totalorder %s36, 1
      %p85 = por %p83, %p84
      %p87 = scmp.ne.s32.totalorder %s70, %s86
      %p88 = scmp.eq.s32.totalorder %s36, 0
      %p89 = por %p87, %p88
      %s91 = sadd.s32 %s90, 1
      %p94 = scmp.eq.s32.totalorder %s30, 1
      %p95 = scmp.ne.s32.totalorder %s90, %s92
      %p96 = scmp.eq.s32.totalorder %s30, 0
      %p97 = por %p95, %p96
      %p98 = scmp.ne.s32.totalorder %s90, %s92
      %p99 = scmp.eq.s32.totalorder %s35, 1
      %p100 = por %p98, %p99
      %p101 = scmp.ne.s32.totalorder %s92, %s93
      %p102 = scmp.eq.s32.totalorder %s35, 0
      %p103 = por %p101, %p102
      %p104 = scmp.ne.s32.totalorder %s92, %s93
      %p105 = scmp.eq.s32.totalorder %s36, 1
      %p106 = por %p104, %p105
      %p108 = scmp.ne.s32.totalorder %s93, %s107
      %p109 = scmp.eq.s32.totalorder %s36, 0
      %p110 = por %p108, %p109
      %s112 = sadd.s32 %s111, 1
      %p115 = scmp.eq.s32.totalorder %s30, 1
      %p116 = scmp.ne.s32.totalorder %s111, %s113
      %p117 = scmp.eq.s32.totalorder %s30, 0
      %p118 = por %p116, %p117
      %p119 = scmp.ne.s32.totalorder %s111, %s113
      %p120 = scmp.eq.s32.totalorder %s35, 1
      %p121 = por %p119, %p120
      %p122 = scmp.ne.s32.totalorder %s113, %s114
      %p123 = scmp.eq.s32.totalorder %s35, 0
      %p124 = por %p122, %p123
      %p125 = scmp.ne.s32.totalorder %s113, %s114
      %p126 = scmp.eq.s32.totalorder %s36, 1
      %p127 = por %p125, %p126
      %p129 = scmp.ne.s32.totalorder %s114, %s128
      %p130 = scmp.eq.s32.totalorder %s36, 0
      %p131 = por %p129, %p130
      %s133 = sadd.s32 %s132, 1
      %p136 = scmp.eq.s32.totalorder %s30, 1
      %p137 = scmp.ne.s32.totalorder %s132, %s134
      %p138 = scmp.eq.s32.totalorder %s30, 0
      %p139 = por %p137, %p138
      %p140 = scmp.ne.s32.totalorder %s132, %s134
      %p141 = scmp.eq.s32.totalorder %s35, 1
      %p142 = por %p140, %p141
      %p143 = scmp.ne.s32.totalorder %s134, %s135
      %p144 = scmp.eq.s32.totalorder %s35, 0
      %p145 = por %p143, %p144
      %p146 = scmp.ne.s32.totalorder %s134, %s135
      %p147 = scmp.eq.s32.totalorder %s36, 1
      %p148 = por %p146, %p147
      %p150 = scmp.ne.s32.totalorder %s135, %s149
      %p151 = scmp.eq.s32.totalorder %s36, 0
      %p152 = por %p150, %p151
      %s154 = sadd.s32 %s153, 1
      %p157 = scmp.eq.s32.totalorder %s30, 1
      %p158 = scmp.ne.s32.totalorder %s153, %s155
      %p159 = scmp.eq.s32.totalorder %s30, 0
      %p160 = por %p158, %p159
      %p161 = scmp.ne.s32.totalorder %s153, %s155
      %p162 = scmp.eq.s32.totalorder %s35, 1
      %p163 = por %p161, %p162
      %p164 = scmp.ne.s32.totalorder %s155, %s156
      %p165 = scmp.eq.s32.totalorder %s35, 0
      %p166 = por %p164, %p165
      %p167 = scmp.ne.s32.totalorder %s155, %s156
      %p168 = scmp.eq.s32.totalorder %s36, 1
      %p169 = por %p167, %p168
      %p171 = scmp.ne.s32.totalorder %s156, %s170
      %p172 = scmp.eq.s32.totalorder %s36, 0
      %p173 = por %p171, %p172
      %s175 = sadd.s32 %s174, 1
      %p178 = scmp.eq.s32.totalorder %s30, 1
      %p179 = scmp.ne.s32.totalorder %s174, %s176
      %p180 = scmp.eq.s32.totalorder %s30, 0
      %p181 = por %p179, %p180
      %p182 = scmp.ne.s32.totalorder %s174, %s176
      %p183 = scmp.eq.s32.totalorder %s35, 1
      %p184 = por %p182, %p183
      %p185 = scmp.ne.s32.totalorder %s176, %s177
      %p186 = scmp.eq.s32.totalorder %s35, 0
      %p187 = por %p185, %p186
      %p188 = scmp.ne.s32.totalorder %s176, %s177
      %p189 = scmp.eq.s32.totalorder %s36, 1
      %p190 = por %p188, %p189
      %p192 = scmp.ne.s32.totalorder %s177, %s191
      %p193 = scmp.eq.s32.totalorder %s36, 0
      %p194 = por %p192, %p193
      %s196 = sadd.s32 %s195, 1
      %p199 = scmp.eq.s32.totalorder %s30, 1
      %p200 = scmp.ne.s32.totalorder %s195, %s197
      %p201 = scmp.eq.s32.totalorder %s30, 0
      %p202 = por %p200, %p201
      %p203 = scmp.ne.s32.totalorder %s195, %s197
      %p204 = scmp.eq.s32.totalorder %s35, 1
      %p205 = por %p203, %p204
      %p206 = scmp.ne.s32.totalorder %s197, %s198
      %p207 = scmp.eq.s32.totalorder %s35, 0
      %p208 = por %p206, %p207
      %p209 = scmp.ne.s32.totalorder %s197, %s198
      %p210 = scmp.eq.s32.totalorder %s36, 1
      %p211 = por %p209, %p210
      %p213 = scmp.ne.s32.totalorder %s198, %s212
      %p214 = scmp.eq.s32.totalorder %s36, 0
      %p215 = por %p213, %p214
      %s217 = sadd.s32 %s216, 1
      %p220 = scmp.eq.s32.totalorder %s30, 1
      %p221 = scmp.ne.s32.totalorder %s216, %s218
      %p222 = scmp.eq.s32.totalorder %s30, 0
      %p223 = por %p221, %p222
      %p224 = scmp.ne.s32.totalorder %s216, %s218
      %p225 = scmp.eq.s32.totalorder %s35, 1
      %p226 = por %p224, %p225
      %p227 = scmp.ne.s32.totalorder %s218, %s219
      %p228 = scmp.eq.s32.totalorder %s35, 0
      %p229 = por %p227, %p228
      %p230 = scmp.ne.s32.totalorder %s218, %s219
      %p231 = scmp.eq.s32.totalorder %s36, 1
      %p232 = por %p230, %p231
      %p234 = scmp.ne.s32.totalorder %s219, %s233
      %p235 = scmp.eq.s32.totalorder %s36, 0
      %p236 = por %p234, %p235
      %s238 = sadd.s32 %s237, 1
      %p241 = scmp.eq.s32.totalorder %s30, 1
      %p242 = scmp.ne.s32.totalorder %s237, %s239
      %p243 = scmp.eq.s32.totalorder %s30, 0
      %p244 = por %p242, %p243
      %p245 = scmp.ne.s32.totalorder %s237, %s239
      %p246 = scmp.eq.s32.totalorder %s35, 1
      %p247 = por %p245, %p246
      %p248 = scmp.ne.s32.totalorder %s239, %s240
      %p249 = scmp.eq.s32.totalorder %s35, 0
      %p250 = por %p248, %p249
      %p251 = scmp.ne.s32.totalorder %s239, %s240
      %p252 = scmp.eq.s32.totalorder %s36, 1
      %p253 = por %p251, %p252
      %p255 = scmp.ne.s32.totalorder %s240, %s254
      %p256 = scmp.eq.s32.totalorder %s36, 0
      %p257 = por %p255, %p256
      %s259 = sadd.s32 %s258, 1
      %p262 = scmp.eq.s32.totalorder %s30, 1
      %p263 = scmp.ne.s32.totalorder %s258, %s260
      %p264 = scmp.eq.s32.totalorder %s30, 0
      %p265 = por %p263, %p264
      %p266 = scmp.ne.s32.totalorder %s258, %s260
      %p267 = scmp.eq.s32.totalorder %s35, 1
      %p268 = por %p266, %p267
      %p269 = scmp.ne.s32.totalorder %s260, %s261
      %p270 = scmp.eq.s32.totalorder %s35, 0
      %p271 = por %p269, %p270
      %p272 = scmp.ne.s32.totalorder %s260, %s261
      %p273 = scmp.eq.s32.totalorder %s36, 1
      %p274 = por %p272, %p273
      %p276 = scmp.ne.s32.totalorder %s261, %s275
      %p277 = scmp.eq.s32.totalorder %s36, 0
      %p278 = por %p276, %p277
      %s280 = sadd.s32 %s279, 1
      %p283 = scmp.eq.s32.totalorder %s30, 1
      %p284 = scmp.ne.s32.totalorder %s279, %s281
      %p285 = scmp.eq.s32.totalorder %s30, 0
      %p286 = por %p284, %p285
      %p287 = scmp.ne.s32.totalorder %s279, %s281
      %p288 = scmp.eq.s32.totalorder %s35, 1
      %p289 = por %p287, %p288
      %p290 = scmp.ne.s32.totalorder %s281, %s282
      %p291 = scmp.eq.s32.totalorder %s35, 0
      %p292 = por %p290, %p291
      %p293 = scmp.ne.s32.totalorder %s281, %s282
      %p294 = scmp.eq.s32.totalorder %s36, 1
      %p295 = por %p293, %p294
      %p297 = scmp.ne.s32.totalorder %s282, %s296
      %p298 = scmp.eq.s32.totalorder %s36, 0
      %p299 = por %p297, %p298
      %s301 = sadd.s32 %s300, 1
      %p304 = scmp.eq.s32.totalorder %s30, 1
      %p305 = scmp.ne.s32.totalorder %s300, %s302
      %p306 = scmp.eq.s32.totalorder %s30, 0
      %p307 = por %p305, %p306
      %p308 = scmp.ne.s32.totalorder %s300, %s302
      %p309 = scmp.eq.s32.totalorder %s35, 1
      %p310 = por %p308, %p309
      %p311 = scmp.ne.s32.totalorder %s302, %s303
      %p312 = scmp.eq.s32.totalorder %s35, 0
      %p313 = por %p311, %p312
      %p314 = scmp.ne.s32.totalorder %s302, %s303
      %p315 = scmp.eq.s32.totalorder %s36, 1
      %p316 = por %p314, %p315
      %p318 = scmp.ne.s32.totalorder %s303, %s317
      %p319 = scmp.eq.s32.totalorder %s36, 0
      %p320 = por %p318, %p319
      %s321 = ssub.s32 %s30, %s37
      %p322 = scmp.eq.s32.totalorder %s321, 0
      %s324 = sadd.s32 %s323, 1
      %s325 = scalar_select %p322, %s323, %s324
      %p328 = pneg %p322
      %p329 = scmp.eq.s32.totalorder %s30, 1
      %p330 = por %p328, %p329
      %p331 = scmp.ne.s32.totalorder %s323, %s326
      %p332 = scmp.eq.s32.totalorder %s30, 0
      %p333 = por %p331, %p332
      %p334 = scmp.ne.s32.totalorder %s323, %s326
      %p335 = scmp.eq.s32.totalorder %s35, 1
      %p336 = por %p334, %p335
      %p337 = scmp.ne.s32.totalorder %s326, %s327
      %p338 = scmp.eq.s32.totalorder %s35, 0
      %p339 = por %p337, %p338
      %p340 = scmp.ne.s32.totalorder %s326, %s327
      %p341 = scmp.eq.s32.totalorder %s36, 1
      %p342 = por %p340, %p341
      %p344 = scmp.ne.s32.totalorder %s327, %s343
      %p345 = scmp.eq.s32.totalorder %s36, 0
      %p346 = por %p344, %p345
      %p347 = scmp.le.s32.totalorder 1, %s30
      %p348 = scmp.lt.s32.totalorder %s30, 3
      %p349 = pnand %p347, %p348
      %p350 = pneg %p349
      // Predicated region
      $region9: #{tpu_custom_call.1} parent=5 // pred_check
        _
      $region10: #{tpu_custom_call.1} parent=5 // pred_check_branch
        %352 = sbr.rel (%p349) target = $region12
      $region11: #{tpu_custom_call.1} parent=5 // pred_region
        %s353 = ssub.s32 %s30, 1
        // Predicated region
        $region13: #{tpu_custom_call.1} parent=11 // pred_check
          %p354 = pneg %p103
        $region14: #{tpu_custom_call.1} parent=11 // pred_check_branch
          %356 = sbr.rel (%p354) target = $region16
        $region15: #{tpu_custom_call.1} parent=11 // pred_region
          %s358 = ssub.s32 128, 128
          %359 = vsyncadd [#allocation6], %s358
          %s361 = sshll.u32 [#allocation5], 4
          %s362 = int_to_ptr.vmem [resolvable:$true] %s361
          %364 = dma.hbm_to_vmem [thread:$0]  %s2, 128, %s362, [#allocation6]
        $region16: #{tpu_custom_call.1} parent=11 // pred_fallthru
          _
        // Predicated region
        $region17: #{tpu_custom_call.1} parent=11 // pred_check
          %p365 = pneg %p124
        $region18: #{tpu_custom_call.1} parent=11 // pred_check_branch
          %367 = sbr.rel (%p365) target = $region20
        $region19: #{tpu_custom_call.1} parent=11 // pred_region
          _
        $region20: #{tpu_custom_call.1} parent=11 // pred_fallthru
          _
        // Predicated region
        $region21: #{tpu_custom_call.1} parent=11 // pred_check
          %p368 = pneg %p145
        $region22: #{tpu_custom_call.1} parent=11 // pred_check_branch
          %370 = sbr.rel (%p368) target = $region24
        $region23: #{tpu_custom_call.1} parent=11 // pred_region
          %s372 = ssub.s32 1024, 1024
          %373 = vsyncadd [#allocation6], %s372
          %s374 = sshll.u32 [#allocation7], 4
          %s375 = int_to_ptr.vmem [resolvable:$true] %s374
          %380 = dma.hbm_to_vmem [thread:$0]  %s4, 1024, %s375, [#allocation6], 64, 64, 4
        $region24: #{tpu_custom_call.1} parent=11 // pred_fallthru
          _
        // Predicated region
        $region25: #{tpu_custom_call.1} parent=11 // pred_check
          %p381 = pneg %p166
        $region26: #{tpu_custom_call.1} parent=11 // pred_check_branch
          %383 = sbr.rel (%p381) target = $region28
        $region27: #{tpu_custom_call.1} parent=11 // pred_region
          %s385 = ssub.s32 6144, 6144
          %386 = vsyncadd [#allocation9], %s385
          %s387 = sshll.u32 [#allocation8], 4
          %s388 = int_to_ptr.vmem [resolvable:$true] %s387
          %393 = dma.hbm_to_vmem [thread:$0]  %s5, 6144, %s388, [#allocation9], 192, 192, 12
        $region28: #{tpu_custom_call.1} parent=11 // pred_fallthru
          _
        // Predicated region
        $region29: #{tpu_custom_call.1} parent=11 // pred_check
          %p394 = pneg %p187
        $region30: #{tpu_custom_call.1} parent=11 // pred_check_branch
          %396 = sbr.rel (%p394) target = $region32
        $region31: #{tpu_custom_call.1} parent=11 // pred_region
          %s398 = ssub.s32 2048, 2048
          %399 = vsyncadd [#allocation9], %s398
          %s400 = sshll.u32 [#allocation10], 4
          %s401 = int_to_ptr.vmem [resolvable:$true] %s400
          %406 = dma.hbm_to_vmem [thread:$0]  %s6, 2048, %s401, [#allocation9], 64, 64, 4
        $region32: #{tpu_custom_call.1} parent=11 // pred_fallthru
          _
        // Predicated region
        $region33: #{tpu_custom_call.1} parent=11 // pred_check
          %p407 = pneg %p208
        $region34: #{tpu_custom_call.1} parent=11 // pred_check_branch
          %409 = sbr.rel (%p407) target = $region36
        $region35: #{tpu_custom_call.1} parent=11 // pred_region
          %s411 = ssub.s32 8192, 8192
          %412 = vsyncadd [#allocation12], %s411
          %s413 = sshll.u32 [#allocation11], 4
          %s414 = int_to_ptr.vmem [resolvable:$true] %s413
          %419 = dma.hbm_to_vmem [thread:$0]  %s7, 8192, %s414, [#allocation12], 256, 256, 16
        $region36: #{tpu_custom_call.1} parent=11 // pred_fallthru
          _
        // Predicated region
        $region37: #{tpu_custom_call.1} parent=11 // pred_check
          %p420 = pneg %p229
        $region38: #{tpu_custom_call.1} parent=11 // pred_check_branch
          %422 = sbr.rel (%p420) target = $region40
        $region39: #{tpu_custom_call.1} parent=11 // pred_region
          %s424 = ssub.s32 8192, 8192
          %425 = vsyncadd [#allocation12], %s424
          %s426 = sshll.u32 [#allocation13], 4
          %s427 = int_to_ptr.vmem [resolvable:$true] %s426
          %432 = dma.hbm_to_vmem [thread:$0]  %s8, 8192, %s427, [#allocation12], 64, 64, 4
        $region40: #{tpu_custom_call.1} parent=11 // pred_fallthru
          _
        // Predicated region
        $region41: #{tpu_custom_call.1} parent=11 // pred_check
          %p433 = pneg %p250
        $region42: #{tpu_custom_call.1} parent=11 // pred_check_branch
          %435 = sbr.rel (%p433) target = $region44
        $region43: #{tpu_custom_call.1} parent=11 // pred_region
          %s437 = ssub.s32 1024, 1024
          %438 = vsyncadd [#allocation15], %s437
          %s439 = sshll.u32 [#allocation14], 4
          %s440 = int_to_ptr.vmem [resolvable:$true] %s439
          %445 = dma.hbm_to_vmem [thread:$0]  %s9, 1024, %s440, [#allocation15], 512, 512, 32
        $region44: #{tpu_custom_call.1} parent=11 // pred_fallthru
          _
        // Predicated region
        $region45: #{tpu_custom_call.1} parent=11 // pred_check
          %p446 = pneg %p271
        $region46: #{tpu_custom_call.1} parent=11 // pred_check_branch
          %448 = sbr.rel (%p446) target = $region48
        $region47: #{tpu_custom_call.1} parent=11 // pred_region
          %s450 = ssub.s32 1024, 1024
          %451 = vsyncadd [#allocation15], %s450
          %s452 = sshll.u32 [#allocation16], 4
          %s453 = int_to_ptr.vmem [resolvable:$true] %s452
          %458 = dma.hbm_to_vmem [thread:$0]  %s10, 1024, %s453, [#allocation15], 64, 64, 4
        $region48: #{tpu_custom_call.1} parent=11 // pred_fallthru
          _
        // Predicated region
        $region49: #{tpu_custom_call.1} parent=11 // pred_check
          %p459 = pneg %p292
        $region50: #{tpu_custom_call.1} parent=11 // pred_check_branch
          %461 = sbr.rel (%p459) target = $region52
        $region51: #{tpu_custom_call.1} parent=11 // pred_region
          %s463 = ssub.s32 1024, 1024
          %464 = vsyncadd [#allocation18], %s463
          %s465 = sshll.u32 [#allocation17], 4
          %s466 = int_to_ptr.vmem [resolvable:$true] %s465
          %471 = dma.hbm_to_vmem [thread:$0]  %s11, 1024, %s466, [#allocation18], 64, 64, 4
        $region52: #{tpu_custom_call.1} parent=11 // pred_fallthru
          _
        // Predicated region
        $region53: #{tpu_custom_call.1} parent=11 // pred_check
          %p472 = pneg %p313
        $region54: #{tpu_custom_call.1} parent=11 // pred_check_branch
          %474 = sbr.rel (%p472) target = $region56
        $region55: #{tpu_custom_call.1} parent=11 // pred_region
          _
        $region56: #{tpu_custom_call.1} parent=11 // pred_fallthru
          _
      $region12: #{tpu_custom_call.1} parent=5 // pred_fallthru
        _
      %p475 = scmp.lt.s32.totalorder %s30, 2
      // Predicated region
      $region57: #{tpu_custom_call.1} parent=5 // pred_check
        %p476 = pneg %p475
      $region58: #{tpu_custom_call.1} parent=5 // pred_check_branch
        %478 = sbr.rel (%p476) target = $region60
      $region59: #{tpu_custom_call.1} parent=5 // pred_region
        // Predicated region
        $region61: #{tpu_custom_call.1} parent=59 // pred_check
          %p479 = pneg %p50
        $region62: #{tpu_custom_call.1} parent=59 // pred_check_branch
          %481 = sbr.rel (%p479) target = $region64
        $region63: #{tpu_custom_call.1} parent=59 // pred_region
          %s482 = sand.u32 %s40, 1
          %s483 = scalar_lea.sflag [#allocation3], %s482
          %s484 = sand.u32 %s40, 1
          %s485 = smul.addr %s484, 8
          %s486 = scalar_lea.vmem [#allocation2], %s485
          %s488 = ssub.s32 128, 128
          %489 = vsyncadd %s483, %s488
          %s490 = smul.addr %s30, 128
          %s491 = scalar_lea.hbm %s0, %s490
          %s493 = sshll.u32 %s486, 4
          %s494 = int_to_ptr.vmem [resolvable:$true] %s493
          %496 = dma.hbm_to_vmem [thread:$0]  %s491, 128, %s494, %s483
        $region64: #{tpu_custom_call.1} parent=59 // pred_fallthru
          _
        // Predicated region
        $region65: #{tpu_custom_call.1} parent=59 // pred_check
          %p497 = pneg %p76
        $region66: #{tpu_custom_call.1} parent=59 // pred_check_branch
          %499 = sbr.rel (%p497) target = $region68
        $region67: #{tpu_custom_call.1} parent=59 // pred_region
          %p500 = scmp.lt.s32.totalorder %s30, 1
          %s501 = scalar_select %p500, %s30, 1
          %s502 = scalar_lea.vmem %s1, %s501
        $region68: #{tpu_custom_call.1} parent=59 // pred_fallthru
          _
      $region60: #{tpu_custom_call.1} parent=5 // pred_fallthru
        _
      %p503 = scmp.le.s32.totalorder 1, %s30
      %p504 = scmp.lt.s32.totalorder %s30, 3
      %p505 = pnand %p503, %p504
      %p506 = pneg %p505
      // Predicated region
      $region69: #{tpu_custom_call.1} parent=5 // pred_check
        _
      $region70: #{tpu_custom_call.1} parent=5 // pred_check_branch
        %508 = sbr.rel (%p505) target = $region72
      $region71: #{tpu_custom_call.1} parent=5 // pred_region
        %s509 = ssub.s32 %s30, 1
        %s510 = sand.u32 %s43, 1
        %s511 = scalar_lea.sflag [#allocation3], %s510
        %s512 = sand.u32 %s43, 1
        %s513 = smul.addr %s512, 8
        %s514 = scalar_lea.vmem [#allocation2], %s513
        // Predicated region
        $region73: #{tpu_custom_call.1} parent=71 // pred_check
          %p515 = pneg %p56
        $region74: #{tpu_custom_call.1} parent=71 // pred_check_branch
          %517 = sbr.rel (%p515) target = $region76
        $region75: #{tpu_custom_call.1} parent=71 // pred_region
          %518 = dma.done %s511, 128
        $region76: #{tpu_custom_call.1} parent=71 // pred_fallthru
          _
        // Predicated region
        $region77: #{tpu_custom_call.1} parent=71 // pred_check
          %p519 = pneg %p103
        $region78: #{tpu_custom_call.1} parent=71 // pred_check_branch
          %521 = sbr.rel (%p519) target = $region80
        $region79: #{tpu_custom_call.1} parent=71 // pred_region
          %522 = dma.done [#allocation6], 128
        $region80: #{tpu_custom_call.1} parent=71 // pred_fallthru
          _
        // Predicated region
        $region81: #{tpu_custom_call.1} parent=71 // pred_check
          %p523 = pneg %p145
        $region82: #{tpu_custom_call.1} parent=71 // pred_check_branch
          %525 = sbr.rel (%p523) target = $region84
        $region83: #{tpu_custom_call.1} parent=71 // pred_region
          %526 = dma.done [#allocation6], 1024
        $region84: #{tpu_custom_call.1} parent=71 // pred_fallthru
          _
        // Predicated region
        $region85: #{tpu_custom_call.1} parent=71 // pred_check
          %p527 = pneg %p166
        $region86: #{tpu_custom_call.1} parent=71 // pred_check_branch
          %529 = sbr.rel (%p527) target = $region88
        $region87: #{tpu_custom_call.1} parent=71 // pred_region
          %530 = dma.done [#allocation9], 6144
        $region88: #{tpu_custom_call.1} parent=71 // pred_fallthru
          _
        // Predicated region
        $region89: #{tpu_custom_call.1} parent=71 // pred_check
          %p531 = pneg %p187
        $region90: #{tpu_custom_call.1} parent=71 // pred_check_branch
          %533 = sbr.rel (%p531) target = $region92
        $region91: #{tpu_custom_call.1} parent=71 // pred_region
          %534 = dma.done [#allocation9], 2048
        $region92: #{tpu_custom_call.1} parent=71 // pred_fallthru
          _
        // Predicated region
        $region93: #{tpu_custom_call.1} parent=71 // pred_check
          %p535 = pneg %p208
        $region94: #{tpu_custom_call.1} parent=71 // pred_check_branch
          %537 = sbr.rel (%p535) target = $region96
        $region95: #{tpu_custom_call.1} parent=71 // pred_region
          %538 = dma.done [#allocation12], 8192
        $region96: #{tpu_custom_call.1} parent=71 // pred_fallthru
          _
        // Predicated region
        $region97: #{tpu_custom_call.1} parent=71 // pred_check
          %p539 = pneg %p229
        $region98: #{tpu_custom_call.1} parent=71 // pred_check_branch
          %541 = sbr.rel (%p539) target = $region100
        $region99: #{tpu_custom_call.1} parent=71 // pred_region
          %542 = dma.done [#allocation12], 8192
        $region100: #{tpu_custom_call.1} parent=71 // pred_fallthru
          _
        // Predicated region
        $region101: #{tpu_custom_call.1} parent=71 // pred_check
          %p543 = pneg %p250
        $region102: #{tpu_custom_call.1} parent=71 // pred_check_branch
          %545 = sbr.rel (%p543) target = $region104
        $region103: #{tpu_custom_call.1} parent=71 // pred_region
          %546 = dma.done [#allocation15], 1024
        $region104: #{tpu_custom_call.1} parent=71 // pred_fallthru
          _
        // Predicated region
        $region105: #{tpu_custom_call.1} parent=71 // pred_check
          %p547 = pneg %p271
        $region106: #{tpu_custom_call.1} parent=71 // pred_check_branch
          %549 = sbr.rel (%p547) target = $region108
        $region107: #{tpu_custom_call.1} parent=71 // pred_region
          %550 = dma.done [#allocation15], 1024
        $region108: #{tpu_custom_call.1} parent=71 // pred_fallthru
          _
        // Predicated region
        $region109: #{tpu_custom_call.1} parent=71 // pred_check
          %p551 = pneg %p292
        $region110: #{tpu_custom_call.1} parent=71 // pred_check_branch
          %553 = sbr.rel (%p551) target = $region112
        $region111: #{tpu_custom_call.1} parent=71 // pred_region
          %554 = dma.done [#allocation18], 1024
        $region112: #{tpu_custom_call.1} parent=71 // pred_fallthru
          _
        %s555 = sand.u32 %s43, 1
        %s556 = scalar_lea.sflag [#allocation3], %s555
        %s557 = sand.u32 %s43, 1
        %s558 = smul.addr %s557, 8
        %s559 = scalar_lea.vmem [#allocation2], %s558
        %p560 = pneg %p56
        %p561 = pneg %p53
        %p562 = scmp.lt.s32.totalorder %s35, 1
        %s563 = scalar_select %p562, %s35, 1
        %s564 = scalar_lea.vmem %s1, %s563
        %p565 = pneg %p82
        %p566 = pneg %p79
        %p567 = pneg %p103
        %p568 = pneg %p100
        %p569 = pneg %p124
        %p570 = pneg %p121
        %p571 = pneg %p145
        %p572 = pneg %p142
        %p573 = pneg %p166
        %p574 = pneg %p163
        %p575 = pneg %p187
        %p576 = pneg %p184
        %p577 = pneg %p208
        %p578 = pneg %p205
        %p579 = pneg %p229
        %p580 = pneg %p226
        %p581 = pneg %p250
        %p582 = pneg %p247
        %p583 = pneg %p271
        %p584 = pneg %p268
        %p585 = pneg %p292
        %p586 = pneg %p289
        %p587 = pneg %p313
        %p588 = pneg %p310
        %p589 = pneg %p339
        %p590 = pneg %p336
        %s591 = sand.u32 %s326, 1
        %s592 = scalar_lea.sflag [#allocation4], %s591
        %s593 = sand.u32 %s326, 1
        %s594 = smul.addr %s593, 8
        %s595 = scalar_lea.vmem [#allocation19], %s594
        %p596 = scmp.lt.s32.totalorder %s35, 1
        %s597 = scalar_select %p596, %s35, 1
        %s598 = scalar_lea.vmem %s1, %s597
        %v600 = vld [vmem:[%s514] sm:$0xff]
        %v601 = vld [vmem:[%s598] sm:$0x1]
        %v602 = vld [vmem:[#allocation5] sm:$0xff]
        %v603 = vld [vmem:[%s3] sm:$0xff]
        %v604 = vld [vmem:[#allocation7] sm:$0xf]
        %v605 = vld [vmem:[#allocation7 + $0x4] sm:$0xf]
        %v606 = vld [vmem:[#allocation7 + $0x8] sm:$0xf]
        %v607 = vld [vmem:[#allocation7 + $0xc] sm:$0xf]
        %v608 = vld [vmem:[#allocation7 + $0x10] sm:$0xf]
        %v609 = vld [vmem:[#allocation7 + $0x14] sm:$0xf]
        %v610 = vld [vmem:[#allocation7 + $0x18] sm:$0xf]
        %v611 = vld [vmem:[#allocation7 + $0x1c] sm:$0xf]
        %v612 = vld [vmem:[#allocation7 + $0x20] sm:$0xf]
        %v613 = vld [vmem:[#allocation7 + $0x24] sm:$0xf]
        %v614 = vld [vmem:[#allocation7 + $0x28] sm:$0xf]
        %v615 = vld [vmem:[#allocation7 + $0x2c] sm:$0xf]
        %v616 = vld [vmem:[#allocation7 + $0x30] sm:$0xf]
        %v617 = vld [vmem:[#allocation7 + $0x34] sm:$0xf]
        %v618 = vld [vmem:[#allocation7 + $0x38] sm:$0xf]
        %v619 = vld [vmem:[#allocation7 + $0x3c] sm:$0xf]
        %v620 = vld [vmem:[#allocation8] sm:$0xff]
        %v621 = vld [vmem:[#allocation8 + $0x8] sm:$0xf]
        %v622 = vld [vmem:[#allocation8 + $0xc] sm:$0xff]
        %v623 = vld [vmem:[#allocation8 + $0x14] sm:$0xf]
        %v624 = vld [vmem:[#allocation8 + $0x18] sm:$0xff]
        %v625 = vld [vmem:[#allocation8 + $0x20] sm:$0xf]
        %v626 = vld [vmem:[#allocation8 + $0x24] sm:$0xff]
        %v627 = vld [vmem:[#allocation8 + $0x2c] sm:$0xf]
        %v628 = vld [vmem:[#allocation8 + $0x30] sm:$0xff]
        %v629 = vld [vmem:[#allocation8 + $0x38] sm:$0xf]
        %v630 = vld [vmem:[#allocation8 + $0x3c] sm:$0xff]
        %v631 = vld [vmem:[#allocation8 + $0x44] sm:$0xf]
        %v632 = vld [vmem:[#allocation8 + $0x48] sm:$0xff]
        %v633 = vld [vmem:[#allocation8 + $0x50] sm:$0xf]
        %v634 = vld [vmem:[#allocation8 + $0x54] sm:$0xff]
        %v635 = vld [vmem:[#allocation8 + $0x5c] sm:$0xf]
        %v636 = vld [vmem:[#allocation8 + $0x60] sm:$0xff]
        %v637 = vld [vmem:[#allocation8 + $0x68] sm:$0xf]
        %v638 = vld [vmem:[#allocation8 + $0x6c] sm:$0xff]
        %v639 = vld [vmem:[#allocation8 + $0x74] sm:$0xf]
        %v640 = vld [vmem:[#allocation8 + $0x78] sm:$0xff]
        %v641 = vld [vmem:[#allocation8 + $0x80] sm:$0xf]
        %v642 = vld [vmem:[#allocation8 + $0x84] sm:$0xff]
        %v643 = vld [vmem:[#allocation8 + $0x8c] sm:$0xf]
        %v644 = vld [vmem:[#allocation8 + $0x90] sm:$0xff]
        %v645 = vld [vmem:[#allocation8 + $0x98] sm:$0xf]
        %v646 = vld [vmem:[#allocation8 + $0x9c] sm:$0xff]
        %v647 = vld [vmem:[#allocation8 + $0xa4] sm:$0xf]
        %v648 = vld [vmem:[#allocation8 + $0xa8] sm:$0xff]
        %v649 = vld [vmem:[#allocation8 + $0xb0] sm:$0xf]
        %v650 = vld [vmem:[#allocation8 + $0xb4] sm:$0xff]
        %v651 = vld [vmem:[#allocation8 + $0xbc] sm:$0xf]
        %v652 = vld [vmem:[#allocation10] sm:$0xf]
        %v653 = vld [vmem:[#allocation10 + $0x4] sm:$0xf]
        %v654 = vld [vmem:[#allocation10 + $0x8] sm:$0xf]
        %v655 = vld [vmem:[#allocation10 + $0xc] sm:$0xf]
        %v656 = vld [vmem:[#allocation10 + $0x10] sm:$0xf]
        %v657 = vld [vmem:[#allocation10 + $0x14] sm:$0xf]
        %v658 = vld [vmem:[#allocation10 + $0x18] sm:$0xf]
        %v659 = vld [vmem:[#allocation10 + $0x1c] sm:$0xf]
        %v660 = vld [vmem:[#allocation10 + $0x20] sm:$0xf]
        %v661 = vld [vmem:[#allocation10 + $0x24] sm:$0xf]
        %v662 = vld [vmem:[#allocation10 + $0x28] sm:$0xf]
        %v663 = vld [vmem:[#allocation10 + $0x2c] sm:$0xf]
        %v664 = vld [vmem:[#allocation10 + $0x30] sm:$0xf]
        %v665 = vld [vmem:[#allocation10 + $0x34] sm:$0xf]
        %v666 = vld [vmem:[#allocation10 + $0x38] sm:$0xf]
        %v667 = vld [vmem:[#allocation10 + $0x3c] sm:$0xf]
        %v668 = vld [vmem:[#allocation11] sm:$0xff]
        %v669 = vld [vmem:[#allocation11 + $0x8] sm:$0xff]
        %v670 = vld [vmem:[#allocation11 + $0x10] sm:$0xff]
        %v671 = vld [vmem:[#allocation11 + $0x18] sm:$0xff]
        %v672 = vld [vmem:[#allocation11 + $0x20] sm:$0xff]
        %v673 = vld [vmem:[#allocation11 + $0x28] sm:$0xff]
        %v674 = vld [vmem:[#allocation11 + $0x30] sm:$0xff]
        %v675 = vld [vmem:[#allocation11 + $0x38] sm:$0xff]
        %v676 = vld [vmem:[#allocation11 + $0x40] sm:$0xff]
        %v677 = vld [vmem:[#allocation11 + $0x48] sm:$0xff]
        %v678 = vld [vmem:[#allocation11 + $0x50] sm:$0xff]
        %v679 = vld [vmem:[#allocation11 + $0x58] sm:$0xff]
        %v680 = vld [vmem:[#allocation11 + $0x60] sm:$0xff]
        %v681 = vld [vmem:[#allocation11 + $0x68] sm:$0xff]
        %v682 = vld [vmem:[#allocation11 + $0x70] sm:$0xff]
        %v683 = vld [vmem:[#allocation11 + $0x78] sm:$0xff]
        %v684 = vld [vmem:[#allocation11 + $0x80] sm:$0xff]
        %v685 = vld [vmem:[#allocation11 + $0x88] sm:$0xff]
        %v686 = vld [vmem:[#allocation11 + $0x90] sm:$0xff]
        %v687 = vld [vmem:[#allocation11 + $0x98] sm:$0xff]
        %v688 = vld [vmem:[#allocation11 + $0xa0] sm:$0xff]
        %v689 = vld [vmem:[#allocation11 + $0xa8] sm:$0xff]
        %v690 = vld [vmem:[#allocation11 + $0xb0] sm:$0xff]
        %v691 = vld [vmem:[#allocation11 + $0xb8] sm:$0xff]
        %v692 = vld [vmem:[#allocation11 + $0xc0] sm:$0xff]
        %v693 = vld [vmem:[#allocation11 + $0xc8] sm:$0xff]
        %v694 = vld [vmem:[#allocation11 + $0xd0] sm:$0xff]
        %v695 = vld [vmem:[#allocation11 + $0xd8] sm:$0xff]
        %v696 = vld [vmem:[#allocation11 + $0xe0] sm:$0xff]
        %v697 = vld [vmem:[#allocation11 + $0xe8] sm:$0xff]
        %v698 = vld [vmem:[#allocation11 + $0xf0] sm:$0xff]
        %v699 = vld [vmem:[#allocation11 + $0xf8] sm:$0xff]
        %v700 = vld [vmem:[#allocation13] sm:$0xf]
        %v701 = vld [vmem:[#allocation13 + $0x4] sm:$0xf]
        %v702 = vld [vmem:[#allocation13 + $0x8] sm:$0xf]
        %v703 = vld [vmem:[#allocation13 + $0xc] sm:$0xf]
        %v704 = vld [vmem:[#allocation13 + $0x10] sm:$0xf]
        %v705 = vld [vmem:[#allocation13 + $0x14] sm:$0xf]
        %v706 = vld [vmem:[#allocation13 + $0x18] sm:$0xf]
        %v707 = vld [vmem:[#allocation13 + $0x1c] sm:$0xf]
        %v708 = vld [vmem:[#allocation13 + $0x20] sm:$0xf]
        %v709 = vld [vmem:[#allocation13 + $0x24] sm:$0xf]
        %v710 = vld [vmem:[#allocation13 + $0x28] sm:$0xf]
        %v711 = vld [vmem:[#allocation13 + $0x2c] sm:$0xf]
        %v712 = vld [vmem:[#allocation13 + $0x30] sm:$0xf]
        %v713 = vld [vmem:[#allocation13 + $0x34] sm:$0xf]
        %v714 = vld [vmem:[#allocation13 + $0x38] sm:$0xf]
        %v715 = vld [vmem:[#allocation13 + $0x3c] sm:$0xf]
        %v716 = vld [vmem:[#allocation13 + $0x40] sm:$0xf]
        %v717 = vld [vmem:[#allocation13 + $0x44] sm:$0xf]
        %v718 = vld [vmem:[#allocation13 + $0x48] sm:$0xf]
        %v719 = vld [vmem:[#allocation13 + $0x4c] sm:$0xf]
        %v720 = vld [vmem:[#allocation13 + $0x50] sm:$0xf]
        %v721 = vld [vmem:[#allocation13 + $0x54] sm:$0xf]
        %v722 = vld [vmem:[#allocation13 + $0x58] sm:$0xf]
        %v723 = vld [vmem:[#allocation13 + $0x5c] sm:$0xf]
        %v724 = vld [vmem:[#allocation13 + $0x60] sm:$0xf]
        %v725 = vld [vmem:[#allocation13 + $0x64] sm:$0xf]
        %v726 = vld [vmem:[#allocation13 + $0x68] sm:$0xf]
        %v727 = vld [vmem:[#allocation13 + $0x6c] sm:$0xf]
        %v728 = vld [vmem:[#allocation13 + $0x70] sm:$0xf]
        %v729 = vld [vmem:[#allocation13 + $0x74] sm:$0xf]
        %v730 = vld [vmem:[#allocation13 + $0x78] sm:$0xf]
        %v731 = vld [vmem:[#allocation13 + $0x7c] sm:$0xf]
        %v732 = vld [vmem:[#allocation13 + $0x80] sm:$0xf]
        %v733 = vld [vmem:[#allocation13 + $0x84] sm:$0xf]
        %v734 = vld [vmem:[#allocation13 + $0x88] sm:$0xf]
        %v735 = vld [vmem:[#allocation13 + $0x8c] sm:$0xf]
        %v736 = vld [vmem:[#allocation13 + $0x90] sm:$0xf]
        %v737 = vld [vmem:[#allocation13 + $0x94] sm:$0xf]
        %v738 = vld [vmem:[#allocation13 + $0x98] sm:$0xf]
        %v739 = vld [vmem:[#allocation13 + $0x9c] sm:$0xf]
        %v740 = vld [vmem:[#allocation13 + $0xa0] sm:$0xf]
        %v741 = vld [vmem:[#allocation13 + $0xa4] sm:$0xf]
        %v742 = vld [vmem:[#allocation13 + $0xa8] sm:$0xf]
        %v743 = vld [vmem:[#allocation13 + $0xac] sm:$0xf]
        %v744 = vld [vmem:[#allocation13 + $0xb0] sm:$0xf]
        %v745 = vld [vmem:[#allocation13 + $0xb4] sm:$0xf]
        %v746 = vld [vmem:[#allocation13 + $0xb8] sm:$0xf]
        %v747 = vld [vmem:[#allocation13 + $0xbc] sm:$0xf]
        %v748 = vld [vmem:[#allocation13 + $0xc0] sm:$0xf]
        %v749 = vld [vmem:[#allocation13 + $0xc4] sm:$0xf]
        %v750 = vld [vmem:[#allocation13 + $0xc8] sm:$0xf]
        %v751 = vld [vmem:[#allocation13 + $0xcc] sm:$0xf]
        %v752 = vld [vmem:[#allocation13 + $0xd0] sm:$0xf]
        %v753 = vld [vmem:[#allocation13 + $0xd4] sm:$0xf]
        %v754 = vld [vmem:[#allocation13 + $0xd8] sm:$0xf]
        %v755 = vld [vmem:[#allocation13 + $0xdc] sm:$0xf]
        %v756 = vld [vmem:[#allocation13 + $0xe0] sm:$0xf]
        %v757 = vld [vmem:[#allocation13 + $0xe4] sm:$0xf]
        %v758 = vld [vmem:[#allocation13 + $0xe8] sm:$0xf]
        %v759 = vld [vmem:[#allocation13 + $0xec] sm:$0xf]
        %v760 = vld [vmem:[#allocation13 + $0xf0] sm:$0xf]
        %v761 = vld [vmem:[#allocation13 + $0xf4] sm:$0xf]
        %v762 = vld [vmem:[#allocation13 + $0xf8] sm:$0xf]
        %v763 = vld [vmem:[#allocation13 + $0xfc] sm:$0xf]
        %v764 = vld [vmem:[#allocation14] sm:$0xff]
        %v765 = vld [vmem:[#allocation14 + $0x8] sm:$0xff]
        %v766 = vld [vmem:[#allocation14 + $0x10] sm:$0xff]
        %v767 = vld [vmem:[#allocation14 + $0x18] sm:$0xff]
        %768 = vadd.xlane.f32.xlu0 %v600
        %v769 = vpop.xlane.xlu0 %768
        %v770 = vrcp.pop 128.0
        %v771 = vmul.f32 %v769, %v770
        %v772 = vsub.f32 %v600, %v771
        %v773 = vmul.f32 %v772, %v772
        %774 = vadd.xlane.f32.xlu0 %v773
        %v775 = vpop.xlane.xlu0 %774
        %v776 = vmul.f32 %v775, %v770
        %v777 = vadd.f32 %v776, 1e-05
        %v778 = vrsqrt.pop %v777
        %v779 = vmul.f32 %v772, %v778
        %v780 = vlaneseq
        %v781 = vshrl.u32 %v780, 7
        %v782 = vsub.s32 0, %v781
        %v783 = vrot.slane %v764, %v782
        %v784 = vmul.f32 %v779, %v783
        %v785 = vlaneseq
        %v786 = vshrl.u32 %v785, 7
        %v787 = vsub.s32 1, %v786
        %v788 = vrot.slane %v764, %v787
        %v789 = vadd.f32 %v784, %v788
        %v790 = vpack.c.bf16 %v789, %v789
        %v791 = vlaneseq
        %v792 = vshrl.u32 %v791, 7
        %v793 = vsub.s32 7, %v792
        %v794 = vrot.slane %v764, %v793
        %v795 = vlaneseq
        %v796 = vshrl.u32 %v795, 7
        %v797 = vsub.s32 7, %v796
        %v798 = vrot.slane %v765, %v797
        %v799 = vlaneseq
        %v800 = vshrl.u32 %v799, 7
        %v801 = vsub.s32 7, %v800
        %v802 = vrot.slane %v766, %v801
        %v835 = vunpack.c.l.b16 %v620
        %v836 = vunpack.c.h.b16 %v620
        %v837 = vunpack.c.l.b16 %v621
        %v838 = vunpack.c.l.b16 %v622
        %v839 = vunpack.c.h.b16 %v622
        %v840 = vunpack.c.l.b16 %v623
        %v841 = vunpack.c.l.b16 %v624
        %v842 = vunpack.c.h.b16 %v624
        %v843 = vunpack.c.l.b16 %v625
        %v844 = vunpack.c.l.b16 %v626
        %v845 = vunpack.c.h.b16 %v626
        %v846 = vunpack.c.l.b16 %v627
        %v847 = vunpack.c.l.b16 %v628
        %v848 = vunpack.c.h.b16 %v628
        %v849 = vunpack.c.l.b16 %v629
        %v850 = vunpack.c.l.b16 %v630
        %v851 = vunpack.c.h.b16 %v630
        %v852 = vunpack.c.l.b16 %v631
        %v853 = vunpack.c.l.b16 %v632
        %v854 = vunpack.c.h.b16 %v632
        %v855 = vunpack.c.l.b16 %v633
        %v856 = vunpack.c.l.b16 %v634
        %v857 = vunpack.c.h.b16 %v634
        %v858 = vunpack.c.l.b16 %v635
        %v859 = vunpack.c.l.b16 %v636
        %v860 = vunpack.c.h.b16 %v636
        %v861 = vunpack.c.l.b16 %v637
        %v862 = vunpack.c.l.b16 %v638
        %v863 = vunpack.c.h.b16 %v638
        %v864 = vunpack.c.l.b16 %v639
        %v865 = vunpack.c.l.b16 %v640
        %v866 = vunpack.c.h.b16 %v640
        %v867 = vunpack.c.l.b16 %v641
        %v868 = vunpack.c.l.b16 %v642
        %v869 = vunpack.c.h.b16 %v642
        %v870 = vunpack.c.l.b16 %v643
        %v871 = vunpack.c.l.b16 %v644
        %v872 = vunpack.c.h.b16 %v644
        %v873 = vunpack.c.l.b16 %v645
        %v874 = vunpack.c.l.b16 %v646
        %v875 = vunpack.c.h.b16 %v646
        %v876 = vunpack.c.l.b16 %v647
        %v877 = vunpack.c.l.b16 %v648
        %v878 = vunpack.c.h.b16 %v648
        %v879 = vunpack.c.l.b16 %v649
        %v880 = vunpack.c.l.b16 %v650
        %v881 = vunpack.c.h.b16 %v650
        %v882 = vunpack.c.l.b16 %v651
        %v883 = vpack.c.b16 %v838, %v835
        %v884 = vpack.c.b16 %v839, %v836
        %v885 = vpack.c.b16 %v840, %v837
        %v886 = vpack.c.b16 %v844, %v841
        %v887 = vpack.c.b16 %v845, %v842
        %v888 = vpack.c.b16 %v846, %v843
        %v889 = vpack.c.b16 %v850, %v847
        %v890 = vpack.c.b16 %v851, %v848
        %v891 = vpack.c.b16 %v852, %v849
        %v892 = vpack.c.b16 %v856, %v853
        %v893 = vpack.c.b16 %v857, %v854
        %v894 = vpack.c.b16 %v858, %v855
        %v895 = vpack.c.b16 %v862, %v859
        %v896 = vpack.c.b16 %v863, %v860
        %v897 = vpack.c.b16 %v864, %v861
        %v898 = vpack.c.b16 %v868, %v865
        %v899 = vpack.c.b16 %v869, %v866
        %v900 = vpack.c.b16 %v870, %v867
        %v901 = vpack.c.b16 %v874, %v871
        %v902 = vpack.c.b16 %v875, %v872
        %v903 = vpack.c.b16 %v876, %v873
        %v904 = vpack.c.b16 %v880, %v877
        %v905 = vpack.c.b16 %v881, %v878
        %v906 = vpack.c.b16 %v882, %v879
        %931 = vmatprep.subr.bf16.mxu0 %v884
        %932 = vmatpush1.bf16.msra.mxu0 %v883
        %933 = vmatprep.subr.bf16.mxu0 %v887
        %934 = vmatpush1.bf16.msra.mxu0 %v886
        %935 = vmatprep.subr.bf16.mxu0 %v890
        %936 = vmatpush1.bf16.msra.mxu0 %v889
        %937 = vmatprep.subr.bf16.mxu0 %v893
        %938 = vmatpush1.bf16.msra.mxu0 %v892
        %939 = vmatprep.subr.bf16.mxu0 %v896
        %940 = vmatpush1.bf16.msra.mxu0 %v895
        %941 = vmatprep.subr.bf16.mxu0 %v899
        %942 = vmatpush1.bf16.msra.mxu0 %v898
        %943 = vmatprep.subr.bf16.mxu0 %v902
        %944 = vmatpush1.bf16.msra.mxu0 %v901
        %945 = vmatprep.subr.bf16.mxu0 %v905
        %946 = vmatpush1.bf16.msra.mxu0 %v904
        %947 = vmatprep.subr.bf16.mxu0 0
        %948 = vmatpush1.bf16.msra.mxu0 0
        %949 = vmatprep.subr.bf16.mxu0 0
        %950 = vmatpush1.bf16.msra.mxu0 0
        %951 = vmatprep.subr.bf16.mxu0 0
        %952 = vmatpush1.bf16.msra.mxu0 0
        %953 = vmatprep.subr.bf16.mxu0 0
        %954 = vmatpush1.bf16.msra.mxu0 0
        %955 = vmatprep.subr.bf16.mxu0 0
        %956 = vmatpush1.bf16.msra.mxu0 0
        %957 = vmatprep.subr.bf16.mxu0 0
        %958 = vmatpush1.bf16.msra.mxu0 0
        %959 = vmatprep.subr.bf16.mxu0 0
        %960 = vmatpush1.bf16.msra.mxu0 0
        %961 = vmatprep.subr.bf16.mxu0 0
        %962 = vmatpush1.bf16.msra.mxu0 0
        %963 = vmatprep.mubr.bf16.mxu0 0
        %964 = vmatmul.mubr.bf16.gmra.mrb[0].mxu0 %v790
        %v965 = vpop.f32.mrb[0].mxu0
        %v966 = vadd.f32 %v794, %v965
        %v967 = vpop.f32.mrb[0].mxu0
        %v968 = vadd.f32 %v798, %v967
        %v969 = vpop.f32.mrb[0].mxu0
        %v970 = vpop.f32.mrb[0].mxu0
        %971 = vdwg.mxu0
        %972 = vmatprep.subr.bf16.mxu0 0
        %973 = vmatpush1.bf16.msra.mxu0 %v885
        %974 = vmatprep.subr.bf16.mxu0 0
        %975 = vmatpush1.bf16.msra.mxu0 %v888
        %976 = vmatprep.subr.bf16.mxu0 0
        %977 = vmatpush1.bf16.msra.mxu0 %v891
        %978 = vmatprep.subr.bf16.mxu0 0
        %979 = vmatpush1.bf16.msra.mxu0 %v894
        %980 = vmatprep.subr.bf16.mxu0 0
        %981 = vmatpush1.bf16.msra.mxu0 %v897
        %982 = vmatprep.subr.bf16.mxu0 0
        %983 = vmatpush1.bf16.msra.mxu0 %v900
        %984 = vmatprep.subr.bf16.mxu0 0
        %985 = vmatpush1.bf16.msra.mxu0 %v903
        %986 = vmatprep.subr.bf16.mxu0 0
        %987 = vmatpush1.bf16.msra.mxu0 %v906
        %988 = vmatprep.subr.bf16.mxu0 0
        %989 = vmatpush1.bf16.msra.mxu0 0
        %990 = vmatprep.subr.bf16.mxu0 0
        %991 = vmatpush1.bf16.msra.mxu0 0
        %992 = vmatprep.subr.bf16.mxu0 0
        %993 = vmatpush1.bf16.msra.mxu0 0
        %994 = vmatprep.subr.bf16.mxu0 0
        %995 = vmatpush1.bf16.msra.mxu0 0
        %996 = vmatprep.subr.bf16.mxu0 0
        %997 = vmatpush1.bf16.msra.mxu0 0
        %998 = vmatprep.subr.bf16.mxu0 0
        %999 = vmatpush1.bf16.msra.mxu0 0
        %1000 = vmatprep.subr.bf16.mxu0 0
        %1001 = vmatpush1.bf16.msra.mxu0 0
        %1002 = vmatprep.subr.bf16.mxu0 0
        %1003 = vmatpush1.bf16.msra.mxu0 0
        %1004 = vmatprep.mubr.bf16.mxu0 0
        %1005 = vmatmul.mubr.bf16.gmra.mrb[0].mxu0 %v790
        %v1006 = vpop.f32.mrb[0].mxu0
        %v1007 = vadd.f32 %v802, %v1006
        %v1008 = vpop.f32.mrb[0].mxu0
        %v1009 = vpop.f32.mrb[0].mxu0
        %v1010 = vpop.f32.mrb[0].mxu0
        %1011 = vdwg.mxu0
        %v1012 = vpack.c.bf16 %v966, %v966
        %v1029 = vunpack.c.l.b16 %v604
        %v1030 = vunpack.c.l.b16 %v605
        %v1031 = vunpack.c.l.b16 %v606
        %v1032 = vunpack.c.l.b16 %v607
        %v1033 = vunpack.c.l.b16 %v608
        %v1034 = vunpack.c.l.b16 %v609
        %v1035 = vunpack.c.l.b16 %v610
        %v1036 = vunpack.c.l.b16 %v611
        %v1037 = vunpack.c.l.b16 %v612
        %v1038 = vunpack.c.l.b16 %v613
        %v1039 = vunpack.c.l.b16 %v614
        %v1040 = vunpack.c.l.b16 %v615
        %v1041 = vunpack.c.l.b16 %v616
        %v1042 = vunpack.c.l.b16 %v617
        %v1043 = vunpack.c.l.b16 %v618
        %v1044 = vunpack.c.l.b16 %v619
        %v1045 = vpack.c.b16 %v1030, %v1029
        %v1046 = vpack.c.b16 %v1032, %v1031
        %v1047 = vpack.c.b16 %v1034, %v1033
        %v1048 = vpack.c.b16 %v1036, %v1035
        %v1049 = vpack.c.b16 %v1038, %v1037
        %v1050 = vpack.c.b16 %v1040, %v1039
        %v1051 = vpack.c.b16 %v1042, %v1041
        %v1052 = vpack.c.b16 %v1044, %v1043
        %1061 = vmatprep.subr.bf16.mxu0 0
        %1062 = vmatpush1.bf16.msra.mxu0 %v1045
        %1063 = vmatprep.subr.bf16.mxu0 0
        %1064 = vmatpush1.bf16.msra.mxu0 %v1046
        %1065 = vmatprep.subr.bf16.mxu0 0
        %1066 = vmatpush1.bf16.msra.mxu0 %v1047
        %1067 = vmatprep.subr.bf16.mxu0 0
        %1068 = vmatpush1.bf16.msra.mxu0 %v1048
        %1069 = vmatprep.subr.bf16.mxu0 0
        %1070 = vmatpush1.bf16.msra.mxu0 %v1049
        %1071 = vmatprep.subr.bf16.mxu0 0
        %1072 = vmatpush1.bf16.msra.mxu0 %v1050
        %1073 = vmatprep.subr.bf16.mxu0 0
        %1074 = vmatpush1.bf16.msra.mxu0 %v1051
        %1075 = vmatprep.subr.bf16.mxu0 0
        %1076 = vmatpush1.bf16.msra.mxu0 %v1052
        %1077 = vmatprep.subr.bf16.mxu0 0
        %1078 = vmatpush1.bf16.msra.mxu0 0
        %1079 = vmatprep.subr.bf16.mxu0 0
        %1080 = vmatpush1.bf16.msra.mxu0 0
        %1081 = vmatprep.subr.bf16.mxu0 0
        %1082 = vmatpush1.bf16.msra.mxu0 0
        %1083 = vmatprep.subr.bf16.mxu0 0
        %1084 = vmatpush1.bf16.msra.mxu0 0
        %1085 = vmatprep.subr.bf16.mxu0 0
        %1086 = vmatpush1.bf16.msra.mxu0 0
        %1087 = vmatprep.subr.bf16.mxu0 0
        %1088 = vmatpush1.bf16.msra.mxu0 0
        %1089 = vmatprep.subr.bf16.mxu0 0
        %1090 = vmatpush1.bf16.msra.mxu0 0
        %1091 = vmatprep.subr.bf16.mxu0 0
        %1092 = vmatpush1.bf16.msra.mxu0 0
        %1093 = vmatprep.mubr.bf16.mxu0 0
        %1094 = vmatmul.mubr.bf16.gmra.mrb[0].mxu0 %v1012
        %v1095 = vpop.f32.mrb[0].mxu0
        %v1096 = vadd.f32 0.0, %v1095
        %v1097 = vpop.f32.mrb[0].mxu0
        %v1098 = vpop.f32.mrb[0].mxu0
        %v1099 = vpop.f32.mrb[0].mxu0
        %1100 = vdwg.mxu0
        %v1101 = vpack.c.bf16 %v968, %v968
        %1102 = vmatprep.subr.bf16.mxu0 0
        %1103 = vmatpush1.bf16.msra.mxu0 %v1045
        %1104 = vmatprep.subr.bf16.mxu0 0
        %1105 = vmatpush1.bf16.msra.mxu0 %v1046
        %1106 = vmatprep.subr.bf16.mxu0 0
        %1107 = vmatpush1.bf16.msra.mxu0 %v1047
        %1108 = vmatprep.subr.bf16.mxu0 0
        %1109 = vmatpush1.bf16.msra.mxu0 %v1048
        %1110 = vmatprep.subr.bf16.mxu0 0
        %1111 = vmatpush1.bf16.msra.mxu0 %v1049
        %1112 = vmatprep.subr.bf16.mxu0 0
        %1113 = vmatpush1.bf16.msra.mxu0 %v1050
        %1114 = vmatprep.subr.bf16.mxu0 0
        %1115 = vmatpush1.bf16.msra.mxu0 %v1051
        %1116 = vmatprep.subr.bf16.mxu0 0
        %1117 = vmatpush1.bf16.msra.mxu0 %v1052
        %1118 = vmatprep.subr.bf16.mxu0 0
        %1119 = vmatpush1.bf16.msra.mxu0 0
        %1120 = vmatprep.subr.bf16.mxu0 0
        %1121 = vmatpush1.bf16.msra.mxu0 0
        %1122 = vmatprep.subr.bf16.mxu0 0
        %1123 = vmatpush1.bf16.msra.mxu0 0
        %1124 = vmatprep.subr.bf16.mxu0 0
        %1125 = vmatpush1.bf16.msra.mxu0 0
        %1126 = vmatprep.subr.bf16.mxu0 0
        %1127 = vmatpush1.bf16.msra.mxu0 0
        %1128 = vmatprep.subr.bf16.mxu0 0
        %1129 = vmatpush1.bf16.msra.mxu0 0
        %1130 = vmatprep.subr.bf16.mxu0 0
        %1131 = vmatpush1.bf16.msra.mxu0 0
        %1132 = vmatprep.subr.bf16.mxu0 0
        %1133 = vmatpush1.bf16.msra.mxu0 0
        %1134 = vmatprep.mubr.bf16.mxu0 0
        %1135 = vmatmul.mubr.bf16.gmra.mrb[0].mxu0 %v1101
        %v1136 = vpop.f32.mrb[0].mxu0
        %v1137 = vadd.f32 0.0, %v1136
        %v1138 = vpop.f32.mrb[0].mxu0
        %v1139 = vpop.f32.mrb[0].mxu0
        %v1140 = vpop.f32.mrb[0].mxu0
        %1141 = vdwg.mxu0
        %v1142 = vmul.f32 %v966, %v602
        %v1143 = vmul.f32 %v1096, %v603
        %v1144 = vadd.f32 %v1142, %v1143
        %v1145 = vmul.f32 %v968, %v602
        %v1146 = vmul.f32 %v1137, %v603
        %v1147 = vadd.f32 %v1145, %v1146
        %1149 = vrot.lane.b32.xlu0 %v1144, 64
        %v1150 = vpop.permute.xlu0 %1149
        %v1152 = vcombine.high %v1144, 0.0
        %v1154 = vunpack.c.l.s4 1983009808
        %v1155 = vunpack.c.0.s8 %v1154
        %v1156 = vlaneseq
        %v1157 = vshrl.u32 %v1156, 7
        %v1158 = vsub.s32 %v1155, %v1157
        %v1159 = vrot.slane %v1144, %v1158
        %v1161 = vunpack.c.l.s4 1983009808
        %v1162 = vunpack.c.0.s8 %v1161
        %v1163 = vlaneseq
        %v1164 = vshrl.u32 %v1163, 7
        %v1165 = vsub.s32 %v1162, %v1164
        %v1166 = vrot.slane %v1152, %v1165
        %v1167 = vcombine.high %v1150, 0.0
        %v1169 = vunpack.c.l.s4 1983009808
        %v1170 = vunpack.c.0.s8 %v1169
        %v1171 = vlaneseq
        %v1172 = vshrl.u32 %v1171, 7
        %v1173 = vsub.s32 %v1170, %v1172
        %v1174 = vrot.slane %v1150, %v1173
        %v1176 = vunpack.c.l.s4 1983009808
        %v1177 = vunpack.c.0.s8 %v1176
        %v1178 = vlaneseq
        %v1179 = vshrl.u32 %v1178, 7
        %v1180 = vsub.s32 %v1177, %v1179
        %v1181 = vrot.slane %v1167, %v1180
        %v1182 = vcombine.low %v1159, %v1174
        %v1183 = vcombine.high %v1159, %v1174
        %v1185 = vunpack.c.l.s4 1934713408
        %v1186 = vunpack.c.0.s8 %v1185
        %v1187 = vlaneseq
        %v1188 = vshrl.u32 %v1187, 7
        %v1189 = vsub.s32 %v1186, %v1188
        %v1190 = vrot.slane %v1182, %v1189
        %v1192 = vunpack.c.l.s4 1934713408
        %v1193 = vunpack.c.0.s8 %v1192
        %v1194 = vlaneseq
        %v1195 = vshrl.u32 %v1194, 7
        %v1196 = vsub.s32 %v1193, %v1195
        %v1197 = vrot.slane %v1183, %v1196
        %v1198 = vcombine.low %v1166, %v1181
        %v1199 = vcombine.high %v1166, %v1181
        %v1201 = vunpack.c.l.s4 1934713408
        %v1202 = vunpack.c.0.s8 %v1201
        %v1203 = vlaneseq
        %v1204 = vshrl.u32 %v1203, 7
        %v1205 = vsub.s32 %v1202, %v1204
        %v1206 = vrot.slane %v1198, %v1205
        %v1208 = vunpack.c.l.s4 1934713408
        %v1209 = vunpack.c.0.s8 %v1208
        %v1210 = vlaneseq
        %v1211 = vshrl.u32 %v1210, 7
        %v1212 = vsub.s32 %v1209, %v1211
        %v1213 = vrot.slane %v1199, %v1212
        %v1214 = vcombine.high %v1190, 0.0
        %v1215 = vcombine.high %v1197, 0.0
        %v1216 = vcombine.high %v1206, 0.0
        %v1217 = vcombine.high %v1213, 0.0
        %v1218 = vcombine.low %v1190, %v1197
        %v1220 = vunpack.c.l.s4 1983009808
        %v1221 = vunpack.c.0.s8 %v1220
        %v1222 = vlaneseq
        %v1223 = vshrl.u32 %v1222, 7
        %v1224 = vsub.s32 %v1221, %v1223
        %v1225 = vrot.slane %v1218, %v1224
        %v1226 = vcombine.low %v1214, %v1215
        %v1228 = vunpack.c.l.s4 1983009808
        %v1229 = vunpack.c.0.s8 %v1228
        %v1230 = vlaneseq
        %v1231 = vshrl.u32 %v1230, 7
        %v1232 = vsub.s32 %v1229, %v1231
        %v1233 = vrot.slane %v1226, %v1232
        %v1234 = vcombine.low %v1206, %v1213
        %v1236 = vunpack.c.l.s4 1983009808
        %v1237 = vunpack.c.0.s8 %v1236
        %v1238 = vlaneseq
        %v1239 = vshrl.u32 %v1238, 7
        %v1240 = vsub.s32 %v1237, %v1239
        %v1241 = vrot.slane %v1234, %v1240
        %v1242 = vcombine.low %v1216, %v1217
        %v1244 = vunpack.c.l.s4 1983009808
        %v1245 = vunpack.c.0.s8 %v1244
        %v1246 = vlaneseq
        %v1247 = vshrl.u32 %v1246, 7
        %v1248 = vsub.s32 %v1245, %v1247
        %v1249 = vrot.slane %v1242, %v1248
        %v1250 = vcombine.low %v1225, %v1233
        %v1252 = vunpack.c.l.s4 1934713408
        %v1253 = vunpack.c.0.s8 %v1252
        %v1254 = vlaneseq
        %v1255 = vshrl.u32 %v1254, 7
        %v1256 = vsub.s32 %v1253, %v1255
        %v1257 = vrot.slane %v1250, %v1256
        %v1258 = vcombine.low %v1241, %v1249
        %v1260 = vunpack.c.l.s4 1934713408
        %v1261 = vunpack.c.0.s8 %v1260
        %v1262 = vlaneseq
        %v1263 = vshrl.u32 %v1262, 7
        %v1264 = vsub.s32 %v1261, %v1263
        %v1265 = vrot.slane %v1258, %v1264
        %v1266 = vcombine.low %v1257, %v1265
        %v1267 = vcombine.high %v1257, %v1265
        %v1268 = vpack.c.bf16 %v1266, %v1266
        %v1269 = vpack.c.bf16 %v1267, %v1267
        %1271 = vrot.lane.b32.xlu0 %v1147, 64
        %v1272 = vpop.permute.xlu0 %1271
        %v1274 = vcombine.high %v1147, 0.0
        %v1276 = vunpack.c.l.s4 1983009808
        %v1277 = vunpack.c.0.s8 %v1276
        %v1278 = vlaneseq
        %v1279 = vshrl.u32 %v1278, 7
        %v1280 = vsub.s32 %v1277, %v1279
        %v1281 = vrot.slane %v1147, %v1280
        %v1283 = vunpack.c.l.s4 1983009808
        %v1284 = vunpack.c.0.s8 %v1283
        %v1285 = vlaneseq
        %v1286 = vshrl.u32 %v1285, 7
        %v1287 = vsub.s32 %v1284, %v1286
        %v1288 = vrot.slane %v1274, %v1287
        %v1289 = vcombine.high %v1272, 0.0
        %v1291 = vunpack.c.l.s4 1983009808
        %v1292 = vunpack.c.0.s8 %v1291
        %v1293 = vlaneseq
        %v1294 = vshrl.u32 %v1293, 7
        %v1295 = vsub.s32 %v1292, %v1294
        %v1296 = vrot.slane %v1272, %v1295
        %v1298 = vunpack.c.l.s4 1983009808
        %v1299 = vunpack.c.0.s8 %v1298
        %v1300 = vlaneseq
        %v1301 = vshrl.u32 %v1300, 7
        %v1302 = vsub.s32 %v1299, %v1301
        %v1303 = vrot.slane %v1289, %v1302
        %v1304 = vcombine.low %v1281, %v1296
        %v1305 = vcombine.high %v1281, %v1296
        %v1307 = vunpack.c.l.s4 1934713408
        %v1308 = vunpack.c.0.s8 %v1307
        %v1309 = vlaneseq
        %v1310 = vshrl.u32 %v1309, 7
        %v1311 = vsub.s32 %v1308, %v1310
        %v1312 = vrot.slane %v1304, %v1311
        %v1314 = vunpack.c.l.s4 1934713408
        %v1315 = vunpack.c.0.s8 %v1314
        %v1316 = vlaneseq
        %v1317 = vshrl.u32 %v1316, 7
        %v1318 = vsub.s32 %v1315, %v1317
        %v1319 = vrot.slane %v1305, %v1318
        %v1320 = vcombine.low %v1288, %v1303
        %v1321 = vcombine.high %v1288, %v1303
        %v1323 = vunpack.c.l.s4 1934713408
        %v1324 = vunpack.c.0.s8 %v1323
        %v1325 = vlaneseq
        %v1326 = vshrl.u32 %v1325, 7
        %v1327 = vsub.s32 %v1324, %v1326
        %v1328 = vrot.slane %v1320, %v1327
        %v1330 = vunpack.c.l.s4 1934713408
        %v1331 = vunpack.c.0.s8 %v1330
        %v1332 = vlaneseq
        %v1333 = vshrl.u32 %v1332, 7
        %v1334 = vsub.s32 %v1331, %v1333
        %v1335 = vrot.slane %v1321, %v1334
        %v1336 = vcombine.high %v1312, 0.0
        %v1337 = vcombine.high %v1319, 0.0
        %v1338 = vcombine.high %v1328, 0.0
        %v1339 = vcombine.high %v1335, 0.0
        %v1340 = vcombine.low %v1312, %v1319
        %v1342 = vunpack.c.l.s4 1983009808
        %v1343 = vunpack.c.0.s8 %v1342
        %v1344 = vlaneseq
        %v1345 = vshrl.u32 %v1344, 7
        %v1346 = vsub.s32 %v1343, %v1345
        %v1347 = vrot.slane %v1340, %v1346
        %v1348 = vcombine.low %v1336, %v1337
        %v1350 = vunpack.c.l.s4 1983009808
        %v1351 = vunpack.c.0.s8 %v1350
        %v1352 = vlaneseq
        %v1353 = vshrl.u32 %v1352, 7
        %v1354 = vsub.s32 %v1351, %v1353
        %v1355 = vrot.slane %v1348, %v1354
        %v1356 = vcombine.low %v1328, %v1335
        %v1358 = vunpack.c.l.s4 1983009808
        %v1359 = vunpack.c.0.s8 %v1358
        %v1360 = vlaneseq
        %v1361 = vshrl.u32 %v1360, 7
        %v1362 = vsub.s32 %v1359, %v1361
        %v1363 = vrot.slane %v1356, %v1362
        %v1364 = vcombine.low %v1338, %v1339
        %v1366 = vunpack.c.l.s4 1983009808
        %v1367 = vunpack.c.0.s8 %v1366
        %v1368 = vlaneseq
        %v1369 = vshrl.u32 %v1368, 7
        %v1370 = vsub.s32 %v1367, %v1369
        %v1371 = vrot.slane %v1364, %v1370
        %v1372 = vcombine.low %v1347, %v1355
        %v1374 = vunpack.c.l.s4 1934713408
        %v1375 = vunpack.c.0.s8 %v1374
        %v1376 = vlaneseq
        %v1377 = vshrl.u32 %v1376, 7
        %v1378 = vsub.s32 %v1375, %v1377
        %v1379 = vrot.slane %v1372, %v1378
        %v1380 = vcombine.low %v1363, %v1371
        %v1382 = vunpack.c.l.s4 1934713408
        %v1383 = vunpack.c.0.s8 %v1382
        %v1384 = vlaneseq
        %v1385 = vshrl.u32 %v1384, 7
        %v1386 = vsub.s32 %v1383, %v1385
        %v1387 = vrot.slane %v1380, %v1386
        %v1388 = vcombine.low %v1379, %v1387
        %v1389 = vcombine.high %v1379, %v1387
        %v1390 = vpack.c.bf16 %v1388, %v1388
        %v1391 = vpack.c.bf16 %v1389, %v1389
        %1393 = vrot.lane.b32.xlu0 %v1007, 64
        %v1394 = vpop.permute.xlu0 %1393
        %v1396 = vcombine.high %v1007, 0.0
        %v1398 = vunpack.c.l.s4 1983009808
        %v1399 = vunpack.c.0.s8 %v1398
        %v1400 = vlaneseq
        %v1401 = vshrl.u32 %v1400, 7
        %v1402 = vsub.s32 %v1399, %v1401
        %v1403 = vrot.slane %v1007, %v1402
        %v1405 = vunpack.c.l.s4 1983009808
        %v1406 = vunpack.c.0.s8 %v1405
        %v1407 = vlaneseq
        %v1408 = vshrl.u32 %v1407, 7
        %v1409 = vsub.s32 %v1406, %v1408
        %v1410 = vrot.slane %v1396, %v1409
        %v1411 = vcombine.high %v1394, 0.0
        %v1413 = vunpack.c.l.s4 1983009808
        %v1414 = vunpack.c.0.s8 %v1413
        %v1415 = vlaneseq
        %v1416 = vshrl.u32 %v1415, 7
        %v1417 = vsub.s32 %v1414, %v1416
        %v1418 = vrot.slane %v1394, %v1417
        %v1420 = vunpack.c.l.s4 1983009808
        %v1421 = vunpack.c.0.s8 %v1420
        %v1422 = vlaneseq
        %v1423 = vshrl.u32 %v1422, 7
        %v1424 = vsub.s32 %v1421, %v1423
        %v1425 = vrot.slane %v1411, %v1424
        %v1426 = vcombine.low %v1403, %v1418
        %v1427 = vcombine.high %v1403, %v1418
        %v1429 = vunpack.c.l.s4 1934713408
        %v1430 = vunpack.c.0.s8 %v1429
        %v1431 = vlaneseq
        %v1432 = vshrl.u32 %v1431, 7
        %v1433 = vsub.s32 %v1430, %v1432
        %v1434 = vrot.slane %v1426, %v1433
        %v1436 = vunpack.c.l.s4 1934713408
        %v1437 = vunpack.c.0.s8 %v1436
        %v1438 = vlaneseq
        %v1439 = vshrl.u32 %v1438, 7
        %v1440 = vsub.s32 %v1437, %v1439
        %v1441 = vrot.slane %v1427, %v1440
        %v1442 = vcombine.low %v1410, %v1425
        %v1443 = vcombine.high %v1410, %v1425
        %v1445 = vunpack.c.l.s4 1934713408
        %v1446 = vunpack.c.0.s8 %v1445
        %v1447 = vlaneseq
        %v1448 = vshrl.u32 %v1447, 7
        %v1449 = vsub.s32 %v1446, %v1448
        %v1450 = vrot.slane %v1442, %v1449
        %v1452 = vunpack.c.l.s4 1934713408
        %v1453 = vunpack.c.0.s8 %v1452
        %v1454 = vlaneseq
        %v1455 = vshrl.u32 %v1454, 7
        %v1456 = vsub.s32 %v1453, %v1455
        %v1457 = vrot.slane %v1443, %v1456
        %v1458 = vcombine.high %v1434, 0.0
        %v1459 = vcombine.high %v1441, 0.0
        %v1460 = vcombine.high %v1450, 0.0
        %v1461 = vcombine.high %v1457, 0.0
        %v1462 = vcombine.low %v1434, %v1441
        %v1464 = vunpack.c.l.s4 1983009808
        %v1465 = vunpack.c.0.s8 %v1464
        %v1466 = vlaneseq
        %v1467 = vshrl.u32 %v1466, 7
        %v1468 = vsub.s32 %v1465, %v1467
        %v1469 = vrot.slane %v1462, %v1468
        %v1470 = vcombine.low %v1458, %v1459
        %v1472 = vunpack.c.l.s4 1983009808
        %v1473 = vunpack.c.0.s8 %v1472
        %v1474 = vlaneseq
        %v1475 = vshrl.u32 %v1474, 7
        %v1476 = vsub.s32 %v1473, %v1475
        %v1477 = vrot.slane %v1470, %v1476
        %v1478 = vcombine.low %v1450, %v1457
        %v1480 = vunpack.c.l.s4 1983009808
        %v1481 = vunpack.c.0.s8 %v1480
        %v1482 = vlaneseq
        %v1483 = vshrl.u32 %v1482, 7
        %v1484 = vsub.s32 %v1481, %v1483
        %v1485 = vrot.slane %v1478, %v1484
        %v1486 = vcombine.low %v1460, %v1461
        %v1488 = vunpack.c.l.s4 1983009808
        %v1489 = vunpack.c.0.s8 %v1488
        %v1490 = vlaneseq
        %v1491 = vshrl.u32 %v1490, 7
        %v1492 = vsub.s32 %v1489, %v1491
        %v1493 = vrot.slane %v1486, %v1492
        %v1494 = vcombine.low %v1469, %v1477
        %v1496 = vunpack.c.l.s4 1934713408
        %v1497 = vunpack.c.0.s8 %v1496
        %v1498 = vlaneseq
        %v1499 = vshrl.u32 %v1498, 7
        %v1500 = vsub.s32 %v1497, %v1499
        %v1501 = vrot.slane %v1494, %v1500
        %v1502 = vcombine.low %v1485, %v1493
        %v1504 = vunpack.c.l.s4 1934713408
        %v1505 = vunpack.c.0.s8 %v1504
        %v1506 = vlaneseq
        %v1507 = vshrl.u32 %v1506, 7
        %v1508 = vsub.s32 %v1505, %v1507
        %v1509 = vrot.slane %v1502, %v1508
        %v1510 = vcombine.low %v1501, %v1509
        %v1511 = vcombine.high %v1501, %v1509
        %v1512 = vpack.c.bf16 %v1510, %v1510
        %v1513 = vpack.c.bf16 %v1511, %v1511
        %v1515 = vlaneseq
        %v1516 = vshrl.u32 %v1515, 7
        %v1517 = vsub.s32 0, %v1516
        %v1518 = vrot.slane %v601, %v1517
        %vm1520 = vcmask 523264
        %v1522 = vsel %vm1520, %v1268, 0
        %v1525 = vsel %vm1520, %v1390, 0
        %1527 = vmatprep.subr.bf16.mxu0 0
        %1528 = vmatpush1.bf16.xpose.msra.mxu0 %v1525
        %1529 = vmatprep.subr.bf16.mxu0 0
        %1530 = vmatpush1.bf16.xpose.msra.mxu0 0
        %1531 = vmatprep.subr.bf16.mxu0 0
        %1532 = vmatpush1.bf16.xpose.msra.mxu0 0
        %1533 = vmatprep.subr.bf16.mxu0 0
        %1534 = vmatpush1.bf16.xpose.msra.mxu0 0
        %1535 = vmatprep.subr.bf16.mxu0 0
        %1536 = vmatpush1.bf16.xpose.msra.mxu0 0
        %1537 = vmatprep.subr.bf16.mxu0 0
        %1538 = vmatpush1.bf16.xpose.msra.mxu0 0
        %1539 = vmatprep.subr.bf16.mxu0 0
        %1540 = vmatpush1.bf16.xpose.msra.mxu0 0
        %1541 = vmatprep.subr.bf16.mxu0 0
        %1542 = vmatpush1.bf16.xpose.msra.mxu0 0
        %1543 = vmatprep.subr.bf16.mxu0 0
        %1544 = vmatpush1.bf16.xpose.msra.mxu0 0
        %1545 = vmatprep.subr.bf16.mxu0 0
        %1546 = vmatpush1.bf16.xpose.msra.mxu0 0
        %1547 = vmatprep.subr.bf16.mxu0 0
        %1548 = vmatpush1.bf16.xpose.msra.mxu0 0
        %1549 = vmatprep.subr.bf16.mxu0 0
        %1550 = vmatpush1.bf16.xpose.msra.mxu0 0
        %1551 = vmatprep.subr.bf16.mxu0 0
        %1552 = vmatpush1.bf16.xpose.msra.mxu0 0
        %1553 = vmatprep.subr.bf16.mxu0 0
        %1554 = vmatpush1.bf16.xpose.msra.mxu0 0
        %1555 = vmatprep.subr.bf16.mxu0 0
        %1556 = vmatpush1.bf16.xpose.msra.mxu0 0
        %1557 = vmatprep.subr.bf16.mxu0 0
        %1558 = vmatpush1.bf16.xpose.msra.mxu0 0
        %1559 = vmatprep.mubr.bf16.mxu0 0
        %1560 = vmatmul.mubr.bf16.gmra.mrb[0].mxu0 %v1522
        %v1561 = vpop.f32.mrb[0].mxu0
        %v1562 = vadd.f32 %v1518, %v1561
        %v1563 = vpop.f32.mrb[0].mxu0
        %v1564 = vpop.f32.mrb[0].mxu0
        %v1565 = vpop.f32.mrb[0].mxu0
        %1566 = vdwg.mxu0
        %v1568 = vsel %vm1520, %v1269, 0
        %v1571 = vsel %vm1520, %v1391, 0
        %1573 = vmatprep.subr.bf16.mxu0 0
        %1574 = vmatpush1.bf16.xpose.msra.mxu0 %v1571
        %1575 = vmatprep.subr.bf16.mxu0 0
        %1576 = vmatpush1.bf16.xpose.msra.mxu0 0
        %1577 = vmatprep.subr.bf16.mxu0 0
        %1578 = vmatpush1.bf16.xpose.msra.mxu0 0
        %1579 = vmatprep.subr.bf16.mxu0 0
        %1580 = vmatpush1.bf16.xpose.msra.mxu0 0
        %1581 = vmatprep.subr.bf16.mxu0 0
        %1582 = vmatpush1.bf16.xpose.msra.mxu0 0
        %1583 = vmatprep.subr.bf16.mxu0 0
        %1584 = vmatpush1.bf16.xpose.msra.mxu0 0
        %1585 = vmatprep.subr.bf16.mxu0 0
        %1586 = vmatpush1.bf16.xpose.msra.mxu0 0
        %1587 = vmatprep.subr.bf16.mxu0 0
        %1588 = vmatpush1.bf16.xpose.msra.mxu0 0
        %1589 = vmatprep.subr.bf16.mxu0 0
        %1590 = vmatpush1.bf16.xpose.msra.mxu0 0
        %1591 = vmatprep.subr.bf16.mxu0 0
        %1592 = vmatpush1.bf16.xpose.msra.mxu0 0
        %1593 = vmatprep.subr.bf16.mxu0 0
        %1594 = vmatpush1.bf16.xpose.msra.mxu0 0
        %1595 = vmatprep.subr.bf16.mxu0 0
        %1596 = vmatpush1.bf16.xpose.msra.mxu0 0
        %1597 = vmatprep.subr.bf16.mxu0 0
        %1598 = vmatpush1.bf16.xpose.msra.mxu0 0
        %1599 = vmatprep.subr.bf16.mxu0 0
        %1600 = vmatpush1.bf16.xpose.msra.mxu0 0
        %1601 = vmatprep.subr.bf16.mxu0 0
        %1602 = vmatpush1.bf16.xpose.msra.mxu0 0
        %1603 = vmatprep.subr.bf16.mxu0 0
        %1604 = vmatpush1.bf16.xpose.msra.mxu0 0
        %1605 = vmatprep.mubr.bf16.mxu0 0
        %1606 = vmatmul.mubr.bf16.gmra.mrb[0].mxu0 %v1568
        %v1607 = vpop.f32.mrb[0].mxu0
        %v1608 = vadd.f32 %v1518, %v1607
        %v1609 = vpop.f32.mrb[0].mxu0
        %v1610 = vpop.f32.mrb[0].mxu0
        %v1611 = vpop.f32.mrb[0].mxu0
        %1612 = vdwg.mxu0
        %vm1613 = vcmask 64512
        %v1614 = vsel %vm1613, %v1562, -inf
        %1615 = vmax.xlane.f32.xlu0 %v1614
        %v1616 = vpop.xlane.xlu0 %1615
        %v1617 = vsel %vm1613, %v1608, -inf
        %1618 = vmax.xlane.f32.xlu0 %v1617
        %v1619 = vpop.xlane.xlu0 %1618
        %v1620 = vsub.f32 %v1562, %v1616
        %v1621 = vsub.f32 %v1608, %v1619
        %v1622 = vmul.f32 %v1620, 1.442695
        %v1623 = vpow.pop %v1622
        %v1624 = vmul.f32 %v1621, 1.442695
        %v1625 = vpow.pop %v1624
        %v1626 = vsel %vm1613, %v1623, 0.0
        %1627 = vadd.xlane.f32.xlu0 %v1626
        %v1628 = vpop.xlane.xlu0 %1627
        %v1629 = vsel %vm1613, %v1625, 0.0
        %1630 = vadd.xlane.f32.xlu0 %v1629
        %v1631 = vpop.xlane.xlu0 %1630
        %v1632 = vrcp.pop %v1628
        %v1633 = vrcp.pop %v1631
        %v1634 = vmul.f32 %v1623, %v1632
        %v1635 = vmul.f32 %v1625, %v1633
        %v1636 = vpack.c.bf16 %v1634, %v1634
        %v1637 = vpack.c.bf16 %v1635, %v1635
        %v1639 = vsel %vm1613, %v1636, 0
        %vm1641 = vcmask 1043456
        %v1643 = vsel %vm1641, %v1512, 0
        %1645 = vmatprep.subr.bf16.mxu0 0
        %1646 = vmatpush1.bf16.msra.mxu0 %v1643
        %1647 = vmatprep.subr.bf16.mxu0 0
        %1648 = vmatpush1.bf16.msra.mxu0 0
        %1649 = vmatprep.subr.bf16.mxu0 0
        %1650 = vmatpush1.bf16.msra.mxu0 0
        %1651 = vmatprep.subr.bf16.mxu0 0
        %1652 = vmatpush1.bf16.msra.mxu0 0
        %1653 = vmatprep.subr.bf16.mxu0 0
        %1654 = vmatpush1.bf16.msra.mxu0 0
        %1655 = vmatprep.subr.bf16.mxu0 0
        %1656 = vmatpush1.bf16.msra.mxu0 0
        %1657 = vmatprep.subr.bf16.mxu0 0
        %1658 = vmatpush1.bf16.msra.mxu0 0
        %1659 = vmatprep.subr.bf16.mxu0 0
        %1660 = vmatpush1.bf16.msra.mxu0 0
        %1661 = vmatprep.subr.bf16.mxu0 0
        %1662 = vmatpush1.bf16.msra.mxu0 0
        %1663 = vmatprep.subr.bf16.mxu0 0
        %1664 = vmatpush1.bf16.msra.mxu0 0
        %1665 = vmatprep.subr.bf16.mxu0 0
        %1666 = vmatpush1.bf16.msra.mxu0 0
        %1667 = vmatprep.subr.bf16.mxu0 0
        %1668 = vmatpush1.bf16.msra.mxu0 0
        %1669 = vmatprep.subr.bf16.mxu0 0
        %1670 = vmatpush1.bf16.msra.mxu0 0
        %1671 = vmatprep.subr.bf16.mxu0 0
        %1672 = vmatpush1.bf16.msra.mxu0 0
        %1673 = vmatprep.subr.bf16.mxu0 0
        %1674 = vmatpush1.bf16.msra.mxu0 0
        %1675 = vmatprep.subr.bf16.mxu0 0
        %1676 = vmatpush1.bf16.msra.mxu0 0
        %1677 = vmatprep.mubr.bf16.mxu0 0
        %1678 = vmatmul.mubr.bf16.gmra.mrb[0].mxu0 %v1639
        %v1679 = vpop.f32.mrb[0].mxu0
        %v1680 = vadd.f32 0.0, %v1679
        %v1681 = vpop.f32.mrb[0].mxu0
        %v1682 = vpop.f32.mrb[0].mxu0
        %v1683 = vpop.f32.mrb[0].mxu0
        %1684 = vdwg.mxu0
        %v1686 = vsel %vm1613, %v1637, 0
        %v1689 = vsel %vm1641, %v1513, 0
        %1691 = vmatprep.subr.bf16.mxu0 0
        %1692 = vmatpush1.bf16.msra.mxu0 %v1689
        %1693 = vmatprep.subr.bf16.mxu0 0
        %1694 = vmatpush1.bf16.msra.mxu0 0
        %1695 = vmatprep.subr.bf16.mxu0 0
        %1696 = vmatpush1.bf16.msra.mxu0 0
        %1697 = vmatprep.subr.bf16.mxu0 0
        %1698 = vmatpush1.bf16.msra.mxu0 0
        %1699 = vmatprep.subr.bf16.mxu0 0
        %1700 = vmatpush1.bf16.msra.mxu0 0
        %1701 = vmatprep.subr.bf16.mxu0 0
        %1702 = vmatpush1.bf16.msra.mxu0 0
        %1703 = vmatprep.subr.bf16.mxu0 0
        %1704 = vmatpush1.bf16.msra.mxu0 0
        %1705 = vmatprep.subr.bf16.mxu0 0
        %1706 = vmatpush1.bf16.msra.mxu0 0
        %1707 = vmatprep.subr.bf16.mxu0 0
        %1708 = vmatpush1.bf16.msra.mxu0 0
        %1709 = vmatprep.subr.bf16.mxu0 0
        %1710 = vmatpush1.bf16.msra.mxu0 0
        %1711 = vmatprep.subr.bf16.mxu0 0
        %1712 = vmatpush1.bf16.msra.mxu0 0
        %1713 = vmatprep.subr.bf16.mxu0 0
        %1714 = vmatpush1.bf16.msra.mxu0 0
        %1715 = vmatprep.subr.bf16.mxu0 0
        %1716 = vmatpush1.bf16.msra.mxu0 0
        %1717 = vmatprep.subr.bf16.mxu0 0
        %1718 = vmatpush1.bf16.msra.mxu0 0
        %1719 = vmatprep.subr.bf16.mxu0 0
        %1720 = vmatpush1.bf16.msra.mxu0 0
        %1721 = vmatprep.subr.bf16.mxu0 0
        %1722 = vmatpush1.bf16.msra.mxu0 0
        %1723 = vmatprep.mubr.bf16.mxu0 0
        %1724 = vmatmul.mubr.bf16.gmra.mrb[0].mxu0 %v1686
        %v1725 = vpop.f32.mrb[0].mxu0
        %v1726 = vadd.f32 0.0, %v1725
        %v1727 = vpop.f32.mrb[0].mxu0
        %v1728 = vpop.f32.mrb[0].mxu0
        %v1729 = vpop.f32.mrb[0].mxu0
        %1730 = vdwg.mxu0
        %v1731 = vcombine.high %v1680, 0.0
        %v1733 = vunpack.c.l.s4 1983009808
        %v1734 = vunpack.c.0.s8 %v1733
        %v1735 = vlaneseq
        %v1736 = vshrl.u32 %v1735, 7
        %v1737 = vsub.s32 %v1734, %v1736
        %v1738 = vrot.slane %v1680, %v1737
        %v1740 = vunpack.c.l.s4 1983009808
        %v1741 = vunpack.c.0.s8 %v1740
        %v1742 = vlaneseq
        %v1743 = vshrl.u32 %v1742, 7
        %v1744 = vsub.s32 %v1741, %v1743
        %v1745 = vrot.slane %v1731, %v1744
        %v1746 = vcombine.high %v1726, 0.0
        %v1748 = vunpack.c.l.s4 1983009808
        %v1749 = vunpack.c.0.s8 %v1748
        %v1750 = vlaneseq
        %v1751 = vshrl.u32 %v1750, 7
        %v1752 = vsub.s32 %v1749, %v1751
        %v1753 = vrot.slane %v1726, %v1752
        %v1755 = vunpack.c.l.s4 1983009808
        %v1756 = vunpack.c.0.s8 %v1755
        %v1757 = vlaneseq
        %v1758 = vshrl.u32 %v1757, 7
        %v1759 = vsub.s32 %v1756, %v1758
        %v1760 = vrot.slane %v1746, %v1759
        %v1761 = vcombine.low %v1738, %v1753
        %v1762 = vcombine.high %v1738, %v1753
        %v1764 = vunpack.c.l.s4 1934713408
        %v1765 = vunpack.c.0.s8 %v1764
        %v1766 = vlaneseq
        %v1767 = vshrl.u32 %v1766, 7
        %v1768 = vsub.s32 %v1765, %v1767
        %v1769 = vrot.slane %v1761, %v1768
        %v1771 = vunpack.c.l.s4 1934713408
        %v1772 = vunpack.c.0.s8 %v1771
        %v1773 = vlaneseq
        %v1774 = vshrl.u32 %v1773, 7
        %v1775 = vsub.s32 %v1772, %v1774
        %v1776 = vrot.slane %v1762, %v1775
        %v1777 = vcombine.low %v1745, %v1760
        %v1778 = vcombine.high %v1745, %v1760
        %v1780 = vunpack.c.l.s4 1934713408
        %v1781 = vunpack.c.0.s8 %v1780
        %v1782 = vlaneseq
        %v1783 = vshrl.u32 %v1782, 7
        %v1784 = vsub.s32 %v1781, %v1783
        %v1785 = vrot.slane %v1777, %v1784
        %v1787 = vunpack.c.l.s4 1934713408
        %v1788 = vunpack.c.0.s8 %v1787
        %v1789 = vlaneseq
        %v1790 = vshrl.u32 %v1789, 7
        %v1791 = vsub.s32 %v1788, %v1790
        %v1792 = vrot.slane %v1778, %v1791
        %v1793 = vcombine.high %v1769, 0.0
        %v1794 = vcombine.high %v1776, 0.0
        %v1795 = vcombine.high %v1785, 0.0
        %v1796 = vcombine.high %v1792, 0.0
        %v1797 = vcombine.low %v1769, %v1776
        %v1799 = vunpack.c.l.s4 1983009808
        %v1800 = vunpack.c.0.s8 %v1799
        %v1801 = vlaneseq
        %v1802 = vshrl.u32 %v1801, 7
        %v1803 = vsub.s32 %v1800, %v1802
        %v1804 = vrot.slane %v1797, %v1803
        %v1805 = vcombine.low %v1793, %v1794
        %v1807 = vunpack.c.l.s4 1983009808
        %v1808 = vunpack.c.0.s8 %v1807
        %v1809 = vlaneseq
        %v1810 = vshrl.u32 %v1809, 7
        %v1811 = vsub.s32 %v1808, %v1810
        %v1812 = vrot.slane %v1805, %v1811
        %v1813 = vcombine.low %v1785, %v1792
        %v1815 = vunpack.c.l.s4 1983009808
        %v1816 = vunpack.c.0.s8 %v1815
        %v1817 = vlaneseq
        %v1818 = vshrl.u32 %v1817, 7
        %v1819 = vsub.s32 %v1816, %v1818
        %v1820 = vrot.slane %v1813, %v1819
        %v1821 = vcombine.low %v1795, %v1796
        %v1823 = vunpack.c.l.s4 1983009808
        %v1824 = vunpack.c.0.s8 %v1823
        %v1825 = vlaneseq
        %v1826 = vshrl.u32 %v1825, 7
        %v1827 = vsub.s32 %v1824, %v1826
        %v1828 = vrot.slane %v1821, %v1827
        %v1829 = vcombine.low %v1804, %v1812
        %v1831 = vunpack.c.l.s4 1934713408
        %v1832 = vunpack.c.0.s8 %v1831
        %v1833 = vlaneseq
        %v1834 = vshrl.u32 %v1833, 7
        %v1835 = vsub.s32 %v1832, %v1834
        %v1836 = vrot.slane %v1829, %v1835
        %v1837 = vcombine.low %v1820, %v1828
        %v1839 = vunpack.c.l.s4 1934713408
        %v1840 = vunpack.c.0.s8 %v1839
        %v1841 = vlaneseq
        %v1842 = vshrl.u32 %v1841, 7
        %v1843 = vsub.s32 %v1840, %v1842
        %v1844 = vrot.slane %v1837, %v1843
        %v1845 = vcombine.low %v1836, %v1844
        %v1846 = vcombine.high %v1836, %v1844
        %1848 = vrot.lane.b32.xlu0 %v1846, 64
        %v1849 = vpop.permute.xlu0 %1848
        %v1851 = vsel %vm1520, %v1845, %v1849
        %v1852 = vpack.c.bf16 %v1851, %v1851
        %v1869 = vunpack.c.l.b16 %v652
        %v1870 = vunpack.c.l.b16 %v653
        %v1871 = vunpack.c.l.b16 %v654
        %v1872 = vunpack.c.l.b16 %v655
        %v1873 = vunpack.c.l.b16 %v656
        %v1874 = vunpack.c.l.b16 %v657
        %v1875 = vunpack.c.l.b16 %v658
        %v1876 = vunpack.c.l.b16 %v659
        %v1877 = vunpack.c.l.b16 %v660
        %v1878 = vunpack.c.l.b16 %v661
        %v1879 = vunpack.c.l.b16 %v662
        %v1880 = vunpack.c.l.b16 %v663
        %v1881 = vunpack.c.l.b16 %v664
        %v1882 = vunpack.c.l.b16 %v665
        %v1883 = vunpack.c.l.b16 %v666
        %v1884 = vunpack.c.l.b16 %v667
        %v1885 = vpack.c.b16 %v1870, %v1869
        %v1886 = vpack.c.b16 %v1872, %v1871
        %v1887 = vpack.c.b16 %v1874, %v1873
        %v1888 = vpack.c.b16 %v1876, %v1875
        %v1889 = vpack.c.b16 %v1878, %v1877
        %v1890 = vpack.c.b16 %v1880, %v1879
        %v1891 = vpack.c.b16 %v1882, %v1881
        %v1892 = vpack.c.b16 %v1884, %v1883
        %1901 = vmatprep.subr.bf16.mxu0 0
        %1902 = vmatpush1.bf16.msra.mxu0 %v1885
        %1903 = vmatprep.subr.bf16.mxu0 0
        %1904 = vmatpush1.bf16.msra.mxu0 %v1886
        %1905 = vmatprep.subr.bf16.mxu0 0
        %1906 = vmatpush1.bf16.msra.mxu0 %v1887
        %1907 = vmatprep.subr.bf16.mxu0 0
        %1908 = vmatpush1.bf16.msra.mxu0 %v1888
        %1909 = vmatprep.subr.bf16.mxu0 0
        %1910 = vmatpush1.bf16.msra.mxu0 %v1889
        %1911 = vmatprep.subr.bf16.mxu0 0
        %1912 = vmatpush1.bf16.msra.mxu0 %v1890
        %1913 = vmatprep.subr.bf16.mxu0 0
        %1914 = vmatpush1.bf16.msra.mxu0 %v1891
        %1915 = vmatprep.subr.bf16.mxu0 0
        %1916 = vmatpush1.bf16.msra.mxu0 %v1892
        %1917 = vmatprep.subr.bf16.mxu0 0
        %1918 = vmatpush1.bf16.msra.mxu0 0
        %1919 = vmatprep.subr.bf16.mxu0 0
        %1920 = vmatpush1.bf16.msra.mxu0 0
        %1921 = vmatprep.subr.bf16.mxu0 0
        %1922 = vmatpush1.bf16.msra.mxu0 0
        %1923 = vmatprep.subr.bf16.mxu0 0
        %1924 = vmatpush1.bf16.msra.mxu0 0
        %1925 = vmatprep.subr.bf16.mxu0 0
        %1926 = vmatpush1.bf16.msra.mxu0 0
        %1927 = vmatprep.subr.bf16.mxu0 0
        %1928 = vmatpush1.bf16.msra.mxu0 0
        %1929 = vmatprep.subr.bf16.mxu0 0
        %1930 = vmatpush1.bf16.msra.mxu0 0
        %1931 = vmatprep.subr.bf16.mxu0 0
        %1932 = vmatpush1.bf16.msra.mxu0 0
        %1933 = vmatprep.mubr.bf16.mxu0 0
        %1934 = vmatmul.mubr.bf16.gmra.mrb[0].mxu0 %v1852
        %v1935 = vpop.f32.mrb[0].mxu0
        %v1936 = vadd.f32 0.0, %v1935
        %v1937 = vpop.f32.mrb[0].mxu0
        %v1938 = vpop.f32.mrb[0].mxu0
        %v1939 = vpop.f32.mrb[0].mxu0
        %1940 = vdwg.mxu0
        %v1941 = vadd.f32 %v600, %v1936
        %v1942 = vlaneseq
        %v1943 = vshrl.u32 %v1942, 7
        %v1944 = vsub.s32 4, %v1943
        %v1945 = vrot.slane %v764, %v1944
        %v1946 = vadd.f32 %v1941, %v1945
        %1947 = vadd.xlane.f32.xlu0 %v1946
        %v1948 = vpop.xlane.xlu0 %1947
        %v1949 = vmul.f32 %v1948, %v770
        %v1950 = vsub.f32 %v1946, %v1949
        %v1951 = vmul.f32 %v1950, %v1950
        %1952 = vadd.xlane.f32.xlu0 %v1951
        %v1953 = vpop.xlane.xlu0 %1952
        %v1954 = vmul.f32 %v1953, %v770
        %v1955 = vadd.f32 %v1954, 1e-05
        %v1956 = vrsqrt.pop %v1955
        %v1957 = vmul.f32 %v1950, %v1956
        %v1958 = vlaneseq
        %v1959 = vshrl.u32 %v1958, 7
        %v1960 = vsub.s32 2, %v1959
        %v1961 = vrot.slane %v764, %v1960
        %v1962 = vmul.f32 %v1957, %v1961
        %v1963 = vlaneseq
        %v1964 = vshrl.u32 %v1963, 7
        %v1965 = vsub.s32 3, %v1964
        %v1966 = vrot.slane %v764, %v1965
        %v1967 = vadd.f32 %v1962, %v1966
        %v1968 = vpack.c.bf16 %v1967, %v1967
        %v1969 = vlaneseq
        %v1970 = vshrl.u32 %v1969, 7
        %v1971 = vsub.s32 6, %v1970
        %v1972 = vrot.slane %v764, %v1971
        %v1973 = vlaneseq
        %v1974 = vshrl.u32 %v1973, 7
        %v1975 = vsub.s32 6, %v1974
        %v1976 = vrot.slane %v765, %v1975
        %v1977 = vlaneseq
        %v1978 = vshrl.u32 %v1977, 7
        %v1979 = vsub.s32 6, %v1978
        %v1980 = vrot.slane %v766, %v1979
        %v1981 = vlaneseq
        %v1982 = vshrl.u32 %v1981, 7
        %v1983 = vsub.s32 6, %v1982
        %v1984 = vrot.slane %v767, %v1983
        %v2017 = vunpack.c.l.b16 %v668
        %v2018 = vunpack.c.h.b16 %v668
        %v2019 = vunpack.c.l.b16 %v669
        %v2020 = vunpack.c.h.b16 %v669
        %v2021 = vunpack.c.l.b16 %v670
        %v2022 = vunpack.c.h.b16 %v670
        %v2023 = vunpack.c.l.b16 %v671
        %v2024 = vunpack.c.h.b16 %v671
        %v2025 = vunpack.c.l.b16 %v672
        %v2026 = vunpack.c.h.b16 %v672
        %v2027 = vunpack.c.l.b16 %v673
        %v2028 = vunpack.c.h.b16 %v673
        %v2029 = vunpack.c.l.b16 %v674
        %v2030 = vunpack.c.h.b16 %v674
        %v2031 = vunpack.c.l.b16 %v675
        %v2032 = vunpack.c.h.b16 %v675
        %v2033 = vunpack.c.l.b16 %v676
        %v2034 = vunpack.c.h.b16 %v676
        %v2035 = vunpack.c.l.b16 %v677
        %v2036 = vunpack.c.h.b16 %v677
        %v2037 = vunpack.c.l.b16 %v678
        %v2038 = vunpack.c.h.b16 %v678
        %v2039 = vunpack.c.l.b16 %v679
        %v2040 = vunpack.c.h.b16 %v679
        %v2041 = vunpack.c.l.b16 %v680
        %v2042 = vunpack.c.h.b16 %v680
        %v2043 = vunpack.c.l.b16 %v681
        %v2044 = vunpack.c.h.b16 %v681
        %v2045 = vunpack.c.l.b16 %v682
        %v2046 = vunpack.c.h.b16 %v682
        %v2047 = vunpack.c.l.b16 %v683
        %v2048 = vunpack.c.h.b16 %v683
        %v2049 = vunpack.c.l.b16 %v684
        %v2050 = vunpack.c.h.b16 %v684
        %v2051 = vunpack.c.l.b16 %v685
        %v2052 = vunpack.c.h.b16 %v685
        %v2053 = vunpack.c.l.b16 %v686
        %v2054 = vunpack.c.h.b16 %v686
        %v2055 = vunpack.c.l.b16 %v687
        %v2056 = vunpack.c.h.b16 %v687
        %v2057 = vunpack.c.l.b16 %v688
        %v2058 = vunpack.c.h.b16 %v688
        %v2059 = vunpack.c.l.b16 %v689
        %v2060 = vunpack.c.h.b16 %v689
        %v2061 = vunpack.c.l.b16 %v690
        %v2062 = vunpack.c.h.b16 %v690
        %v2063 = vunpack.c.l.b16 %v691
        %v2064 = vunpack.c.h.b16 %v691
        %v2065 = vunpack.c.l.b16 %v692
        %v2066 = vunpack.c.h.b16 %v692
        %v2067 = vunpack.c.l.b16 %v693
        %v2068 = vunpack.c.h.b16 %v693
        %v2069 = vunpack.c.l.b16 %v694
        %v2070 = vunpack.c.h.b16 %v694
        %v2071 = vunpack.c.l.b16 %v695
        %v2072 = vunpack.c.h.b16 %v695
        %v2073 = vunpack.c.l.b16 %v696
        %v2074 = vunpack.c.h.b16 %v696
        %v2075 = vunpack.c.l.b16 %v697
        %v2076 = vunpack.c.h.b16 %v697
        %v2077 = vunpack.c.l.b16 %v698
        %v2078 = vunpack.c.h.b16 %v698
        %v2079 = vunpack.c.l.b16 %v699
        %v2080 = vunpack.c.h.b16 %v699
        %v2081 = vpack.c.b16 %v2021, %v2017
        %v2082 = vpack.c.b16 %v2022, %v2018
        %v2083 = vpack.c.b16 %v2023, %v2019
        %v2084 = vpack.c.b16 %v2024, %v2020
        %v2085 = vpack.c.b16 %v2029, %v2025
        %v2086 = vpack.c.b16 %v2030, %v2026
        %v2087 = vpack.c.b16 %v2031, %v2027
        %v2088 = vpack.c.b16 %v2032, %v2028
        %v2089 = vpack.c.b16 %v2037, %v2033
        %v2090 = vpack.c.b16 %v2038, %v2034
        %v2091 = vpack.c.b16 %v2039, %v2035
        %v2092 = vpack.c.b16 %v2040, %v2036
        %v2093 = vpack.c.b16 %v2045, %v2041
        %v2094 = vpack.c.b16 %v2046, %v2042
        %v2095 = vpack.c.b16 %v2047, %v2043
        %v2096 = vpack.c.b16 %v2048, %v2044
        %v2097 = vpack.c.b16 %v2053, %v2049
        %v2098 = vpack.c.b16 %v2054, %v2050
        %v2099 = vpack.c.b16 %v2055, %v2051
        %v2100 = vpack.c.b16 %v2056, %v2052
        %v2101 = vpack.c.b16 %v2061, %v2057
        %v2102 = vpack.c.b16 %v2062, %v2058
        %v2103 = vpack.c.b16 %v2063, %v2059
        %v2104 = vpack.c.b16 %v2064, %v2060
        %v2105 = vpack.c.b16 %v2069, %v2065
        %v2106 = vpack.c.b16 %v2070, %v2066
        %v2107 = vpack.c.b16 %v2071, %v2067
        %v2108 = vpack.c.b16 %v2072, %v2068
        %v2109 = vpack.c.b16 %v2077, %v2073
        %v2110 = vpack.c.b16 %v2078, %v2074
        %v2111 = vpack.c.b16 %v2079, %v2075
        %v2112 = vpack.c.b16 %v2080, %v2076
        %2145 = vmatprep.subr.bf16.mxu0 %v2082
        %2146 = vmatpush1.bf16.msra.mxu0 %v2081
        %2147 = vmatprep.subr.bf16.mxu0 %v2086
        %2148 = vmatpush1.bf16.msra.mxu0 %v2085
        %2149 = vmatprep.subr.bf16.mxu0 %v2090
        %2150 = vmatpush1.bf16.msra.mxu0 %v2089
        %2151 = vmatprep.subr.bf16.mxu0 %v2094
        %2152 = vmatpush1.bf16.msra.mxu0 %v2093
        %2153 = vmatprep.subr.bf16.mxu0 %v2098
        %2154 = vmatpush1.bf16.msra.mxu0 %v2097
        %2155 = vmatprep.subr.bf16.mxu0 %v2102
        %2156 = vmatpush1.bf16.msra.mxu0 %v2101
        %2157 = vmatprep.subr.bf16.mxu0 %v2106
        %2158 = vmatpush1.bf16.msra.mxu0 %v2105
        %2159 = vmatprep.subr.bf16.mxu0 %v2110
        %2160 = vmatpush1.bf16.msra.mxu0 %v2109
        %2161 = vmatprep.subr.bf16.mxu0 0
        %2162 = vmatpush1.bf16.msra.mxu0 0
        %2163 = vmatprep.subr.bf16.mxu0 0
        %2164 = vmatpush1.bf16.msra.mxu0 0
        %2165 = vmatprep.subr.bf16.mxu0 0
        %2166 = vmatpush1.bf16.msra.mxu0 0
        %2167 = vmatprep.subr.bf16.mxu0 0
        %2168 = vmatpush1.bf16.msra.mxu0 0
        %2169 = vmatprep.subr.bf16.mxu0 0
        %2170 = vmatpush1.bf16.msra.mxu0 0
        %2171 = vmatprep.subr.bf16.mxu0 0
        %2172 = vmatpush1.bf16.msra.mxu0 0
        %2173 = vmatprep.subr.bf16.mxu0 0
        %2174 = vmatpush1.bf16.msra.mxu0 0
        %2175 = vmatprep.subr.bf16.mxu0 0
        %2176 = vmatpush1.bf16.msra.mxu0 0
        %2177 = vmatprep.mubr.bf16.mxu0 0
        %2178 = vmatmul.mubr.bf16.gmra.mrb[0].mxu0 %v1968
        %v2179 = vpop.f32.mrb[0].mxu0
        %v2180 = vadd.f32 %v1972, %v2179
        %v2181 = vpop.f32.mrb[0].mxu0
        %v2182 = vadd.f32 %v1976, %v2181
        %v2183 = vpop.f32.mrb[0].mxu0
        %v2184 = vpop.f32.mrb[0].mxu0
        %2185 = vdwg.mxu0
        %2186 = vmatprep.subr.bf16.mxu0 %v2084
        %2187 = vmatpush1.bf16.msra.mxu0 %v2083
        %2188 = vmatprep.subr.bf16.mxu0 %v2088
        %2189 = vmatpush1.bf16.msra.mxu0 %v2087
        %2190 = vmatprep.subr.bf16.mxu0 %v2092
        %2191 = vmatpush1.bf16.msra.mxu0 %v2091
        %2192 = vmatprep.subr.bf16.mxu0 %v2096
        %2193 = vmatpush1.bf16.msra.mxu0 %v2095
        %2194 = vmatprep.subr.bf16.mxu0 %v2100
        %2195 = vmatpush1.bf16.msra.mxu0 %v2099
        %2196 = vmatprep.subr.bf16.mxu0 %v2104
        %2197 = vmatpush1.bf16.msra.mxu0 %v2103
        %2198 = vmatprep.subr.bf16.mxu0 %v2108
        %2199 = vmatpush1.bf16.msra.mxu0 %v2107
        %2200 = vmatprep.subr.bf16.mxu0 %v2112
        %2201 = vmatpush1.bf16.msra.mxu0 %v2111
        %2202 = vmatprep.subr.bf16.mxu0 0
        %2203 = vmatpush1.bf16.msra.mxu0 0
        %2204 = vmatprep.subr.bf16.mxu0 0
        %2205 = vmatpush1.bf16.msra.mxu0 0
        %2206 = vmatprep.subr.bf16.mxu0 0
        %2207 = vmatpush1.bf16.msra.mxu0 0
        %2208 = vmatprep.subr.bf16.mxu0 0
        %2209 = vmatpush1.bf16.msra.mxu0 0
        %2210 = vmatprep.subr.bf16.mxu0 0
        %2211 = vmatpush1.bf16.msra.mxu0 0
        %2212 = vmatprep.subr.bf16.mxu0 0
        %2213 = vmatpush1.bf16.msra.mxu0 0
        %2214 = vmatprep.subr.bf16.mxu0 0
        %2215 = vmatpush1.bf16.msra.mxu0 0
        %2216 = vmatprep.subr.bf16.mxu0 0
        %2217 = vmatpush1.bf16.msra.mxu0 0
        %2218 = vmatprep.mubr.bf16.mxu0 0
        %2219 = vmatmul.mubr.bf16.gmra.mrb[0].mxu0 %v1968
        %v2220 = vpop.f32.mrb[0].mxu0
        %v2221 = vadd.f32 %v1980, %v2220
        %v2222 = vpop.f32.mrb[0].mxu0
        %v2223 = vadd.f32 %v1984, %v2222
        %v2224 = vpop.f32.mrb[0].mxu0
        %v2225 = vpop.f32.mrb[0].mxu0
        %2226 = vdwg.mxu0
        %v2227 = vmul.f32 %v2180, 0.5
        %v2228 = vmul.f32 %v2182, 0.5
        %v2229 = vmul.f32 %v2221, 0.5
        %v2230 = vmul.f32 %v2223, 0.5
        %v2231 = vmul.f32 %v2180, 0.70710677
        %v2232 = vmul.f32 %v2182, 0.70710677
        %v2233 = vmul.f32 %v2221, 0.70710677
        %v2234 = vmul.f32 %v2223, 0.70710677
        %vm2235 = vcmp.ge.f32.partialorder %v2231, 0.0
        %vm2236 = vcmp.ge.f32.partialorder %v2232, 0.0
        %vm2237 = vcmp.ge.f32.partialorder %v2233, 0.0
        %vm2238 = vcmp.ge.f32.partialorder %v2234, 0.0
        %v2239 = vsel %vm2235, 1.0, -1.0
        %v2240 = vsel %vm2236, 1.0, -1.0
        %v2241 = vsel %vm2237, 1.0, -1.0
        %v2242 = vsel %vm2238, 1.0, -1.0
        %v2243 = vand.u32 2147483647, %v2231
        %v2244 = vand.u32 2147483647, %v2232
        %v2245 = vand.u32 2147483647, %v2233
        %v2246 = vand.u32 2147483647, %v2234
        %v2247 = vmul.f32 %v2243, 0.3275911
        %v2248 = vmul.f32 %v2244, 0.3275911
        %v2249 = vmul.f32 %v2245, 0.3275911
        %v2250 = vmul.f32 %v2246, 0.3275911
        %v2251 = vadd.f32 %v2247, 1.0
        %v2252 = vadd.f32 %v2248, 1.0
        %v2253 = vadd.f32 %v2249, 1.0
        %v2254 = vadd.f32 %v2250, 1.0
        %v2255 = vrcp.pop %v2251
        %v2256 = vmul.f32 1.0, %v2255
        %v2257 = vrcp.pop %v2252
        %v2258 = vmul.f32 1.0, %v2257
        %v2259 = vrcp.pop %v2253
        %v2260 = vmul.f32 1.0, %v2259
        %v2261 = vrcp.pop %v2254
        %v2262 = vmul.f32 1.0, %v2261
        %v2263 = vmul.f32 %v2256, 1.0614054
        %v2264 = vmul.f32 %v2258, 1.0614054
        %v2265 = vmul.f32 %v2260, 1.0614054
        %v2266 = vmul.f32 %v2262, 1.0614054
        %v2267 = vadd.f32 %v2263, -1.4531521
        %v2268 = vadd.f32 %v2264, -1.4531521
        %v2269 = vadd.f32 %v2265, -1.4531521
        %v2270 = vadd.f32 %v2266, -1.4531521
        %v2271 = vmul.f32 %v2267, %v2256
        %v2272 = vmul.f32 %v2268, %v2258
        %v2273 = vmul.f32 %v2269, %v2260
        %v2274 = vmul.f32 %v2270, %v2262
        %v2275 = vadd.f32 %v2271, 1.4214138
        %v2276 = vadd.f32 %v2272, 1.4214138
        %v2277 = vadd.f32 %v2273, 1.4214138
        %v2278 = vadd.f32 %v2274, 1.4214138
        %v2279 = vmul.f32 %v2275, %v2256
        %v2280 = vmul.f32 %v2276, %v2258
        %v2281 = vmul.f32 %v2277, %v2260
        %v2282 = vmul.f32 %v2278, %v2262
        %v2283 = vadd.f32 %v2279, -0.28449672
        %v2284 = vadd.f32 %v2280, -0.28449672
        %v2285 = vadd.f32 %v2281, -0.28449672
        %v2286 = vadd.f32 %v2282, -0.28449672
        %v2287 = vmul.f32 %v2283, %v2256
        %v2288 = vmul.f32 %v2284, %v2258
        %v2289 = vmul.f32 %v2285, %v2260
        %v2290 = vmul.f32 %v2286, %v2262
        %v2291 = vadd.f32 %v2287, 0.2548296
        %v2292 = vadd.f32 %v2288, 0.2548296
        %v2293 = vadd.f32 %v2289, 0.2548296
        %v2294 = vadd.f32 %v2290, 0.2548296
        %v2295 = vmul.f32 %v2291, %v2256
        %v2296 = vmul.f32 %v2292, %v2258
        %v2297 = vmul.f32 %v2293, %v2260
        %v2298 = vmul.f32 %v2294, %v2262
        %v2299 = vsub.f32 0.0, %v2243
        %v2300 = vsub.f32 0.0, %v2244
        %v2301 = vsub.f32 0.0, %v2245
        %v2302 = vsub.f32 0.0, %v2246
        %v2303 = vmul.f32 %v2299, %v2243
        %v2304 = vmul.f32 %v2300, %v2244
        %v2305 = vmul.f32 %v2301, %v2245
        %v2306 = vmul.f32 %v2302, %v2246
        %v2307 = vmul.f32 %v2303, 1.442695
        %v2308 = vpow.pop %v2307
        %v2309 = vmul.f32 %v2304, 1.442695
        %v2310 = vpow.pop %v2309
        %v2311 = vmul.f32 %v2305, 1.442695
        %v2312 = vpow.pop %v2311
        %v2313 = vmul.f32 %v2306, 1.442695
        %v2314 = vpow.pop %v2313
        %v2315 = vmul.f32 %v2295, %v2308
        %v2316 = vmul.f32 %v2296, %v2310
        %v2317 = vmul.f32 %v2297, %v2312
        %v2318 = vmul.f32 %v2298, %v2314
        %v2319 = vsub.f32 1.0, %v2315
        %v2320 = vsub.f32 1.0, %v2316
        %v2321 = vsub.f32 1.0, %v2317
        %v2322 = vsub.f32 1.0, %v2318
        %v2323 = vmul.f32 %v2239, %v2319
        %v2324 = vmul.f32 %v2240, %v2320
        %v2325 = vmul.f32 %v2241, %v2321
        %v2326 = vmul.f32 %v2242, %v2322
        %v2327 = vadd.f32 %v2323, 1.0
        %v2328 = vadd.f32 %v2324, 1.0
        %v2329 = vadd.f32 %v2325, 1.0
        %v2330 = vadd.f32 %v2326, 1.0
        %v2331 = vmul.f32 %v2227, %v2327
        %v2332 = vmul.f32 %v2228, %v2328
        %v2333 = vmul.f32 %v2229, %v2329
        %v2334 = vmul.f32 %v2230, %v2330
        %v2335 = vpack.c.bf16 %v2331, %v2331
        %v2336 = vpack.c.bf16 %v2332, %v2332
        %v2337 = vpack.c.bf16 %v2333, %v2333
        %v2338 = vpack.c.bf16 %v2334, %v2334
        %v2339 = vlaneseq
        %v2340 = vshrl.u32 %v2339, 7
        %v2341 = vsub.s32 5, %v2340
        %v2342 = vrot.slane %v764, %v2341
        %v2407 = vunpack.c.l.b16 %v700
        %v2408 = vunpack.c.l.b16 %v701
        %v2409 = vunpack.c.l.b16 %v702
        %v2410 = vunpack.c.l.b16 %v703
        %v2411 = vunpack.c.l.b16 %v704
        %v2412 = vunpack.c.l.b16 %v705
        %v2413 = vunpack.c.l.b16 %v706
        %v2414 = vunpack.c.l.b16 %v707
        %v2415 = vunpack.c.l.b16 %v708
        %v2416 = vunpack.c.l.b16 %v709
        %v2417 = vunpack.c.l.b16 %v710
        %v2418 = vunpack.c.l.b16 %v711
        %v2419 = vunpack.c.l.b16 %v712
        %v2420 = vunpack.c.l.b16 %v713
        %v2421 = vunpack.c.l.b16 %v714
        %v2422 = vunpack.c.l.b16 %v715
        %v2423 = vunpack.c.l.b16 %v716
        %v2424 = vunpack.c.l.b16 %v717
        %v2425 = vunpack.c.l.b16 %v718
        %v2426 = vunpack.c.l.b16 %v719
        %v2427 = vunpack.c.l.b16 %v720
        %v2428 = vunpack.c.l.b16 %v721
        %v2429 = vunpack.c.l.b16 %v722
        %v2430 = vunpack.c.l.b16 %v723
        %v2431 = vunpack.c.l.b16 %v724
        %v2432 = vunpack.c.l.b16 %v725
        %v2433 = vunpack.c.l.b16 %v726
        %v2434 = vunpack.c.l.b16 %v727
        %v2435 = vunpack.c.l.b16 %v728
        %v2436 = vunpack.c.l.b16 %v729
        %v2437 = vunpack.c.l.b16 %v730
        %v2438 = vunpack.c.l.b16 %v731
        %v2439 = vunpack.c.l.b16 %v732
        %v2440 = vunpack.c.l.b16 %v733
        %v2441 = vunpack.c.l.b16 %v734
        %v2442 = vunpack.c.l.b16 %v735
        %v2443 = vunpack.c.l.b16 %v736
        %v2444 = vunpack.c.l.b16 %v737
        %v2445 = vunpack.c.l.b16 %v738
        %v2446 = vunpack.c.l.b16 %v739
        %v2447 = vunpack.c.l.b16 %v740
        %v2448 = vunpack.c.l.b16 %v741
        %v2449 = vunpack.c.l.b16 %v742
        %v2450 = vunpack.c.l.b16 %v743
        %v2451 = vunpack.c.l.b16 %v744
        %v2452 = vunpack.c.l.b16 %v745
        %v2453 = vunpack.c.l.b16 %v746
        %v2454 = vunpack.c.l.b16 %v747
        %v2455 = vunpack.c.l.b16 %v748
        %v2456 = vunpack.c.l.b16 %v749
        %v2457 = vunpack.c.l.b16 %v750
        %v2458 = vunpack.c.l.b16 %v751
        %v2459 = vunpack.c.l.b16 %v752
        %v2460 = vunpack.c.l.b16 %v753
        %v2461 = vunpack.c.l.b16 %v754
        %v2462 = vunpack.c.l.b16 %v755
        %v2463 = vunpack.c.l.b16 %v756
        %v2464 = vunpack.c.l.b16 %v757
        %v2465 = vunpack.c.l.b16 %v758
        %v2466 = vunpack.c.l.b16 %v759
        %v2467 = vunpack.c.l.b16 %v760
        %v2468 = vunpack.c.l.b16 %v761
        %v2469 = vunpack.c.l.b16 %v762
        %v2470 = vunpack.c.l.b16 %v763
        %v2471 = vpack.c.b16 %v2408, %v2407
        %v2472 = vpack.c.b16 %v2410, %v2409
        %v2473 = vpack.c.b16 %v2412, %v2411
        %v2474 = vpack.c.b16 %v2414, %v2413
        %v2475 = vpack.c.b16 %v2416, %v2415
        %v2476 = vpack.c.b16 %v2418, %v2417
        %v2477 = vpack.c.b16 %v2420, %v2419
        %v2478 = vpack.c.b16 %v2422, %v2421
        %v2479 = vpack.c.b16 %v2424, %v2423
        %v2480 = vpack.c.b16 %v2426, %v2425
        %v2481 = vpack.c.b16 %v2428, %v2427
        %v2482 = vpack.c.b16 %v2430, %v2429
        %v2483 = vpack.c.b16 %v2432, %v2431
        %v2484 = vpack.c.b16 %v2434, %v2433
        %v2485 = vpack.c.b16 %v2436, %v2435
        %v2486 = vpack.c.b16 %v2438, %v2437
        %v2487 = vpack.c.b16 %v2440, %v2439
        %v2488 = vpack.c.b16 %v2442, %v2441
        %v2489 = vpack.c.b16 %v2444, %v2443
        %v2490 = vpack.c.b16 %v2446, %v2445
        %v2491 = vpack.c.b16 %v2448, %v2447
        %v2492 = vpack.c.b16 %v2450, %v2449
        %v2493 = vpack.c.b16 %v2452, %v2451
        %v2494 = vpack.c.b16 %v2454, %v2453
        %v2495 = vpack.c.b16 %v2456, %v2455
        %v2496 = vpack.c.b16 %v2458, %v2457
        %v2497 = vpack.c.b16 %v2460, %v2459
        %v2498 = vpack.c.b16 %v2462, %v2461
        %v2499 = vpack.c.b16 %v2464, %v2463
        %v2500 = vpack.c.b16 %v2466, %v2465
        %v2501 = vpack.c.b16 %v2468, %v2467
        %v2502 = vpack.c.b16 %v2470, %v2469
        %2535 = vmatprep.subr.bf16.mxu0 0
        %2536 = vmatpush1.bf16.msra.mxu0 %v2471
        %2537 = vmatprep.subr.bf16.mxu0 0
        %2538 = vmatpush1.bf16.msra.mxu0 %v2472
        %2539 = vmatprep.subr.bf16.mxu0 0
        %2540 = vmatpush1.bf16.msra.mxu0 %v2473
        %2541 = vmatprep.subr.bf16.mxu0 0
        %2542 = vmatpush1.bf16.msra.mxu0 %v2474
        %2543 = vmatprep.subr.bf16.mxu0 0
        %2544 = vmatpush1.bf16.msra.mxu0 %v2475
        %2545 = vmatprep.subr.bf16.mxu0 0
        %2546 = vmatpush1.bf16.msra.mxu0 %v2476
        %2547 = vmatprep.subr.bf16.mxu0 0
        %2548 = vmatpush1.bf16.msra.mxu0 %v2477
        %2549 = vmatprep.subr.bf16.mxu0 0
        %2550 = vmatpush1.bf16.msra.mxu0 %v2478
        %2551 = vmatprep.subr.bf16.mxu0 0
        %2552 = vmatpush1.bf16.msra.mxu0 %v2479
        %2553 = vmatprep.subr.bf16.mxu0 0
        %2554 = vmatpush1.bf16.msra.mxu0 %v2480
        %2555 = vmatprep.subr.bf16.mxu0 0
        %2556 = vmatpush1.bf16.msra.mxu0 %v2481
        %2557 = vmatprep.subr.bf16.mxu0 0
        %2558 = vmatpush1.bf16.msra.mxu0 %v2482
        %2559 = vmatprep.subr.bf16.mxu0 0
        %2560 = vmatpush1.bf16.msra.mxu0 %v2483
        %2561 = vmatprep.subr.bf16.mxu0 0
        %2562 = vmatpush1.bf16.msra.mxu0 %v2484
        %2563 = vmatprep.subr.bf16.mxu0 0
        %2564 = vmatpush1.bf16.msra.mxu0 %v2485
        %2565 = vmatprep.subr.bf16.mxu0 0
        %2566 = vmatpush1.bf16.msra.mxu0 %v2486
        %2567 = vmatprep.mubr.bf16.mxu0 %v2336
        %2568 = vmatmul.mubr.bf16.gmra.mrb[0].mxu0 %v2335
        %v2569 = vpop.f32.mrb[0].mxu0
        %v2570 = vadd.f32 %v2342, %v2569
        %v2571 = vpop.f32.mrb[0].mxu0
        %v2572 = vpop.f32.mrb[0].mxu0
        %v2573 = vpop.f32.mrb[0].mxu0
        %2574 = vdwg.mxu0
        %2575 = vmatprep.subr.bf16.mxu0 0
        %2576 = vmatpush1.bf16.msra.mxu0 %v2487
        %2577 = vmatprep.subr.bf16.mxu0 0
        %2578 = vmatpush1.bf16.msra.mxu0 %v2488
        %2579 = vmatprep.subr.bf16.mxu0 0
        %2580 = vmatpush1.bf16.msra.mxu0 %v2489
        %2581 = vmatprep.subr.bf16.mxu0 0
        %2582 = vmatpush1.bf16.msra.mxu0 %v2490
        %2583 = vmatprep.subr.bf16.mxu0 0
        %2584 = vmatpush1.bf16.msra.mxu0 %v2491
        %2585 = vmatprep.subr.bf16.mxu0 0
        %2586 = vmatpush1.bf16.msra.mxu0 %v2492
        %2587 = vmatprep.subr.bf16.mxu0 0
        %2588 = vmatpush1.bf16.msra.mxu0 %v2493
        %2589 = vmatprep.subr.bf16.mxu0 0
        %2590 = vmatpush1.bf16.msra.mxu0 %v2494
        %2591 = vmatprep.subr.bf16.mxu0 0
        %2592 = vmatpush1.bf16.msra.mxu0 %v2495
        %2593 = vmatprep.subr.bf16.mxu0 0
        %2594 = vmatpush1.bf16.msra.mxu0 %v2496
        %2595 = vmatprep.subr.bf16.mxu0 0
        %2596 = vmatpush1.bf16.msra.mxu0 %v2497
        %2597 = vmatprep.subr.bf16.mxu0 0
        %2598 = vmatpush1.bf16.msra.mxu0 %v2498
        %2599 = vmatprep.subr.bf16.mxu0 0
        %2600 = vmatpush1.bf16.msra.mxu0 %v2499
        %2601 = vmatprep.subr.bf16.mxu0 0
        %2602 = vmatpush1.bf16.msra.mxu0 %v2500
        %2603 = vmatprep.subr.bf16.mxu0 0
        %2604 = vmatpush1.bf16.msra.mxu0 %v2501
        %2605 = vmatprep.subr.bf16.mxu0 0
        %2606 = vmatpush1.bf16.msra.mxu0 %v2502
        %2607 = vmatprep.mubr.bf16.mxu0 %v2338
        %2608 = vmatmul.mubr.bf16.gmra.mrb[0].mxu0 %v2337
        %v2609 = vpop.f32.mrb[0].mxu0
        %v2610 = vadd.f32 %v2570, %v2609
        %v2611 = vpop.f32.mrb[0].mxu0
        %v2612 = vpop.f32.mrb[0].mxu0
        %v2613 = vpop.f32.mrb[0].mxu0
        %2614 = vdwg.mxu0
        %v2615 = vadd.f32 %v1946, %v2610
        %s2616 = scalar_lea.vmem [#allocation8], 192
        %v2617 = vld [vmem:[%s2616] sm:$0xff]
        %v2618 = vld [vmem:[%s2616 + $0x8] sm:$0xf]
        %v2619 = vld [vmem:[%s2616 + $0xc] sm:$0xff]
        %v2620 = vld [vmem:[%s2616 + $0x14] sm:$0xf]
        %v2621 = vld [vmem:[%s2616 + $0x18] sm:$0xff]
        %v2622 = vld [vmem:[%s2616 + $0x20] sm:$0xf]
        %v2623 = vld [vmem:[%s2616 + $0x24] sm:$0xff]
        %v2624 = vld [vmem:[%s2616 + $0x2c] sm:$0xf]
        %v2625 = vld [vmem:[%s2616 + $0x30] sm:$0xff]
        %v2626 = vld [vmem:[%s2616 + $0x38] sm:$0xf]
        %v2627 = vld [vmem:[%s2616 + $0x3c] sm:$0xff]
        %v2628 = vld [vmem:[%s2616 + $0x44] sm:$0xf]
        %v2629 = vld [vmem:[%s2616 + $0x48] sm:$0xff]
        %v2630 = vld [vmem:[%s2616 + $0x50] sm:$0xf]
        %v2631 = vld [vmem:[%s2616 + $0x54] sm:$0xff]
        %v2632 = vld [vmem:[%s2616 + $0x5c] sm:$0xf]
        %v2633 = vld [vmem:[%s2616 + $0x60] sm:$0xff]
        %v2634 = vld [vmem:[%s2616 + $0x68] sm:$0xf]
        %v2635 = vld [vmem:[%s2616 + $0x6c] sm:$0xff]
        %v2636 = vld [vmem:[%s2616 + $0x74] sm:$0xf]
        %v2637 = vld [vmem:[%s2616 + $0x78] sm:$0xff]
        %v2638 = vld [vmem:[%s2616 + $0x80] sm:$0xf]
        %v2639 = vld [vmem:[%s2616 + $0x84] sm:$0xff]
        %v2640 = vld [vmem:[%s2616 + $0x8c] sm:$0xf]
        %v2641 = vld [vmem:[%s2616 + $0x90] sm:$0xff]
        %v2642 = vld [vmem:[%s2616 + $0x98] sm:$0xf]
        %v2643 = vld [vmem:[%s2616 + $0x9c] sm:$0xff]
        %v2644 = vld [vmem:[%s2616 + $0xa4] sm:$0xf]
        %v2645 = vld [vmem:[%s2616 + $0xa8] sm:$0xff]
        %v2646 = vld [vmem:[%s2616 + $0xb0] sm:$0xf]
        %v2647 = vld [vmem:[%s2616 + $0xb4] sm:$0xff]
        %v2648 = vld [vmem:[%s2616 + $0xbc] sm:$0xf]
        %s2649 = scalar_lea.vmem [#allocation10], 64
        %v2650 = vld [vmem:[%s2649] sm:$0xf]
        %v2651 = vld [vmem:[%s2649 + $0x4] sm:$0xf]
        %v2652 = vld [vmem:[%s2649 + $0x8] sm:$0xf]
        %v2653 = vld [vmem:[%s2649 + $0xc] sm:$0xf]
        %v2654 = vld [vmem:[%s2649 + $0x10] sm:$0xf]
        %v2655 = vld [vmem:[%s2649 + $0x14] sm:$0xf]
        %v2656 = vld [vmem:[%s2649 + $0x18] sm:$0xf]
        %v2657 = vld [vmem:[%s2649 + $0x1c] sm:$0xf]
        %v2658 = vld [vmem:[%s2649 + $0x20] sm:$0xf]
        %v2659 = vld [vmem:[%s2649 + $0x24] sm:$0xf]
        %v2660 = vld [vmem:[%s2649 + $0x28] sm:$0xf]
        %v2661 = vld [vmem:[%s2649 + $0x2c] sm:$0xf]
        %v2662 = vld [vmem:[%s2649 + $0x30] sm:$0xf]
        %v2663 = vld [vmem:[%s2649 + $0x34] sm:$0xf]
        %v2664 = vld [vmem:[%s2649 + $0x38] sm:$0xf]
        %v2665 = vld [vmem:[%s2649 + $0x3c] sm:$0xf]
        %s2666 = scalar_lea.vmem [#allocation11], 256
        %v2667 = vld [vmem:[%s2666] sm:$0xff]
        %v2668 = vld [vmem:[%s2666 + $0x8] sm:$0xff]
        %v2669 = vld [vmem:[%s2666 + $0x10] sm:$0xff]
        %v2670 = vld [vmem:[%s2666 + $0x18] sm:$0xff]
        %v2671 = vld [vmem:[%s2666 + $0x20] sm:$0xff]
        %v2672 = vld [vmem:[%s2666 + $0x28] sm:$0xff]
        %v2673 = vld [vmem:[%s2666 + $0x30] sm:$0xff]
        %v2674 = vld [vmem:[%s2666 + $0x38] sm:$0xff]
        %v2675 = vld [vmem:[%s2666 + $0x40] sm:$0xff]
        %v2676 = vld [vmem:[%s2666 + $0x48] sm:$0xff]
        %v2677 = vld [vmem:[%s2666 + $0x50] sm:$0xff]
        %v2678 = vld [vmem:[%s2666 + $0x58] sm:$0xff]
        %v2679 = vld [vmem:[%s2666 + $0x60] sm:$0xff]
        %v2680 = vld [vmem:[%s2666 + $0x68] sm:$0xff]
        %v2681 = vld [vmem:[%s2666 + $0x70] sm:$0xff]
        %v2682 = vld [vmem:[%s2666 + $0x78] sm:$0xff]
        %v2683 = vld [vmem:[%s2666 + $0x80] sm:$0xff]
        %v2684 = vld [vmem:[%s2666 + $0x88] sm:$0xff]
        %v2685 = vld [vmem:[%s2666 + $0x90] sm:$0xff]
        %v2686 = vld [vmem:[%s2666 + $0x98] sm:$0xff]
        %v2687 = vld [vmem:[%s2666 + $0xa0] sm:$0xff]
        %v2688 = vld [vmem:[%s2666 + $0xa8] sm:$0xff]
        %v2689 = vld [vmem:[%s2666 + $0xb0] sm:$0xff]
        %v2690 = vld [vmem:[%s2666 + $0xb8] sm:$0xff]
        %v2691 = vld [vmem:[%s2666 + $0xc0] sm:$0xff]
        %v2692 = vld [vmem:[%s2666 + $0xc8] sm:$0xff]
        %v2693 = vld [vmem:[%s2666 + $0xd0] sm:$0xff]
        %v2694 = vld [vmem:[%s2666 + $0xd8] sm:$0xff]
        %v2695 = vld [vmem:[%s2666 + $0xe0] sm:$0xff]
        %v2696 = vld [vmem:[%s2666 + $0xe8] sm:$0xff]
        %v2697 = vld [vmem:[%s2666 + $0xf0] sm:$0xff]
        %v2698 = vld [vmem:[%s2666 + $0xf8] sm:$0xff]
        %s2699 = scalar_lea.vmem [#allocation13], 256
        %v2700 = vld [vmem:[%s2699] sm:$0xf]
        %v2701 = vld [vmem:[%s2699 + $0x4] sm:$0xf]
        %v2702 = vld [vmem:[%s2699 + $0x8] sm:$0xf]
        %v2703 = vld [vmem:[%s2699 + $0xc] sm:$0xf]
        %v2704 = vld [vmem:[%s2699 + $0x10] sm:$0xf]
        %v2705 = vld [vmem:[%s2699 + $0x14] sm:$0xf]
        %v2706 = vld [vmem:[%s2699 + $0x18] sm:$0xf]
        %v2707 = vld [vmem:[%s2699 + $0x1c] sm:$0xf]
        %v2708 = vld [vmem:[%s2699 + $0x20] sm:$0xf]
        %v2709 = vld [vmem:[%s2699 + $0x24] sm:$0xf]
        %v2710 = vld [vmem:[%s2699 + $0x28] sm:$0xf]
        %v2711 = vld [vmem:[%s2699 + $0x2c] sm:$0xf]
        %v2712 = vld [vmem:[%s2699 + $0x30] sm:$0xf]
        %v2713 = vld [vmem:[%s2699 + $0x34] sm:$0xf]
        %v2714 = vld [vmem:[%s2699 + $0x38] sm:$0xf]
        %v2715 = vld [vmem:[%s2699 + $0x3c] sm:$0xf]
        %v2716 = vld [vmem:[%s2699 + $0x40] sm:$0xf]
        %v2717 = vld [vmem:[%s2699 + $0x44] sm:$0xf]
        %v2718 = vld [vmem:[%s2699 + $0x48] sm:$0xf]
        %v2719 = vld [vmem:[%s2699 + $0x4c] sm:$0xf]
        %v2720 = vld [vmem:[%s2699 + $0x50] sm:$0xf]
        %v2721 = vld [vmem:[%s2699 + $0x54] sm:$0xf]
        %v2722 = vld [vmem:[%s2699 + $0x58] sm:$0xf]
        %v2723 = vld [vmem:[%s2699 + $0x5c] sm:$0xf]
        %v2724 = vld [vmem:[%s2699 + $0x60] sm:$0xf]
        %v2725 = vld [vmem:[%s2699 + $0x64] sm:$0xf]
        %v2726 = vld [vmem:[%s2699 + $0x68] sm:$0xf]
        %v2727 = vld [vmem:[%s2699 + $0x6c] sm:$0xf]
        %v2728 = vld [vmem:[%s2699 + $0x70] sm:$0xf]
        %v2729 = vld [vmem:[%s2699 + $0x74] sm:$0xf]
        %v2730 = vld [vmem:[%s2699 + $0x78] sm:$0xf]
        %v2731 = vld [vmem:[%s2699 + $0x7c] sm:$0xf]
        %v2732 = vld [vmem:[%s2699 + $0x80] sm:$0xf]
        %v2733 = vld [vmem:[%s2699 + $0x84] sm:$0xf]
        %v2734 = vld [vmem:[%s2699 + $0x88] sm:$0xf]
        %v2735 = vld [vmem:[%s2699 + $0x8c] sm:$0xf]
        %v2736 = vld [vmem:[%s2699 + $0x90] sm:$0xf]
        %v2737 = vld [vmem:[%s2699 + $0x94] sm:$0xf]
        %v2738 = vld [vmem:[%s2699 + $0x98] sm:$0xf]
        %v2739 = vld [vmem:[%s2699 + $0x9c] sm:$0xf]
        %v2740 = vld [vmem:[%s2699 + $0xa0] sm:$0xf]
        %v2741 = vld [vmem:[%s2699 + $0xa4] sm:$0xf]
        %v2742 = vld [vmem:[%s2699 + $0xa8] sm:$0xf]
        %v2743 = vld [vmem:[%s2699 + $0xac] sm:$0xf]
        %v2744 = vld [vmem:[%s2699 + $0xb0] sm:$0xf]
        %v2745 = vld [vmem:[%s2699 + $0xb4] sm:$0xf]
        %v2746 = vld [vmem:[%s2699 + $0xb8] sm:$0xf]
        %v2747 = vld [vmem:[%s2699 + $0xbc] sm:$0xf]
        %v2748 = vld [vmem:[%s2699 + $0xc0] sm:$0xf]
        %v2749 = vld [vmem:[%s2699 + $0xc4] sm:$0xf]
        %v2750 = vld [vmem:[%s2699 + $0xc8] sm:$0xf]
        %v2751 = vld [vmem:[%s2699 + $0xcc] sm:$0xf]
        %v2752 = vld [vmem:[%s2699 + $0xd0] sm:$0xf]
        %v2753 = vld [vmem:[%s2699 + $0xd4] sm:$0xf]
        %v2754 = vld [vmem:[%s2699 + $0xd8] sm:$0xf]
        %v2755 = vld [vmem:[%s2699 + $0xdc] sm:$0xf]
        %v2756 = vld [vmem:[%s2699 + $0xe0] sm:$0xf]
        %v2757 = vld [vmem:[%s2699 + $0xe4] sm:$0xf]
        %v2758 = vld [vmem:[%s2699 + $0xe8] sm:$0xf]
        %v2759 = vld [vmem:[%s2699 + $0xec] sm:$0xf]
        %v2760 = vld [vmem:[%s2699 + $0xf0] sm:$0xf]
        %v2761 = vld [vmem:[%s2699 + $0xf4] sm:$0xf]
        %v2762 = vld [vmem:[%s2699 + $0xf8] sm:$0xf]
        %v2763 = vld [vmem:[%s2699 + $0xfc] sm:$0xf]
        %s2764 = scalar_lea.vmem [#allocation14], 32
        %v2765 = vld [vmem:[%s2764] sm:$0xff]
        %v2766 = vld [vmem:[%s2764 + $0x8] sm:$0xff]
        %v2767 = vld [vmem:[%s2764 + $0x10] sm:$0xff]
        %v2768 = vld [vmem:[%s2764 + $0x18] sm:$0xff]
        %2769 = vadd.xlane.f32.xlu0 %v2615
        %v2770 = vpop.xlane.xlu0 %2769
        %v2771 = vmul.f32 %v2770, %v770
        %v2772 = vsub.f32 %v2615, %v2771
        %v2773 = vmul.f32 %v2772, %v2772
        %2774 = vadd.xlane.f32.xlu0 %v2773
        %v2775 = vpop.xlane.xlu0 %2774
        %v2776 = vmul.f32 %v2775, %v770
        %v2777 = vadd.f32 %v2776, 1e-05
        %v2778 = vrsqrt.pop %v2777
        %v2779 = vmul.f32 %v2772, %v2778
        %v2780 = vlaneseq
        %v2781 = vshrl.u32 %v2780, 7
        %v2782 = vsub.s32 0, %v2781
        %v2783 = vrot.slane %v2765, %v2782
        %v2784 = vmul.f32 %v2779, %v2783
        %v2785 = vlaneseq
        %v2786 = vshrl.u32 %v2785, 7
        %v2787 = vsub.s32 1, %v2786
        %v2788 = vrot.slane %v2765, %v2787
        %v2789 = vadd.f32 %v2784, %v2788
        %v2790 = vpack.c.bf16 %v2789, %v2789
        %v2791 = vlaneseq
        %v2792 = vshrl.u32 %v2791, 7
        %v2793 = vsub.s32 7, %v2792
        %v2794 = vrot.slane %v2765, %v2793
        %v2795 = vlaneseq
        %v2796 = vshrl.u32 %v2795, 7
        %v2797 = vsub.s32 7, %v2796
        %v2798 = vrot.slane %v2766, %v2797
        %v2799 = vlaneseq
        %v2800 = vshrl.u32 %v2799, 7
        %v2801 = vsub.s32 7, %v2800
        %v2802 = vrot.slane %v2767, %v2801
        %v2835 = vunpack.c.l.b16 %v2617
        %v2836 = vunpack.c.h.b16 %v2617
        %v2837 = vunpack.c.l.b16 %v2618
        %v2838 = vunpack.c.l.b16 %v2619
        %v2839 = vunpack.c.h.b16 %v2619
        %v2840 = vunpack.c.l.b16 %v2620
        %v2841 = vunpack.c.l.b16 %v2621
        %v2842 = vunpack.c.h.b16 %v2621
        %v2843 = vunpack.c.l.b16 %v2622
        %v2844 = vunpack.c.l.b16 %v2623
        %v2845 = vunpack.c.h.b16 %v2623
        %v2846 = vunpack.c.l.b16 %v2624
        %v2847 = vunpack.c.l.b16 %v2625
        %v2848 = vunpack.c.h.b16 %v2625
        %v2849 = vunpack.c.l.b16 %v2626
        %v2850 = vunpack.c.l.b16 %v2627
        %v2851 = vunpack.c.h.b16 %v2627
        %v2852 = vunpack.c.l.b16 %v2628
        %v2853 = vunpack.c.l.b16 %v2629
        %v2854 = vunpack.c.h.b16 %v2629
        %v2855 = vunpack.c.l.b16 %v2630
        %v2856 = vunpack.c.l.b16 %v2631
        %v2857 = vunpack.c.h.b16 %v2631
        %v2858 = vunpack.c.l.b16 %v2632
        %v2859 = vunpack.c.l.b16 %v2633
        %v2860 = vunpack.c.h.b16 %v2633
        %v2861 = vunpack.c.l.b16 %v2634
        %v2862 = vunpack.c.l.b16 %v2635
        %v2863 = vunpack.c.h.b16 %v2635
        %v2864 = vunpack.c.l.b16 %v2636
        %v2865 = vunpack.c.l.b16 %v2637
        %v2866 = vunpack.c.h.b16 %v2637
        %v2867 = vunpack.c.l.b16 %v2638
        %v2868 = vunpack.c.l.b16 %v2639
        %v2869 = vunpack.c.h.b16 %v2639
        %v2870 = vunpack.c.l.b16 %v2640
        %v2871 = vunpack.c.l.b16 %v2641
        %v2872 = vunpack.c.h.b16 %v2641
        %v2873 = vunpack.c.l.b16 %v2642
        %v2874 = vunpack.c.l.b16 %v2643
        %v2875 = vunpack.c.h.b16 %v2643
        %v2876 = vunpack.c.l.b16 %v2644
        %v2877 = vunpack.c.l.b16 %v2645
        %v2878 = vunpack.c.h.b16 %v2645
        %v2879 = vunpack.c.l.b16 %v2646
        %v2880 = vunpack.c.l.b16 %v2647
        %v2881 = vunpack.c.h.b16 %v2647
        %v2882 = vunpack.c.l.b16 %v2648
        %v2883 = vpack.c.b16 %v2838, %v2835
        %v2884 = vpack.c.b16 %v2839, %v2836
        %v2885 = vpack.c.b16 %v2840, %v2837
        %v2886 = vpack.c.b16 %v2844, %v2841
        %v2887 = vpack.c.b16 %v2845, %v2842
        %v2888 = vpack.c.b16 %v2846, %v2843
        %v2889 = vpack.c.b16 %v2850, %v2847
        %v2890 = vpack.c.b16 %v2851, %v2848
        %v2891 = vpack.c.b16 %v2852, %v2849
        %v2892 = vpack.c.b16 %v2856, %v2853
        %v2893 = vpack.c.b16 %v2857, %v2854
        %v2894 = vpack.c.b16 %v2858, %v2855
        %v2895 = vpack.c.b16 %v2862, %v2859
        %v2896 = vpack.c.b16 %v2863, %v2860
        %v2897 = vpack.c.b16 %v2864, %v2861
        %v2898 = vpack.c.b16 %v2868, %v2865
        %v2899 = vpack.c.b16 %v2869, %v2866
        %v2900 = vpack.c.b16 %v2870, %v2867
        %v2901 = vpack.c.b16 %v2874, %v2871
        %v2902 = vpack.c.b16 %v2875, %v2872
        %v2903 = vpack.c.b16 %v2876, %v2873
        %v2904 = vpack.c.b16 %v2880, %v2877
        %v2905 = vpack.c.b16 %v2881, %v2878
        %v2906 = vpack.c.b16 %v2882, %v2879
        %2931 = vmatprep.subr.bf16.mxu0 %v2884
        %2932 = vmatpush1.bf16.msra.mxu0 %v2883
        %2933 = vmatprep.subr.bf16.mxu0 %v2887
        %2934 = vmatpush1.bf16.msra.mxu0 %v2886
        %2935 = vmatprep.subr.bf16.mxu0 %v2890
        %2936 = vmatpush1.bf16.msra.mxu0 %v2889
        %2937 = vmatprep.subr.bf16.mxu0 %v2893
        %2938 = vmatpush1.bf16.msra.mxu0 %v2892
        %2939 = vmatprep.subr.bf16.mxu0 %v2896
        %2940 = vmatpush1.bf16.msra.mxu0 %v2895
        %2941 = vmatprep.subr.bf16.mxu0 %v2899
        %2942 = vmatpush1.bf16.msra.mxu0 %v2898
        %2943 = vmatprep.subr.bf16.mxu0 %v2902
        %2944 = vmatpush1.bf16.msra.mxu0 %v2901
        %2945 = vmatprep.subr.bf16.mxu0 %v2905
        %2946 = vmatpush1.bf16.msra.mxu0 %v2904
        %2947 = vmatprep.subr.bf16.mxu0 0
        %2948 = vmatpush1.bf16.msra.mxu0 0
        %2949 = vmatprep.subr.bf16.mxu0 0
        %2950 = vmatpush1.bf16.msra.mxu0 0
        %2951 = vmatprep.subr.bf16.mxu0 0
        %2952 = vmatpush1.bf16.msra.mxu0 0
        %2953 = vmatprep.subr.bf16.mxu0 0
        %2954 = vmatpush1.bf16.msra.mxu0 0
        %2955 = vmatprep.subr.bf16.mxu0 0
        %2956 = vmatpush1.bf16.msra.mxu0 0
        %2957 = vmatprep.subr.bf16.mxu0 0
        %2958 = vmatpush1.bf16.msra.mxu0 0
        %2959 = vmatprep.subr.bf16.mxu0 0
        %2960 = vmatpush1.bf16.msra.mxu0 0
        %2961 = vmatprep.subr.bf16.mxu0 0
        %2962 = vmatpush1.bf16.msra.mxu0 0
        %2963 = vmatprep.mubr.bf16.mxu0 0
        %2964 = vmatmul.mubr.bf16.gmra.mrb[0].mxu0 %v2790
        %v2965 = vpop.f32.mrb[0].mxu0
        %v2966 = vadd.f32 %v2794, %v2965
        %v2967 = vpop.f32.mrb[0].mxu0
        %v2968 = vadd.f32 %v2798, %v2967
        %v2969 = vpop.f32.mrb[0].mxu0
        %v2970 = vpop.f32.mrb[0].mxu0
        %2971 = vdwg.mxu0
        %2972 = vmatprep.subr.bf16.mxu0 0
        %2973 = vmatpush1.bf16.msra.mxu0 %v2885
        %2974 = vmatprep.subr.bf16.mxu0 0
        %2975 = vmatpush1.bf16.msra.mxu0 %v2888
        %2976 = vmatprep.subr.bf16.mxu0 0
        %2977 = vmatpush1.bf16.msra.mxu0 %v2891
        %2978 = vmatprep.subr.bf16.mxu0 0
        %2979 = vmatpush1.bf16.msra.mxu0 %v2894
        %2980 = vmatprep.subr.bf16.mxu0 0
        %2981 = vmatpush1.bf16.msra.mxu0 %v2897
        %2982 = vmatprep.subr.bf16.mxu0 0
        %2983 = vmatpush1.bf16.msra.mxu0 %v2900
        %2984 = vmatprep.subr.bf16.mxu0 0
        %2985 = vmatpush1.bf16.msra.mxu0 %v2903
        %2986 = vmatprep.subr.bf16.mxu0 0
        %2987 = vmatpush1.bf16.msra.mxu0 %v2906
        %2988 = vmatprep.subr.bf16.mxu0 0
        %2989 = vmatpush1.bf16.msra.mxu0 0
        %2990 = vmatprep.subr.bf16.mxu0 0
        %2991 = vmatpush1.bf16.msra.mxu0 0
        %2992 = vmatprep.subr.bf16.mxu0 0
        %2993 = vmatpush1.bf16.msra.mxu0 0
        %2994 = vmatprep.subr.bf16.mxu0 0
        %2995 = vmatpush1.bf16.msra.mxu0 0
        %2996 = vmatprep.subr.bf16.mxu0 0
        %2997 = vmatpush1.bf16.msra.mxu0 0
        %2998 = vmatprep.subr.bf16.mxu0 0
        %2999 = vmatpush1.bf16.msra.mxu0 0
        %3000 = vmatprep.subr.bf16.mxu0 0
        %3001 = vmatpush1.bf16.msra.mxu0 0
        %3002 = vmatprep.subr.bf16.mxu0 0
        %3003 = vmatpush1.bf16.msra.mxu0 0
        %3004 = vmatprep.mubr.bf16.mxu0 0
        %3005 = vmatmul.mubr.bf16.gmra.mrb[0].mxu0 %v2790
        %v3006 = vpop.f32.mrb[0].mxu0
        %v3007 = vadd.f32 %v2802, %v3006
        %v3008 = vpop.f32.mrb[0].mxu0
        %v3009 = vpop.f32.mrb[0].mxu0
        %v3010 = vpop.f32.mrb[0].mxu0
        %3011 = vdwg.mxu0
        %v3012 = vpack.c.bf16 %v2966, %v2966
        %3013 = vmatprep.subr.bf16.mxu0 0
        %3014 = vmatpush1.bf16.msra.mxu0 %v1045
        %3015 = vmatprep.subr.bf16.mxu0 0
        %3016 = vmatpush1.bf16.msra.mxu0 %v1046
        %3017 = vmatprep.subr.bf16.mxu0 0
        %3018 = vmatpush1.bf16.msra.mxu0 %v1047
        %3019 = vmatprep.subr.bf16.mxu0 0
        %3020 = vmatpush1.bf16.msra.mxu0 %v1048
        %3021 = vmatprep.subr.bf16.mxu0 0
        %3022 = vmatpush1.bf16.msra.mxu0 %v1049
        %3023 = vmatprep.subr.bf16.mxu0 0
        %3024 = vmatpush1.bf16.msra.mxu0 %v1050
        %3025 = vmatprep.subr.bf16.mxu0 0
        %3026 = vmatpush1.bf16.msra.mxu0 %v1051
        %3027 = vmatprep.subr.bf16.mxu0 0
        %3028 = vmatpush1.bf16.msra.mxu0 %v1052
        %3029 = vmatprep.subr.bf16.mxu0 0
        %3030 = vmatpush1.bf16.msra.mxu0 0
        %3031 = vmatprep.subr.bf16.mxu0 0
        %3032 = vmatpush1.bf16.msra.mxu0 0
        %3033 = vmatprep.subr.bf16.mxu0 0
        %3034 = vmatpush1.bf16.msra.mxu0 0
        %3035 = vmatprep.subr.bf16.mxu0 0
        %3036 = vmatpush1.bf16.msra.mxu0 0
        %3037 = vmatprep.subr.bf16.mxu0 0
        %3038 = vmatpush1.bf16.msra.mxu0 0
        %3039 = vmatprep.subr.bf16.mxu0 0
        %3040 = vmatpush1.bf16.msra.mxu0 0
        %3041 = vmatprep.subr.bf16.mxu0 0
        %3042 = vmatpush1.bf16.msra.mxu0 0
        %3043 = vmatprep.subr.bf16.mxu0 0
        %3044 = vmatpush1.bf16.msra.mxu0 0
        %3045 = vmatprep.mubr.bf16.mxu0 0
        %3046 = vmatmul.mubr.bf16.gmra.mrb[0].mxu0 %v3012
        %v3047 = vpop.f32.mrb[0].mxu0
        %v3048 = vadd.f32 0.0, %v3047
        %v3049 = vpop.f32.mrb[0].mxu0
        %v3050 = vpop.f32.mrb[0].mxu0
        %v3051 = vpop.f32.mrb[0].mxu0
        %3052 = vdwg.mxu0
        %v3053 = vpack.c.bf16 %v2968, %v2968
        %3054 = vmatprep.subr.bf16.mxu0 0
        %3055 = vmatpush1.bf16.msra.mxu0 %v1045
        %3056 = vmatprep.subr.bf16.mxu0 0
        %3057 = vmatpush1.bf16.msra.mxu0 %v1046
        %3058 = vmatprep.subr.bf16.mxu0 0
        %3059 = vmatpush1.bf16.msra.mxu0 %v1047
        %3060 = vmatprep.subr.bf16.mxu0 0
        %3061 = vmatpush1.bf16.msra.mxu0 %v1048
        %3062 = vmatprep.subr.bf16.mxu0 0
        %3063 = vmatpush1.bf16.msra.mxu0 %v1049
        %3064 = vmatprep.subr.bf16.mxu0 0
        %3065 = vmatpush1.bf16.msra.mxu0 %v1050
        %3066 = vmatprep.subr.bf16.mxu0 0
        %3067 = vmatpush1.bf16.msra.mxu0 %v1051
        %3068 = vmatprep.subr.bf16.mxu0 0
        %3069 = vmatpush1.bf16.msra.mxu0 %v1052
        %3070 = vmatprep.subr.bf16.mxu0 0
        %3071 = vmatpush1.bf16.msra.mxu0 0
        %3072 = vmatprep.subr.bf16.mxu0 0
        %3073 = vmatpush1.bf16.msra.mxu0 0
        %3074 = vmatprep.subr.bf16.mxu0 0
        %3075 = vmatpush1.bf16.msra.mxu0 0
        %3076 = vmatprep.subr.bf16.mxu0 0
        %3077 = vmatpush1.bf16.msra.mxu0 0
        %3078 = vmatprep.subr.bf16.mxu0 0
        %3079 = vmatpush1.bf16.msra.mxu0 0
        %3080 = vmatprep.subr.bf16.mxu0 0
        %3081 = vmatpush1.bf16.msra.mxu0 0
        %3082 = vmatprep.subr.bf16.mxu0 0
        %3083 = vmatpush1.bf16.msra.mxu0 0
        %3084 = vmatprep.subr.bf16.mxu0 0
        %3085 = vmatpush1.bf16.msra.mxu0 0
        %3086 = vmatprep.mubr.bf16.mxu0 0
        %3087 = vmatmul.mubr.bf16.gmra.mrb[0].mxu0 %v3053
        %v3088 = vpop.f32.mrb[0].mxu0
        %v3089 = vadd.f32 0.0, %v3088
        %v3090 = vpop.f32.mrb[0].mxu0
        %v3091 = vpop.f32.mrb[0].mxu0
        %v3092 = vpop.f32.mrb[0].mxu0
        %3093 = vdwg.mxu0
        %v3094 = vmul.f32 %v2966, %v602
        %v3095 = vmul.f32 %v3048, %v603
        %v3096 = vadd.f32 %v3094, %v3095
        %v3097 = vmul.f32 %v2968, %v602
        %v3098 = vmul.f32 %v3089, %v603
        %v3099 = vadd.f32 %v3097, %v3098
        %3101 = vrot.lane.b32.xlu0 %v3096, 64
        %v3102 = vpop.permute.xlu0 %3101
        %v3104 = vcombine.high %v3096, 0.0
        %v3106 = vunpack.c.l.s4 1983009808
        %v3107 = vunpack.c.0.s8 %v3106
        %v3108 = vlaneseq
        %v3109 = vshrl.u32 %v3108, 7
        %v3110 = vsub.s32 %v3107, %v3109
        %v3111 = vrot.slane %v3096, %v3110
        %v3113 = vunpack.c.l.s4 1983009808
        %v3114 = vunpack.c.0.s8 %v3113
        %v3115 = vlaneseq
        %v3116 = vshrl.u32 %v3115, 7
        %v3117 = vsub.s32 %v3114, %v3116
        %v3118 = vrot.slane %v3104, %v3117
        %v3119 = vcombine.high %v3102, 0.0
        %v3121 = vunpack.c.l.s4 1983009808
        %v3122 = vunpack.c.0.s8 %v3121
        %v3123 = vlaneseq
        %v3124 = vshrl.u32 %v3123, 7
        %v3125 = vsub.s32 %v3122, %v3124
        %v3126 = vrot.slane %v3102, %v3125
        %v3128 = vunpack.c.l.s4 1983009808
        %v3129 = vunpack.c.0.s8 %v3128
        %v3130 = vlaneseq
        %v3131 = vshrl.u32 %v3130, 7
        %v3132 = vsub.s32 %v3129, %v3131
        %v3133 = vrot.slane %v3119, %v3132
        %v3134 = vcombine.low %v3111, %v3126
        %v3135 = vcombine.high %v3111, %v3126
        %v3137 = vunpack.c.l.s4 1934713408
        %v3138 = vunpack.c.0.s8 %v3137
        %v3139 = vlaneseq
        %v3140 = vshrl.u32 %v3139, 7
        %v3141 = vsub.s32 %v3138, %v3140
        %v3142 = vrot.slane %v3134, %v3141
        %v3144 = vunpack.c.l.s4 1934713408
        %v3145 = vunpack.c.0.s8 %v3144
        %v3146 = vlaneseq
        %v3147 = vshrl.u32 %v3146, 7
        %v3148 = vsub.s32 %v3145, %v3147
        %v3149 = vrot.slane %v3135, %v3148
        %v3150 = vcombine.low %v3118, %v3133
        %v3151 = vcombine.high %v3118, %v3133
        %v3153 = vunpack.c.l.s4 1934713408
        %v3154 = vunpack.c.0.s8 %v3153
        %v3155 = vlaneseq
        %v3156 = vshrl.u32 %v3155, 7
        %v3157 = vsub.s32 %v3154, %v3156
        %v3158 = vrot.slane %v3150, %v3157
        %v3160 = vunpack.c.l.s4 1934713408
        %v3161 = vunpack.c.0.s8 %v3160
        %v3162 = vlaneseq
        %v3163 = vshrl.u32 %v3162, 7
        %v3164 = vsub.s32 %v3161, %v3163
        %v3165 = vrot.slane %v3151, %v3164
        %v3166 = vcombine.high %v3142, 0.0
        %v3167 = vcombine.high %v3149, 0.0
        %v3168 = vcombine.high %v3158, 0.0
        %v3169 = vcombine.high %v3165, 0.0
        %v3170 = vcombine.low %v3142, %v3149
        %v3172 = vunpack.c.l.s4 1983009808
        %v3173 = vunpack.c.0.s8 %v3172
        %v3174 = vlaneseq
        %v3175 = vshrl.u32 %v3174, 7
        %v3176 = vsub.s32 %v3173, %v3175
        %v3177 = vrot.slane %v3170, %v3176
        %v3178 = vcombine.low %v3166, %v3167
        %v3180 = vunpack.c.l.s4 1983009808
        %v3181 = vunpack.c.0.s8 %v3180
        %v3182 = vlaneseq
        %v3183 = vshrl.u32 %v3182, 7
        %v3184 = vsub.s32 %v3181, %v3183
        %v3185 = vrot.slane %v3178, %v3184
        %v3186 = vcombine.low %v3158, %v3165
        %v3188 = vunpack.c.l.s4 1983009808
        %v3189 = vunpack.c.0.s8 %v3188
        %v3190 = vlaneseq
        %v3191 = vshrl.u32 %v3190, 7
        %v3192 = vsub.s32 %v3189, %v3191
        %v3193 = vrot.slane %v3186, %v3192
        %v3194 = vcombine.low %v3168, %v3169
        %v3196 = vunpack.c.l.s4 1983009808
        %v3197 = vunpack.c.0.s8 %v3196
        %v3198 = vlaneseq
        %v3199 = vshrl.u32 %v3198, 7
        %v3200 = vsub.s32 %v3197, %v3199
        %v3201 = vrot.slane %v3194, %v3200
        %v3202 = vcombine.low %v3177, %v3185
        %v3204 = vunpack.c.l.s4 1934713408
        %v3205 = vunpack.c.0.s8 %v3204
        %v3206 = vlaneseq
        %v3207 = vshrl.u32 %v3206, 7
        %v3208 = vsub.s32 %v3205, %v3207
        %v3209 = vrot.slane %v3202, %v3208
        %v3210 = vcombine.low %v3193, %v3201
        %v3212 = vunpack.c.l.s4 1934713408
        %v3213 = vunpack.c.0.s8 %v3212
        %v3214 = vlaneseq
        %v3215 = vshrl.u32 %v3214, 7
        %v3216 = vsub.s32 %v3213, %v3215
        %v3217 = vrot.slane %v3210, %v3216
        %v3218 = vcombine.low %v3209, %v3217
        %v3219 = vcombine.high %v3209, %v3217
        %v3220 = vpack.c.bf16 %v3218, %v3218
        %v3221 = vpack.c.bf16 %v3219, %v3219
        %3223 = vrot.lane.b32.xlu0 %v3099, 64
        %v3224 = vpop.permute.xlu0 %3223
        %v3226 = vcombine.high %v3099, 0.0
        %v3228 = vunpack.c.l.s4 1983009808
        %v3229 = vunpack.c.0.s8 %v3228
        %v3230 = vlaneseq
        %v3231 = vshrl.u32 %v3230, 7
        %v3232 = vsub.s32 %v3229, %v3231
        %v3233 = vrot.slane %v3099, %v3232
        %v3235 = vunpack.c.l.s4 1983009808
        %v3236 = vunpack.c.0.s8 %v3235
        %v3237 = vlaneseq
        %v3238 = vshrl.u32 %v3237, 7
        %v3239 = vsub.s32 %v3236, %v3238
        %v3240 = vrot.slane %v3226, %v3239
        %v3241 = vcombine.high %v3224, 0.0
        %v3243 = vunpack.c.l.s4 1983009808
        %v3244 = vunpack.c.0.s8 %v3243
        %v3245 = vlaneseq
        %v3246 = vshrl.u32 %v3245, 7
        %v3247 = vsub.s32 %v3244, %v3246
        %v3248 = vrot.slane %v3224, %v3247
        %v3250 = vunpack.c.l.s4 1983009808
        %v3251 = vunpack.c.0.s8 %v3250
        %v3252 = vlaneseq
        %v3253 = vshrl.u32 %v3252, 7
        %v3254 = vsub.s32 %v3251, %v3253
        %v3255 = vrot.slane %v3241, %v3254
        %v3256 = vcombine.low %v3233, %v3248
        %v3257 = vcombine.high %v3233, %v3248
        %v3259 = vunpack.c.l.s4 1934713408
        %v3260 = vunpack.c.0.s8 %v3259
        %v3261 = vlaneseq
        %v3262 = vshrl.u32 %v3261, 7
        %v3263 = vsub.s32 %v3260, %v3262
        %v3264 = vrot.slane %v3256, %v3263
        %v3266 = vunpack.c.l.s4 1934713408
        %v3267 = vunpack.c.0.s8 %v3266
        %v3268 = vlaneseq
        %v3269 = vshrl.u32 %v3268, 7
        %v3270 = vsub.s32 %v3267, %v3269
        %v3271 = vrot.slane %v3257, %v3270
        %v3272 = vcombine.low %v3240, %v3255
        %v3273 = vcombine.high %v3240, %v3255
        %v3275 = vunpack.c.l.s4 1934713408
        %v3276 = vunpack.c.0.s8 %v3275
        %v3277 = vlaneseq
        %v3278 = vshrl.u32 %v3277, 7
        %v3279 = vsub.s32 %v3276, %v3278
        %v3280 = vrot.slane %v3272, %v3279
        %v3282 = vunpack.c.l.s4 1934713408
        %v3283 = vunpack.c.0.s8 %v3282
        %v3284 = vlaneseq
        %v3285 = vshrl.u32 %v3284, 7
        %v3286 = vsub.s32 %v3283, %v3285
        %v3287 = vrot.slane %v3273, %v3286
        %v3288 = vcombine.high %v3264, 0.0
        %v3289 = vcombine.high %v3271, 0.0
        %v3290 = vcombine.high %v3280, 0.0
        %v3291 = vcombine.high %v3287, 0.0
        %v3292 = vcombine.low %v3264, %v3271
        %v3294 = vunpack.c.l.s4 1983009808
        %v3295 = vunpack.c.0.s8 %v3294
        %v3296 = vlaneseq
        %v3297 = vshrl.u32 %v3296, 7
        %v3298 = vsub.s32 %v3295, %v3297
        %v3299 = vrot.slane %v3292, %v3298
        %v3300 = vcombine.low %v3288, %v3289
        %v3302 = vunpack.c.l.s4 1983009808
        %v3303 = vunpack.c.0.s8 %v3302
        %v3304 = vlaneseq
        %v3305 = vshrl.u32 %v3304, 7
        %v3306 = vsub.s32 %v3303, %v3305
        %v3307 = vrot.slane %v3300, %v3306
        %v3308 = vcombine.low %v3280, %v3287
        %v3310 = vunpack.c.l.s4 1983009808
        %v3311 = vunpack.c.0.s8 %v3310
        %v3312 = vlaneseq
        %v3313 = vshrl.u32 %v3312, 7
        %v3314 = vsub.s32 %v3311, %v3313
        %v3315 = vrot.slane %v3308, %v3314
        %v3316 = vcombine.low %v3290, %v3291
        %v3318 = vunpack.c.l.s4 1983009808
        %v3319 = vunpack.c.0.s8 %v3318
        %v3320 = vlaneseq
        %v3321 = vshrl.u32 %v3320, 7
        %v3322 = vsub.s32 %v3319, %v3321
        %v3323 = vrot.slane %v3316, %v3322
        %v3324 = vcombine.low %v3299, %v3307
        %v3326 = vunpack.c.l.s4 1934713408
        %v3327 = vunpack.c.0.s8 %v3326
        %v3328 = vlaneseq
        %v3329 = vshrl.u32 %v3328, 7
        %v3330 = vsub.s32 %v3327, %v3329
        %v3331 = vrot.slane %v3324, %v3330
        %v3332 = vcombine.low %v3315, %v3323
        %v3334 = vunpack.c.l.s4 1934713408
        %v3335 = vunpack.c.0.s8 %v3334
        %v3336 = vlaneseq
        %v3337 = vshrl.u32 %v3336, 7
        %v3338 = vsub.s32 %v3335, %v3337
        %v3339 = vrot.slane %v3332, %v3338
        %v3340 = vcombine.low %v3331, %v3339
        %v3341 = vcombine.high %v3331, %v3339
        %v3342 = vpack.c.bf16 %v3340, %v3340
        %v3343 = vpack.c.bf16 %v3341, %v3341
        %3345 = vrot.lane.b32.xlu0 %v3007, 64
        %v3346 = vpop.permute.xlu0 %3345
        %v3348 = vcombine.high %v3007, 0.0
        %v3350 = vunpack.c.l.s4 1983009808
        %v3351 = vunpack.c.0.s8 %v3350
        %v3352 = vlaneseq
        %v3353 = vshrl.u32 %v3352, 7
        %v3354 = vsub.s32 %v3351, %v3353
        %v3355 = vrot.slane %v3007, %v3354
        %v3357 = vunpack.c.l.s4 1983009808
        %v3358 = vunpack.c.0.s8 %v3357
        %v3359 = vlaneseq
        %v3360 = vshrl.u32 %v3359, 7
        %v3361 = vsub.s32 %v3358, %v3360
        %v3362 = vrot.slane %v3348, %v3361
        %v3363 = vcombine.high %v3346, 0.0
        %v3365 = vunpack.c.l.s4 1983009808
        %v3366 = vunpack.c.0.s8 %v3365
        %v3367 = vlaneseq
        %v3368 = vshrl.u32 %v3367, 7
        %v3369 = vsub.s32 %v3366, %v3368
        %v3370 = vrot.slane %v3346, %v3369
        %v3372 = vunpack.c.l.s4 1983009808
        %v3373 = vunpack.c.0.s8 %v3372
        %v3374 = vlaneseq
        %v3375 = vshrl.u32 %v3374, 7
        %v3376 = vsub.s32 %v3373, %v3375
        %v3377 = vrot.slane %v3363, %v3376
        %v3378 = vcombine.low %v3355, %v3370
        %v3379 = vcombine.high %v3355, %v3370
        %v3381 = vunpack.c.l.s4 1934713408
        %v3382 = vunpack.c.0.s8 %v3381
        %v3383 = vlaneseq
        %v3384 = vshrl.u32 %v3383, 7
        %v3385 = vsub.s32 %v3382, %v3384
        %v3386 = vrot.slane %v3378, %v3385
        %v3388 = vunpack.c.l.s4 1934713408
        %v3389 = vunpack.c.0.s8 %v3388
        %v3390 = vlaneseq
        %v3391 = vshrl.u32 %v3390, 7
        %v3392 = vsub.s32 %v3389, %v3391
        %v3393 = vrot.slane %v3379, %v3392
        %v3394 = vcombine.low %v3362, %v3377
        %v3395 = vcombine.high %v3362, %v3377
        %v3397 = vunpack.c.l.s4 1934713408
        %v3398 = vunpack.c.0.s8 %v3397
        %v3399 = vlaneseq
        %v3400 = vshrl.u32 %v3399, 7
        %v3401 = vsub.s32 %v3398, %v3400
        %v3402 = vrot.slane %v3394, %v3401
        %v3404 = vunpack.c.l.s4 1934713408
        %v3405 = vunpack.c.0.s8 %v3404
        %v3406 = vlaneseq
        %v3407 = vshrl.u32 %v3406, 7
        %v3408 = vsub.s32 %v3405, %v3407
        %v3409 = vrot.slane %v3395, %v3408
        %v3410 = vcombine.high %v3386, 0.0
        %v3411 = vcombine.high %v3393, 0.0
        %v3412 = vcombine.high %v3402, 0.0
        %v3413 = vcombine.high %v3409, 0.0
        %v3414 = vcombine.low %v3386, %v3393
        %v3416 = vunpack.c.l.s4 1983009808
        %v3417 = vunpack.c.0.s8 %v3416
        %v3418 = vlaneseq
        %v3419 = vshrl.u32 %v3418, 7
        %v3420 = vsub.s32 %v3417, %v3419
        %v3421 = vrot.slane %v3414, %v3420
        %v3422 = vcombine.low %v3410, %v3411
        %v3424 = vunpack.c.l.s4 1983009808
        %v3425 = vunpack.c.0.s8 %v3424
        %v3426 = vlaneseq
        %v3427 = vshrl.u32 %v3426, 7
        %v3428 = vsub.s32 %v3425, %v3427
        %v3429 = vrot.slane %v3422, %v3428
        %v3430 = vcombine.low %v3402, %v3409
        %v3432 = vunpack.c.l.s4 1983009808
        %v3433 = vunpack.c.0.s8 %v3432
        %v3434 = vlaneseq
        %v3435 = vshrl.u32 %v3434, 7
        %v3436 = vsub.s32 %v3433, %v3435
        %v3437 = vrot.slane %v3430, %v3436
        %v3438 = vcombine.low %v3412, %v3413
        %v3440 = vunpack.c.l.s4 1983009808
        %v3441 = vunpack.c.0.s8 %v3440
        %v3442 = vlaneseq
        %v3443 = vshrl.u32 %v3442, 7
        %v3444 = vsub.s32 %v3441, %v3443
        %v3445 = vrot.slane %v3438, %v3444
        %v3446 = vcombine.low %v3421, %v3429
        %v3448 = vunpack.c.l.s4 1934713408
        %v3449 = vunpack.c.0.s8 %v3448
        %v3450 = vlaneseq
        %v3451 = vshrl.u32 %v3450, 7
        %v3452 = vsub.s32 %v3449, %v3451
        %v3453 = vrot.slane %v3446, %v3452
        %v3454 = vcombine.low %v3437, %v3445
        %v3456 = vunpack.c.l.s4 1934713408
        %v3457 = vunpack.c.0.s8 %v3456
        %v3458 = vlaneseq
        %v3459 = vshrl.u32 %v3458, 7
        %v3460 = vsub.s32 %v3457, %v3459
        %v3461 = vrot.slane %v3454, %v3460
        %v3462 = vcombine.low %v3453, %v3461
        %v3463 = vcombine.high %v3453, %v3461
        %v3464 = vpack.c.bf16 %v3462, %v3462
        %v3465 = vpack.c.bf16 %v3463, %v3463
        %v3467 = vsel %vm1520, %v3220, 0
        %v3470 = vsel %vm1520, %v3342, 0
        %3472 = vmatprep.subr.bf16.mxu0 0
        %3473 = vmatpush1.bf16.xpose.msra.mxu0 %v3470
        %3474 = vmatprep.subr.bf16.mxu0 0
        %3475 = vmatpush1.bf16.xpose.msra.mxu0 0
        %3476 = vmatprep.subr.bf16.mxu0 0
        %3477 = vmatpush1.bf16.xpose.msra.mxu0 0
        %3478 = vmatprep.subr.bf16.mxu0 0
        %3479 = vmatpush1.bf16.xpose.msra.mxu0 0
        %3480 = vmatprep.subr.bf16.mxu0 0
        %3481 = vmatpush1.bf16.xpose.msra.mxu0 0
        %3482 = vmatprep.subr.bf16.mxu0 0
        %3483 = vmatpush1.bf16.xpose.msra.mxu0 0
        %3484 = vmatprep.subr.bf16.mxu0 0
        %3485 = vmatpush1.bf16.xpose.msra.mxu0 0
        %3486 = vmatprep.subr.bf16.mxu0 0
        %3487 = vmatpush1.bf16.xpose.msra.mxu0 0
        %3488 = vmatprep.subr.bf16.mxu0 0
        %3489 = vmatpush1.bf16.xpose.msra.mxu0 0
        %3490 = vmatprep.subr.bf16.mxu0 0
        %3491 = vmatpush1.bf16.xpose.msra.mxu0 0
        %3492 = vmatprep.subr.bf16.mxu0 0
        %3493 = vmatpush1.bf16.xpose.msra.mxu0 0
        %3494 = vmatprep.subr.bf16.mxu0 0
        %3495 = vmatpush1.bf16.xpose.msra.mxu0 0
        %3496 = vmatprep.subr.bf16.mxu0 0
        %3497 = vmatpush1.bf16.xpose.msra.mxu0 0
        %3498 = vmatprep.subr.bf16.mxu0 0
        %3499 = vmatpush1.bf16.xpose.msra.mxu0 0
        %3500 = vmatprep.subr.bf16.mxu0 0
        %3501 = vmatpush1.bf16.xpose.msra.mxu0 0
        %3502 = vmatprep.subr.bf16.mxu0 0
        %3503 = vmatpush1.bf16.xpose.msra.mxu0 0
        %3504 = vmatprep.mubr.bf16.mxu0 0
        %3505 = vmatmul.mubr.bf16.gmra.mrb[0].mxu0 %v3467
        %v3506 = vpop.f32.mrb[0].mxu0
        %v3507 = vadd.f32 %v1518, %v3506
        %v3508 = vpop.f32.mrb[0].mxu0
        %v3509 = vpop.f32.mrb[0].mxu0
        %v3510 = vpop.f32.mrb[0].mxu0
        %3511 = vdwg.mxu0
        %v3513 = vsel %vm1520, %v3221, 0
        %v3516 = vsel %vm1520, %v3343, 0
        %3518 = vmatprep.subr.bf16.mxu0 0
        %3519 = vmatpush1.bf16.xpose.msra.mxu0 %v3516
        %3520 = vmatprep.subr.bf16.mxu0 0
        %3521 = vmatpush1.bf16.xpose.msra.mxu0 0
        %3522 = vmatprep.subr.bf16.mxu0 0
        %3523 = vmatpush1.bf16.xpose.msra.mxu0 0
        %3524 = vmatprep.subr.bf16.mxu0 0
        %3525 = vmatpush1.bf16.xpose.msra.mxu0 0
        %3526 = vmatprep.subr.bf16.mxu0 0
        %3527 = vmatpush1.bf16.xpose.msra.mxu0 0
        %3528 = vmatprep.subr.bf16.mxu0 0
        %3529 = vmatpush1.bf16.xpose.msra.mxu0 0
        %3530 = vmatprep.subr.bf16.mxu0 0
        %3531 = vmatpush1.bf16.xpose.msra.mxu0 0
        %3532 = vmatprep.subr.bf16.mxu0 0
        %3533 = vmatpush1.bf16.xpose.msra.mxu0 0
        %3534 = vmatprep.subr.bf16.mxu0 0
        %3535 = vmatpush1.bf16.xpose.msra.mxu0 0
        %3536 = vmatprep.subr.bf16.mxu0 0
        %3537 = vmatpush1.bf16.xpose.msra.mxu0 0
        %3538 = vmatprep.subr.bf16.mxu0 0
        %3539 = vmatpush1.bf16.xpose.msra.mxu0 0
        %3540 = vmatprep.subr.bf16.mxu0 0
        %3541 = vmatpush1.bf16.xpose.msra.mxu0 0
        %3542 = vmatprep.subr.bf16.mxu0 0
        %3543 = vmatpush1.bf16.xpose.msra.mxu0 0
        %3544 = vmatprep.subr.bf16.mxu0 0
        %3545 = vmatpush1.bf16.xpose.msra.mxu0 0
        %3546 = vmatprep.subr.bf16.mxu0 0
        %3547 = vmatpush1.bf16.xpose.msra.mxu0 0
        %3548 = vmatprep.subr.bf16.mxu0 0
        %3549 = vmatpush1.bf16.xpose.msra.mxu0 0
        %3550 = vmatprep.mubr.bf16.mxu0 0
        %3551 = vmatmul.mubr.bf16.gmra.mrb[0].mxu0 %v3513
        %v3552 = vpop.f32.mrb[0].mxu0
        %v3553 = vadd.f32 %v1518, %v3552
        %v3554 = vpop.f32.mrb[0].mxu0
        %v3555 = vpop.f32.mrb[0].mxu0
        %v3556 = vpop.f32.mrb[0].mxu0
        %3557 = vdwg.mxu0
        %v3558 = vsel %vm1613, %v3507, -inf
        %3559 = vmax.xlane.f32.xlu0 %v3558
        %v3560 = vpop.xlane.xlu0 %3559
        %v3561 = vsel %vm1613, %v3553, -inf
        %3562 = vmax.xlane.f32.xlu0 %v3561
        %v3563 = vpop.xlane.xlu0 %3562
        %v3564 = vsub.f32 %v3507, %v3560
        %v3565 = vsub.f32 %v3553, %v3563
        %v3566 = vmul.f32 %v3564, 1.442695
        %v3567 = vpow.pop %v3566
        %v3568 = vmul.f32 %v3565, 1.442695
        %v3569 = vpow.pop %v3568
        %v3570 = vsel %vm1613, %v3567, 0.0
        %3571 = vadd.xlane.f32.xlu0 %v3570
        %v3572 = vpop.xlane.xlu0 %3571
        %v3573 = vsel %vm1613, %v3569, 0.0
        %3574 = vadd.xlane.f32.xlu0 %v3573
        %v3575 = vpop.xlane.xlu0 %3574
        %v3576 = vrcp.pop %v3572
        %v3577 = vrcp.pop %v3575
        %v3578 = vmul.f32 %v3567, %v3576
        %v3579 = vmul.f32 %v3569, %v3577
        %v3580 = vpack.c.bf16 %v3578, %v3578
        %v3581 = vpack.c.bf16 %v3579, %v3579
        %v3583 = vsel %vm1613, %v3580, 0
        %v3586 = vsel %vm1641, %v3464, 0
        %3588 = vmatprep.subr.bf16.mxu0 0
        %3589 = vmatpush1.bf16.msra.mxu0 %v3586
        %3590 = vmatprep.subr.bf16.mxu0 0
        %3591 = vmatpush1.bf16.msra.mxu0 0
        %3592 = vmatprep.subr.bf16.mxu0 0
        %3593 = vmatpush1.bf16.msra.mxu0 0
        %3594 = vmatprep.subr.bf16.mxu0 0
        %3595 = vmatpush1.bf16.msra.mxu0 0
        %3596 = vmatprep.subr.bf16.mxu0 0
        %3597 = vmatpush1.bf16.msra.mxu0 0
        %3598 = vmatprep.subr.bf16.mxu0 0
        %3599 = vmatpush1.bf16.msra.mxu0 0
        %3600 = vmatprep.subr.bf16.mxu0 0
        %3601 = vmatpush1.bf16.msra.mxu0 0
        %3602 = vmatprep.subr.bf16.mxu0 0
        %3603 = vmatpush1.bf16.msra.mxu0 0
        %3604 = vmatprep.subr.bf16.mxu0 0
        %3605 = vmatpush1.bf16.msra.mxu0 0
        %3606 = vmatprep.subr.bf16.mxu0 0
        %3607 = vmatpush1.bf16.msra.mxu0 0
        %3608 = vmatprep.subr.bf16.mxu0 0
        %3609 = vmatpush1.bf16.msra.mxu0 0
        %3610 = vmatprep.subr.bf16.mxu0 0
        %3611 = vmatpush1.bf16.msra.mxu0 0
        %3612 = vmatprep.subr.bf16.mxu0 0
        %3613 = vmatpush1.bf16.msra.mxu0 0
        %3614 = vmatprep.subr.bf16.mxu0 0
        %3615 = vmatpush1.bf16.msra.mxu0 0
        %3616 = vmatprep.subr.bf16.mxu0 0
        %3617 = vmatpush1.bf16.msra.mxu0 0
        %3618 = vmatprep.subr.bf16.mxu0 0
        %3619 = vmatpush1.bf16.msra.mxu0 0
        %3620 = vmatprep.mubr.bf16.mxu0 0
        %3621 = vmatmul.mubr.bf16.gmra.mrb[0].mxu0 %v3583
        %v3622 = vpop.f32.mrb[0].mxu0
        %v3623 = vadd.f32 0.0, %v3622
        %v3624 = vpop.f32.mrb[0].mxu0
        %v3625 = vpop.f32.mrb[0].mxu0
        %v3626 = vpop.f32.mrb[0].mxu0
        %3627 = vdwg.mxu0
        %v3629 = vsel %vm1613, %v3581, 0
        %v3632 = vsel %vm1641, %v3465, 0
        %3634 = vmatprep.subr.bf16.mxu0 0
        %3635 = vmatpush1.bf16.msra.mxu0 %v3632
        %3636 = vmatprep.subr.bf16.mxu0 0
        %3637 = vmatpush1.bf16.msra.mxu0 0
        %3638 = vmatprep.subr.bf16.mxu0 0
        %3639 = vmatpush1.bf16.msra.mxu0 0
        %3640 = vmatprep.subr.bf16.mxu0 0
        %3641 = vmatpush1.bf16.msra.mxu0 0
        %3642 = vmatprep.subr.bf16.mxu0 0
        %3643 = vmatpush1.bf16.msra.mxu0 0
        %3644 = vmatprep.subr.bf16.mxu0 0
        %3645 = vmatpush1.bf16.msra.mxu0 0
        %3646 = vmatprep.subr.bf16.mxu0 0
        %3647 = vmatpush1.bf16.msra.mxu0 0
        %3648 = vmatprep.subr.bf16.mxu0 0
        %3649 = vmatpush1.bf16.msra.mxu0 0
        %3650 = vmatprep.subr.bf16.mxu0 0
        %3651 = vmatpush1.bf16.msra.mxu0 0
        %3652 = vmatprep.subr.bf16.mxu0 0
        %3653 = vmatpush1.bf16.msra.mxu0 0
        %3654 = vmatprep.subr.bf16.mxu0 0
        %3655 = vmatpush1.bf16.msra.mxu0 0
        %3656 = vmatprep.subr.bf16.mxu0 0
        %3657 = vmatpush1.bf16.msra.mxu0 0
        %3658 = vmatprep.subr.bf16.mxu0 0
        %3659 = vmatpush1.bf16.msra.mxu0 0
        %3660 = vmatprep.subr.bf16.mxu0 0
        %3661 = vmatpush1.bf16.msra.mxu0 0
        %3662 = vmatprep.subr.bf16.mxu0 0
        %3663 = vmatpush1.bf16.msra.mxu0 0
        %3664 = vmatprep.subr.bf16.mxu0 0
        %3665 = vmatpush1.bf16.msra.mxu0 0
        %3666 = vmatprep.mubr.bf16.mxu0 0
        %3667 = vmatmul.mubr.bf16.gmra.mrb[0].mxu0 %v3629
        %v3668 = vpop.f32.mrb[0].mxu0
        %v3669 = vadd.f32 0.0, %v3668
        %v3670 = vpop.f32.mrb[0].mxu0
        %v3671 = vpop.f32.mrb[0].mxu0
        %v3672 = vpop.f32.mrb[0].mxu0
        %3673 = vdwg.mxu0
        %v3674 = vcombine.high %v3623, 0.0
        %v3676 = vunpack.c.l.s4 1983009808
        %v3677 = vunpack.c.0.s8 %v3676
        %v3678 = vlaneseq
        %v3679 = vshrl.u32 %v3678, 7
        %v3680 = vsub.s32 %v3677, %v3679
        %v3681 = vrot.slane %v3623, %v3680
        %v3683 = vunpack.c.l.s4 1983009808
        %v3684 = vunpack.c.0.s8 %v3683
        %v3685 = vlaneseq
        %v3686 = vshrl.u32 %v3685, 7
        %v3687 = vsub.s32 %v3684, %v3686
        %v3688 = vrot.slane %v3674, %v3687
        %v3689 = vcombine.high %v3669, 0.0
        %v3691 = vunpack.c.l.s4 1983009808
        %v3692 = vunpack.c.0.s8 %v3691
        %v3693 = vlaneseq
        %v3694 = vshrl.u32 %v3693, 7
        %v3695 = vsub.s32 %v3692, %v3694
        %v3696 = vrot.slane %v3669, %v3695
        %v3698 = vunpack.c.l.s4 1983009808
        %v3699 = vunpack.c.0.s8 %v3698
        %v3700 = vlaneseq
        %v3701 = vshrl.u32 %v3700, 7
        %v3702 = vsub.s32 %v3699, %v3701
        %v3703 = vrot.slane %v3689, %v3702
        %v3704 = vcombine.low %v3681, %v3696
        %v3705 = vcombine.high %v3681, %v3696
        %v3707 = vunpack.c.l.s4 1934713408
        %v3708 = vunpack.c.0.s8 %v3707
        %v3709 = vlaneseq
        %v3710 = vshrl.u32 %v3709, 7
        %v3711 = vsub.s32 %v3708, %v3710
        %v3712 = vrot.slane %v3704, %v3711
        %v3714 = vunpack.c.l.s4 1934713408
        %v3715 = vunpack.c.0.s8 %v3714
        %v3716 = vlaneseq
        %v3717 = vshrl.u32 %v3716, 7
        %v3718 = vsub.s32 %v3715, %v3717
        %v3719 = vrot.slane %v3705, %v3718
        %v3720 = vcombine.low %v3688, %v3703
        %v3721 = vcombine.high %v3688, %v3703
        %v3723 = vunpack.c.l.s4 1934713408
        %v3724 = vunpack.c.0.s8 %v3723
        %v3725 = vlaneseq
        %v3726 = vshrl.u32 %v3725, 7
        %v3727 = vsub.s32 %v3724, %v3726
        %v3728 = vrot.slane %v3720, %v3727
        %v3730 = vunpack.c.l.s4 1934713408
        %v3731 = vunpack.c.0.s8 %v3730
        %v3732 = vlaneseq
        %v3733 = vshrl.u32 %v3732, 7
        %v3734 = vsub.s32 %v3731, %v3733
        %v3735 = vrot.slane %v3721, %v3734
        %v3736 = vcombine.high %v3712, 0.0
        %v3737 = vcombine.high %v3719, 0.0
        %v3738 = vcombine.high %v3728, 0.0
        %v3739 = vcombine.high %v3735, 0.0
        %v3740 = vcombine.low %v3712, %v3719
        %v3742 = vunpack.c.l.s4 1983009808
        %v3743 = vunpack.c.0.s8 %v3742
        %v3744 = vlaneseq
        %v3745 = vshrl.u32 %v3744, 7
        %v3746 = vsub.s32 %v3743, %v3745
        %v3747 = vrot.slane %v3740, %v3746
        %v3748 = vcombine.low %v3736, %v3737
        %v3750 = vunpack.c.l.s4 1983009808
        %v3751 = vunpack.c.0.s8 %v3750
        %v3752 = vlaneseq
        %v3753 = vshrl.u32 %v3752, 7
        %v3754 = vsub.s32 %v3751, %v3753
        %v3755 = vrot.slane %v3748, %v3754
        %v3756 = vcombine.low %v3728, %v3735
        %v3758 = vunpack.c.l.s4 1983009808
        %v3759 = vunpack.c.0.s8 %v3758
        %v3760 = vlaneseq
        %v3761 = vshrl.u32 %v3760, 7
        %v3762 = vsub.s32 %v3759, %v3761
        %v3763 = vrot.slane %v3756, %v3762
        %v3764 = vcombine.low %v3738, %v3739
        %v3766 = vunpack.c.l.s4 1983009808
        %v3767 = vunpack.c.0.s8 %v3766
        %v3768 = vlaneseq
        %v3769 = vshrl.u32 %v3768, 7
        %v3770 = vsub.s32 %v3767, %v3769
        %v3771 = vrot.slane %v3764, %v3770
        %v3772 = vcombine.low %v3747, %v3755
        %v3774 = vunpack.c.l.s4 1934713408
        %v3775 = vunpack.c.0.s8 %v3774
        %v3776 = vlaneseq
        %v3777 = vshrl.u32 %v3776, 7
        %v3778 = vsub.s32 %v3775, %v3777
        %v3779 = vrot.slane %v3772, %v3778
        %v3780 = vcombine.low %v3763, %v3771
        %v3782 = vunpack.c.l.s4 1934713408
        %v3783 = vunpack.c.0.s8 %v3782
        %v3784 = vlaneseq
        %v3785 = vshrl.u32 %v3784, 7
        %v3786 = vsub.s32 %v3783, %v3785
        %v3787 = vrot.slane %v3780, %v3786
        %v3788 = vcombine.low %v3779, %v3787
        %v3789 = vcombine.high %v3779, %v3787
        %3791 = vrot.lane.b32.xlu0 %v3789, 64
        %v3792 = vpop.permute.xlu0 %3791
        %v3794 = vsel %vm1520, %v3788, %v3792
        %v3795 = vpack.c.bf16 %v3794, %v3794
        %v3812 = vunpack.c.l.b16 %v2650
        %v3813 = vunpack.c.l.b16 %v2651
        %v3814 = vunpack.c.l.b16 %v2652
        %v3815 = vunpack.c.l.b16 %v2653
        %v3816 = vunpack.c.l.b16 %v2654
        %v3817 = vunpack.c.l.b16 %v2655
        %v3818 = vunpack.c.l.b16 %v2656
        %v3819 = vunpack.c.l.b16 %v2657
        %v3820 = vunpack.c.l.b16 %v2658
        %v3821 = vunpack.c.l.b16 %v2659
        %v3822 = vunpack.c.l.b16 %v2660
        %v3823 = vunpack.c.l.b16 %v2661
        %v3824 = vunpack.c.l.b16 %v2662
        %v3825 = vunpack.c.l.b16 %v2663
        %v3826 = vunpack.c.l.b16 %v2664
        %v3827 = vunpack.c.l.b16 %v2665
        %v3828 = vpack.c.b16 %v3813, %v3812
        %v3829 = vpack.c.b16 %v3815, %v3814
        %v3830 = vpack.c.b16 %v3817, %v3816
        %v3831 = vpack.c.b16 %v3819, %v3818
        %v3832 = vpack.c.b16 %v3821, %v3820
        %v3833 = vpack.c.b16 %v3823, %v3822
        %v3834 = vpack.c.b16 %v3825, %v3824
        %v3835 = vpack.c.b16 %v3827, %v3826
        %3844 = vmatprep.subr.bf16.mxu0 0
        %3845 = vmatpush1.bf16.msra.mxu0 %v3828
        %3846 = vmatprep.subr.bf16.mxu0 0
        %3847 = vmatpush1.bf16.msra.mxu0 %v3829
        %3848 = vmatprep.subr.bf16.mxu0 0
        %3849 = vmatpush1.bf16.msra.mxu0 %v3830
        %3850 = vmatprep.subr.bf16.mxu0 0
        %3851 = vmatpush1.bf16.msra.mxu0 %v3831
        %3852 = vmatprep.subr.bf16.mxu0 0
        %3853 = vmatpush1.bf16.msra.mxu0 %v3832
        %3854 = vmatprep.subr.bf16.mxu0 0
        %3855 = vmatpush1.bf16.msra.mxu0 %v3833
        %3856 = vmatprep.subr.bf16.mxu0 0
        %3857 = vmatpush1.bf16.msra.mxu0 %v3834
        %3858 = vmatprep.subr.bf16.mxu0 0
        %3859 = vmatpush1.bf16.msra.mxu0 %v3835
        %3860 = vmatprep.subr.bf16.mxu0 0
        %3861 = vmatpush1.bf16.msra.mxu0 0
        %3862 = vmatprep.subr.bf16.mxu0 0
        %3863 = vmatpush1.bf16.msra.mxu0 0
        %3864 = vmatprep.subr.bf16.mxu0 0
        %3865 = vmatpush1.bf16.msra.mxu0 0
        %3866 = vmatprep.subr.bf16.mxu0 0
        %3867 = vmatpush1.bf16.msra.mxu0 0
        %3868 = vmatprep.subr.bf16.mxu0 0
        %3869 = vmatpush1.bf16.msra.mxu0 0
        %3870 = vmatprep.subr.bf16.mxu0 0
        %3871 = vmatpush1.bf16.msra.mxu0 0
        %3872 = vmatprep.subr.bf16.mxu0 0
        %3873 = vmatpush1.bf16.msra.mxu0 0
        %3874 = vmatprep.subr.bf16.mxu0 0
        %3875 = vmatpush1.bf16.msra.mxu0 0
        %3876 = vmatprep.mubr.bf16.mxu0 0
        %3877 = vmatmul.mubr.bf16.gmra.mrb[0].mxu0 %v3795
        %v3878 = vpop.f32.mrb[0].mxu0
        %v3879 = vadd.f32 0.0, %v3878
        %v3880 = vpop.f32.mrb[0].mxu0
        %v3881 = vpop.f32.mrb[0].mxu0
        %v3882 = vpop.f32.mrb[0].mxu0
        %3883 = vdwg.mxu0
        %v3884 = vadd.f32 %v2615, %v3879
        %v3885 = vlaneseq
        %v3886 = vshrl.u32 %v3885, 7
        %v3887 = vsub.s32 4, %v3886
        %v3888 = vrot.slane %v2765, %v3887
        %v3889 = vadd.f32 %v3884, %v3888
        %3890 = vadd.xlane.f32.xlu0 %v3889
        %v3891 = vpop.xlane.xlu0 %3890
        %v3892 = vmul.f32 %v3891, %v770
        %v3893 = vsub.f32 %v3889, %v3892
        %v3894 = vmul.f32 %v3893, %v3893
        %3895 = vadd.xlane.f32.xlu0 %v3894
        %v3896 = vpop.xlane.xlu0 %3895
        %v3897 = vmul.f32 %v3896, %v770
        %v3898 = vadd.f32 %v3897, 1e-05
        %v3899 = vrsqrt.pop %v3898
        %v3900 = vmul.f32 %v3893, %v3899
        %v3901 = vlaneseq
        %v3902 = vshrl.u32 %v3901, 7
        %v3903 = vsub.s32 2, %v3902
        %v3904 = vrot.slane %v2765, %v3903
        %v3905 = vmul.f32 %v3900, %v3904
        %v3906 = vlaneseq
        %v3907 = vshrl.u32 %v3906, 7
        %v3908 = vsub.s32 3, %v3907
        %v3909 = vrot.slane %v2765, %v3908
        %v3910 = vadd.f32 %v3905, %v3909
        %v3911 = vpack.c.bf16 %v3910, %v3910
        %v3912 = vlaneseq
        %v3913 = vshrl.u32 %v3912, 7
        %v3914 = vsub.s32 6, %v3913
        %v3915 = vrot.slane %v2765, %v3914
        %v3916 = vlaneseq
        %v3917 = vshrl.u32 %v3916, 7
        %v3918 = vsub.s32 6, %v3917
        %v3919 = vrot.slane %v2766, %v3918
        %v3920 = vlaneseq
        %v3921 = vshrl.u32 %v3920, 7
        %v3922 = vsub.s32 6, %v3921
        %v3923 = vrot.slane %v2767, %v3922
        %v3924 = vlaneseq
        %v3925 = vshrl.u32 %v3924, 7
        %v3926 = vsub.s32 6, %v3925
        %v3927 = vrot.slane %v2768, %v3926
        %v3960 = vunpack.c.l.b16 %v2667
        %v3961 = vunpack.c.h.b16 %v2667
        %v3962 = vunpack.c.l.b16 %v2668
        %v3963 = vunpack.c.h.b16 %v2668
        %v3964 = vunpack.c.l.b16 %v2669
        %v3965 = vunpack.c.h.b16 %v2669
        %v3966 = vunpack.c.l.b16 %v2670
        %v3967 = vunpack.c.h.b16 %v2670
        %v3968 = vunpack.c.l.b16 %v2671
        %v3969 = vunpack.c.h.b16 %v2671
        %v3970 = vunpack.c.l.b16 %v2672
        %v3971 = vunpack.c.h.b16 %v2672
        %v3972 = vunpack.c.l.b16 %v2673
        %v3973 = vunpack.c.h.b16 %v2673
        %v3974 = vunpack.c.l.b16 %v2674
        %v3975 = vunpack.c.h.b16 %v2674
        %v3976 = vunpack.c.l.b16 %v2675
        %v3977 = vunpack.c.h.b16 %v2675
        %v3978 = vunpack.c.l.b16 %v2676
        %v3979 = vunpack.c.h.b16 %v2676
        %v3980 = vunpack.c.l.b16 %v2677
        %v3981 = vunpack.c.h.b16 %v2677
        %v3982 = vunpack.c.l.b16 %v2678
        %v3983 = vunpack.c.h.b16 %v2678
        %v3984 = vunpack.c.l.b16 %v2679
        %v3985 = vunpack.c.h.b16 %v2679
        %v3986 = vunpack.c.l.b16 %v2680
        %v3987 = vunpack.c.h.b16 %v2680
        %v3988 = vunpack.c.l.b16 %v2681
        %v3989 = vunpack.c.h.b16 %v2681
        %v3990 = vunpack.c.l.b16 %v2682
        %v3991 = vunpack.c.h.b16 %v2682
        %v3992 = vunpack.c.l.b16 %v2683
        %v3993 = vunpack.c.h.b16 %v2683
        %v3994 = vunpack.c.l.b16 %v2684
        %v3995 = vunpack.c.h.b16 %v2684
        %v3996 = vunpack.c.l.b16 %v2685
        %v3997 = vunpack.c.h.b16 %v2685
        %v3998 = vunpack.c.l.b16 %v2686
        %v3999 = vunpack.c.h.b16 %v2686
        %v4000 = vunpack.c.l.b16 %v2687
        %v4001 = vunpack.c.h.b16 %v2687
        %v4002 = vunpack.c.l.b16 %v2688
        %v4003 = vunpack.c.h.b16 %v2688
        %v4004 = vunpack.c.l.b16 %v2689
        %v4005 = vunpack.c.h.b16 %v2689
        %v4006 = vunpack.c.l.b16 %v2690
        %v4007 = vunpack.c.h.b16 %v2690
        %v4008 = vunpack.c.l.b16 %v2691
        %v4009 = vunpack.c.h.b16 %v2691
        %v4010 = vunpack.c.l.b16 %v2692
        %v4011 = vunpack.c.h.b16 %v2692
        %v4012 = vunpack.c.l.b16 %v2693
        %v4013 = vunpack.c.h.b16 %v2693
        %v4014 = vunpack.c.l.b16 %v2694
        %v4015 = vunpack.c.h.b16 %v2694
        %v4016 = vunpack.c.l.b16 %v2695
        %v4017 = vunpack.c.h.b16 %v2695
        %v4018 = vunpack.c.l.b16 %v2696
        %v4019 = vunpack.c.h.b16 %v2696
        %v4020 = vunpack.c.l.b16 %v2697
        %v4021 = vunpack.c.h.b16 %v2697
        %v4022 = vunpack.c.l.b16 %v2698
        %v4023 = vunpack.c.h.b16 %v2698
        %v4024 = vpack.c.b16 %v3964, %v3960
        %v4025 = vpack.c.b16 %v3965, %v3961
        %v4026 = vpack.c.b16 %v3966, %v3962
        %v4027 = vpack.c.b16 %v3967, %v3963
        %v4028 = vpack.c.b16 %v3972, %v3968
        %v4029 = vpack.c.b16 %v3973, %v3969
        %v4030 = vpack.c.b16 %v3974, %v3970
        %v4031 = vpack.c.b16 %v3975, %v3971
        %v4032 = vpack.c.b16 %v3980, %v3976
        %v4033 = vpack.c.b16 %v3981, %v3977
        %v4034 = vpack.c.b16 %v3982, %v3978
        %v4035 = vpack.c.b16 %v3983, %v3979
        %v4036 = vpack.c.b16 %v3988, %v3984
        %v4037 = vpack.c.b16 %v3989, %v3985
        %v4038 = vpack.c.b16 %v3990, %v3986
        %v4039 = vpack.c.b16 %v3991, %v3987
        %v4040 = vpack.c.b16 %v3996, %v3992
        %v4041 = vpack.c.b16 %v3997, %v3993
        %v4042 = vpack.c.b16 %v3998, %v3994
        %v4043 = vpack.c.b16 %v3999, %v3995
        %v4044 = vpack.c.b16 %v4004, %v4000
        %v4045 = vpack.c.b16 %v4005, %v4001
        %v4046 = vpack.c.b16 %v4006, %v4002
        %v4047 = vpack.c.b16 %v4007, %v4003
        %v4048 = vpack.c.b16 %v4012, %v4008
        %v4049 = vpack.c.b16 %v4013, %v4009
        %v4050 = vpack.c.b16 %v4014, %v4010
        %v4051 = vpack.c.b16 %v4015, %v4011
        %v4052 = vpack.c.b16 %v4020, %v4016
        %v4053 = vpack.c.b16 %v4021, %v4017
        %v4054 = vpack.c.b16 %v4022, %v4018
        %v4055 = vpack.c.b16 %v4023, %v4019
        %4088 = vmatprep.subr.bf16.mxu0 %v4025
        %4089 = vmatpush1.bf16.msra.mxu0 %v4024
        %4090 = vmatprep.subr.bf16.mxu0 %v4029
        %4091 = vmatpush1.bf16.msra.mxu0 %v4028
        %4092 = vmatprep.subr.bf16.mxu0 %v4033
        %4093 = vmatpush1.bf16.msra.mxu0 %v4032
        %4094 = vmatprep.subr.bf16.mxu0 %v4037
        %4095 = vmatpush1.bf16.msra.mxu0 %v4036
        %4096 = vmatprep.subr.bf16.mxu0 %v4041
        %4097 = vmatpush1.bf16.msra.mxu0 %v4040
        %4098 = vmatprep.subr.bf16.mxu0 %v4045
        %4099 = vmatpush1.bf16.msra.mxu0 %v4044
        %4100 = vmatprep.subr.bf16.mxu0 %v4049
        %4101 = vmatpush1.bf16.msra.mxu0 %v4048
        %4102 = vmatprep.subr.bf16.mxu0 %v4053
        %4103 = vmatpush1.bf16.msra.mxu0 %v4052
        %4104 = vmatprep.subr.bf16.mxu0 0
        %4105 = vmatpush1.bf16.msra.mxu0 0
        %4106 = vmatprep.subr.bf16.mxu0 0
        %4107 = vmatpush1.bf16.msra.mxu0 0
        %4108 = vmatprep.subr.bf16.mxu0 0
        %4109 = vmatpush1.bf16.msra.mxu0 0
        %4110 = vmatprep.subr.bf16.mxu0 0
        %4111 = vmatpush1.bf16.msra.mxu0 0
        %4112 = vmatprep.subr.bf16.mxu0 0
        %4113 = vmatpush1.bf16.msra.mxu0 0
        %4114 = vmatprep.subr.bf16.mxu0 0
        %4115 = vmatpush1.bf16.msra.mxu0 0
        %4116 = vmatprep.subr.bf16.mxu0 0
        %4117 = vmatpush1.bf16.msra.mxu0 0
        %4118 = vmatprep.subr.bf16.mxu0 0
        %4119 = vmatpush1.bf16.msra.mxu0 0
        %4120 = vmatprep.mubr.bf16.mxu0 0
        %4121 = vmatmul.mubr.bf16.gmra.mrb[0].mxu0 %v3911
        %v4122 = vpop.f32.mrb[0].mxu0
        %v4123 = vadd.f32 %v3915, %v4122
        %v4124 = vpop.f32.mrb[0].mxu0
        %v4125 = vadd.f32 %v3919, %v4124
        %v4126 = vpop.f32.mrb[0].mxu0
        %v4127 = vpop.f32.mrb[0].mxu0
        %4128 = vdwg.mxu0
        %4129 = vmatprep.subr.bf16.mxu0 %v4027
        %4130 = vmatpush1.bf16.msra.mxu0 %v4026
        %4131 = vmatprep.subr.bf16.mxu0 %v4031
        %4132 = vmatpush1.bf16.msra.mxu0 %v4030
        %4133 = vmatprep.subr.bf16.mxu0 %v4035
        %4134 = vmatpush1.bf16.msra.mxu0 %v4034
        %4135 = vmatprep.subr.bf16.mxu0 %v4039
        %4136 = vmatpush1.bf16.msra.mxu0 %v4038
        %4137 = vmatprep.subr.bf16.mxu0 %v4043
        %4138 = vmatpush1.bf16.msra.mxu0 %v4042
        %4139 = vmatprep.subr.bf16.mxu0 %v4047
        %4140 = vmatpush1.bf16.msra.mxu0 %v4046
        %4141 = vmatprep.subr.bf16.mxu0 %v4051
        %4142 = vmatpush1.bf16.msra.mxu0 %v4050
        %4143 = vmatprep.subr.bf16.mxu0 %v4055
        %4144 = vmatpush1.bf16.msra.mxu0 %v4054
        %4145 = vmatprep.subr.bf16.mxu0 0
        %4146 = vmatpush1.bf16.msra.mxu0 0
        %4147 = vmatprep.subr.bf16.mxu0 0
        %4148 = vmatpush1.bf16.msra.mxu0 0
        %4149 = vmatprep.subr.bf16.mxu0 0
        %4150 = vmatpush1.bf16.msra.mxu0 0
        %4151 = vmatprep.subr.bf16.mxu0 0
        %4152 = vmatpush1.bf16.msra.mxu0 0
        %4153 = vmatprep.subr.bf16.mxu0 0
        %4154 = vmatpush1.bf16.msra.mxu0 0
        %4155 = vmatprep.subr.bf16.mxu0 0
        %4156 = vmatpush1.bf16.msra.mxu0 0
        %4157 = vmatprep.subr.bf16.mxu0 0
        %4158 = vmatpush1.bf16.msra.mxu0 0
        %4159 = vmatprep.subr.bf16.mxu0 0
        %4160 = vmatpush1.bf16.msra.mxu0 0
        %4161 = vmatprep.mubr.bf16.mxu0 0
        %4162 = vmatmul.mubr.bf16.gmra.mrb[0].mxu0 %v3911
        %v4163 = vpop.f32.mrb[0].mxu0
        %v4164 = vadd.f32 %v3923, %v4163
        %v4165 = vpop.f32.mrb[0].mxu0
        %v4166 = vadd.f32 %v3927, %v4165
        %v4167 = vpop.f32.mrb[0].mxu0
        %v4168 = vpop.f32.mrb[0].mxu0
        %4169 = vdwg.mxu0
        %v4170 = vmul.f32 %v4123, 0.5
        %v4171 = vmul.f32 %v4125, 0.5
        %v4172 = vmul.f32 %v4164, 0.5
        %v4173 = vmul.f32 %v4166, 0.5
        %v4174 = vmul.f32 %v4123, 0.70710677
        %v4175 = vmul.f32 %v4125, 0.70710677
        %v4176 = vmul.f32 %v4164, 0.70710677
        %v4177 = vmul.f32 %v4166, 0.70710677
        %vm4178 = vcmp.ge.f32.partialorder %v4174, 0.0
        %vm4179 = vcmp.ge.f32.partialorder %v4175, 0.0
        %vm4180 = vcmp.ge.f32.partialorder %v4176, 0.0
        %vm4181 = vcmp.ge.f32.partialorder %v4177, 0.0
        %v4182 = vsel %vm4178, 1.0, -1.0
        %v4183 = vsel %vm4179, 1.0, -1.0
        %v4184 = vsel %vm4180, 1.0, -1.0
        %v4185 = vsel %vm4181, 1.0, -1.0
        %v4186 = vand.u32 2147483647, %v4174
        %v4187 = vand.u32 2147483647, %v4175
        %v4188 = vand.u32 2147483647, %v4176
        %v4189 = vand.u32 2147483647, %v4177
        %v4190 = vmul.f32 %v4186, 0.3275911
        %v4191 = vmul.f32 %v4187, 0.3275911
        %v4192 = vmul.f32 %v4188, 0.3275911
        %v4193 = vmul.f32 %v4189, 0.3275911
        %v4194 = vadd.f32 %v4190, 1.0
        %v4195 = vadd.f32 %v4191, 1.0
        %v4196 = vadd.f32 %v4192, 1.0
        %v4197 = vadd.f32 %v4193, 1.0
        %v4198 = vrcp.pop %v4194
        %v4199 = vmul.f32 1.0, %v4198
        %v4200 = vrcp.pop %v4195
        %v4201 = vmul.f32 1.0, %v4200
        %v4202 = vrcp.pop %v4196
        %v4203 = vmul.f32 1.0, %v4202
        %v4204 = vrcp.pop %v4197
        %v4205 = vmul.f32 1.0, %v4204
        %v4206 = vmul.f32 %v4199, 1.0614054
        %v4207 = vmul.f32 %v4201, 1.0614054
        %v4208 = vmul.f32 %v4203, 1.0614054
        %v4209 = vmul.f32 %v4205, 1.0614054
        %v4210 = vadd.f32 %v4206, -1.4531521
        %v4211 = vadd.f32 %v4207, -1.4531521
        %v4212 = vadd.f32 %v4208, -1.4531521
        %v4213 = vadd.f32 %v4209, -1.4531521
        %v4214 = vmul.f32 %v4210, %v4199
        %v4215 = vmul.f32 %v4211, %v4201
        %v4216 = vmul.f32 %v4212, %v4203
        %v4217 = vmul.f32 %v4213, %v4205
        %v4218 = vadd.f32 %v4214, 1.4214138
        %v4219 = vadd.f32 %v4215, 1.4214138
        %v4220 = vadd.f32 %v4216, 1.4214138
        %v4221 = vadd.f32 %v4217, 1.4214138
        %v4222 = vmul.f32 %v4218, %v4199
        %v4223 = vmul.f32 %v4219, %v4201
        %v4224 = vmul.f32 %v4220, %v4203
        %v4225 = vmul.f32 %v4221, %v4205
        %v4226 = vadd.f32 %v4222, -0.28449672
        %v4227 = vadd.f32 %v4223, -0.28449672
        %v4228 = vadd.f32 %v4224, -0.28449672
        %v4229 = vadd.f32 %v4225, -0.28449672
        %v4230 = vmul.f32 %v4226, %v4199
        %v4231 = vmul.f32 %v4227, %v4201
        %v4232 = vmul.f32 %v4228, %v4203
        %v4233 = vmul.f32 %v4229, %v4205
        %v4234 = vadd.f32 %v4230, 0.2548296
        %v4235 = vadd.f32 %v4231, 0.2548296
        %v4236 = vadd.f32 %v4232, 0.2548296
        %v4237 = vadd.f32 %v4233, 0.2548296
        %v4238 = vmul.f32 %v4234, %v4199
        %v4239 = vmul.f32 %v4235, %v4201
        %v4240 = vmul.f32 %v4236, %v4203
        %v4241 = vmul.f32 %v4237, %v4205
        %v4242 = vsub.f32 0.0, %v4186
        %v4243 = vsub.f32 0.0, %v4187
        %v4244 = vsub.f32 0.0, %v4188
        %v4245 = vsub.f32 0.0, %v4189
        %v4246 = vmul.f32 %v4242, %v4186
        %v4247 = vmul.f32 %v4243, %v4187
        %v4248 = vmul.f32 %v4244, %v4188
        %v4249 = vmul.f32 %v4245, %v4189
        %v4250 = vmul.f32 %v4246, 1.442695
        %v4251 = vpow.pop %v4250
        %v4252 = vmul.f32 %v4247, 1.442695
        %v4253 = vpow.pop %v4252
        %v4254 = vmul.f32 %v4248, 1.442695
        %v4255 = vpow.pop %v4254
        %v4256 = vmul.f32 %v4249, 1.442695
        %v4257 = vpow.pop %v4256
        %v4258 = vmul.f32 %v4238, %v4251
        %v4259 = vmul.f32 %v4239, %v4253
        %v4260 = vmul.f32 %v4240, %v4255
        %v4261 = vmul.f32 %v4241, %v4257
        %v4262 = vsub.f32 1.0, %v4258
        %v4263 = vsub.f32 1.0, %v4259
        %v4264 = vsub.f32 1.0, %v4260
        %v4265 = vsub.f32 1.0, %v4261
        %v4266 = vmul.f32 %v4182, %v4262
        %v4267 = vmul.f32 %v4183, %v4263
        %v4268 = vmul.f32 %v4184, %v4264
        %v4269 = vmul.f32 %v4185, %v4265
        %v4270 = vadd.f32 %v4266, 1.0
        %v4271 = vadd.f32 %v4267, 1.0
        %v4272 = vadd.f32 %v4268, 1.0
        %v4273 = vadd.f32 %v4269, 1.0
        %v4274 = vmul.f32 %v4170, %v4270
        %v4275 = vmul.f32 %v4171, %v4271
        %v4276 = vmul.f32 %v4172, %v4272
        %v4277 = vmul.f32 %v4173, %v4273
        %v4278 = vpack.c.bf16 %v4274, %v4274
        %v4279 = vpack.c.bf16 %v4275, %v4275
        %v4280 = vpack.c.bf16 %v4276, %v4276
        %v4281 = vpack.c.bf16 %v4277, %v4277
        %v4282 = vlaneseq
        %v4283 = vshrl.u32 %v4282, 7
        %v4284 = vsub.s32 5, %v4283
        %v4285 = vrot.slane %v2765, %v4284
        %v4350 = vunpack.c.l.b16 %v2700
        %v4351 = vunpack.c.l.b16 %v2701
        %v4352 = vunpack.c.l.b16 %v2702
        %v4353 = vunpack.c.l.b16 %v2703
        %v4354 = vunpack.c.l.b16 %v2704
        %v4355 = vunpack.c.l.b16 %v2705
        %v4356 = vunpack.c.l.b16 %v2706
        %v4357 = vunpack.c.l.b16 %v2707
        %v4358 = vunpack.c.l.b16 %v2708
        %v4359 = vunpack.c.l.b16 %v2709
        %v4360 = vunpack.c.l.b16 %v2710
        %v4361 = vunpack.c.l.b16 %v2711
        %v4362 = vunpack.c.l.b16 %v2712
        %v4363 = vunpack.c.l.b16 %v2713
        %v4364 = vunpack.c.l.b16 %v2714
        %v4365 = vunpack.c.l.b16 %v2715
        %v4366 = vunpack.c.l.b16 %v2716
        %v4367 = vunpack.c.l.b16 %v2717
        %v4368 = vunpack.c.l.b16 %v2718
        %v4369 = vunpack.c.l.b16 %v2719
        %v4370 = vunpack.c.l.b16 %v2720
        %v4371 = vunpack.c.l.b16 %v2721
        %v4372 = vunpack.c.l.b16 %v2722
        %v4373 = vunpack.c.l.b16 %v2723
        %v4374 = vunpack.c.l.b16 %v2724
        %v4375 = vunpack.c.l.b16 %v2725
        %v4376 = vunpack.c.l.b16 %v2726
        %v4377 = vunpack.c.l.b16 %v2727
        %v4378 = vunpack.c.l.b16 %v2728
        %v4379 = vunpack.c.l.b16 %v2729
        %v4380 = vunpack.c.l.b16 %v2730
        %v4381 = vunpack.c.l.b16 %v2731
        %v4382 = vunpack.c.l.b16 %v2732
        %v4383 = vunpack.c.l.b16 %v2733
        %v4384 = vunpack.c.l.b16 %v2734
        %v4385 = vunpack.c.l.b16 %v2735
        %v4386 = vunpack.c.l.b16 %v2736
        %v4387 = vunpack.c.l.b16 %v2737
        %v4388 = vunpack.c.l.b16 %v2738
        %v4389 = vunpack.c.l.b16 %v2739
        %v4390 = vunpack.c.l.b16 %v2740
        %v4391 = vunpack.c.l.b16 %v2741
        %v4392 = vunpack.c.l.b16 %v2742
        %v4393 = vunpack.c.l.b16 %v2743
        %v4394 = vunpack.c.l.b16 %v2744
        %v4395 = vunpack.c.l.b16 %v2745
        %v4396 = vunpack.c.l.b16 %v2746
        %v4397 = vunpack.c.l.b16 %v2747
        %v4398 = vunpack.c.l.b16 %v2748
        %v4399 = vunpack.c.l.b16 %v2749
        %v4400 = vunpack.c.l.b16 %v2750
        %v4401 = vunpack.c.l.b16 %v2751
        %v4402 = vunpack.c.l.b16 %v2752
        %v4403 = vunpack.c.l.b16 %v2753
        %v4404 = vunpack.c.l.b16 %v2754
        %v4405 = vunpack.c.l.b16 %v2755
        %v4406 = vunpack.c.l.b16 %v2756
        %v4407 = vunpack.c.l.b16 %v2757
        %v4408 = vunpack.c.l.b16 %v2758
        %v4409 = vunpack.c.l.b16 %v2759
        %v4410 = vunpack.c.l.b16 %v2760
        %v4411 = vunpack.c.l.b16 %v2761
        %v4412 = vunpack.c.l.b16 %v2762
        %v4413 = vunpack.c.l.b16 %v2763
        %v4414 = vpack.c.b16 %v4351, %v4350
        %v4415 = vpack.c.b16 %v4353, %v4352
        %v4416 = vpack.c.b16 %v4355, %v4354
        %v4417 = vpack.c.b16 %v4357, %v4356
        %v4418 = vpack.c.b16 %v4359, %v4358
        %v4419 = vpack.c.b16 %v4361, %v4360
        %v4420 = vpack.c.b16 %v4363, %v4362
        %v4421 = vpack.c.b16 %v4365, %v4364
        %v4422 = vpack.c.b16 %v4367, %v4366
        %v4423 = vpack.c.b16 %v4369, %v4368
        %v4424 = vpack.c.b16 %v4371, %v4370
        %v4425 = vpack.c.b16 %v4373, %v4372
        %v4426 = vpack.c.b16 %v4375, %v4374
        %v4427 = vpack.c.b16 %v4377, %v4376
        %v4428 = vpack.c.b16 %v4379, %v4378
        %v4429 = vpack.c.b16 %v4381, %v4380
        %v4430 = vpack.c.b16 %v4383, %v4382
        %v4431 = vpack.c.b16 %v4385, %v4384
        %v4432 = vpack.c.b16 %v4387, %v4386
        %v4433 = vpack.c.b16 %v4389, %v4388
        %v4434 = vpack.c.b16 %v4391, %v4390
        %v4435 = vpack.c.b16 %v4393, %v4392
        %v4436 = vpack.c.b16 %v4395, %v4394
        %v4437 = vpack.c.b16 %v4397, %v4396
        %v4438 = vpack.c.b16 %v4399, %v4398
        %v4439 = vpack.c.b16 %v4401, %v4400
        %v4440 = vpack.c.b16 %v4403, %v4402
        %v4441 = vpack.c.b16 %v4405, %v4404
        %v4442 = vpack.c.b16 %v4407, %v4406
        %v4443 = vpack.c.b16 %v4409, %v4408
        %v4444 = vpack.c.b16 %v4411, %v4410
        %v4445 = vpack.c.b16 %v4413, %v4412
        %4478 = vmatprep.subr.bf16.mxu0 0
        %4479 = vmatpush1.bf16.msra.mxu0 %v4414
        %4480 = vmatprep.subr.bf16.mxu0 0
        %4481 = vmatpush1.bf16.msra.mxu0 %v4415
        %4482 = vmatprep.subr.bf16.mxu0 0
        %4483 = vmatpush1.bf16.msra.mxu0 %v4416
        %4484 = vmatprep.subr.bf16.mxu0 0
        %4485 = vmatpush1.bf16.msra.mxu0 %v4417
        %4486 = vmatprep.subr.bf16.mxu0 0
        %4487 = vmatpush1.bf16.msra.mxu0 %v4418
        %4488 = vmatprep.subr.bf16.mxu0 0
        %4489 = vmatpush1.bf16.msra.mxu0 %v4419
        %4490 = vmatprep.subr.bf16.mxu0 0
        %4491 = vmatpush1.bf16.msra.mxu0 %v4420
        %4492 = vmatprep.subr.bf16.mxu0 0
        %4493 = vmatpush1.bf16.msra.mxu0 %v4421
        %4494 = vmatprep.subr.bf16.mxu0 0
        %4495 = vmatpush1.bf16.msra.mxu0 %v4422
        %4496 = vmatprep.subr.bf16.mxu0 0
        %4497 = vmatpush1.bf16.msra.mxu0 %v4423
        %4498 = vmatprep.subr.bf16.mxu0 0
        %4499 = vmatpush1.bf16.msra.mxu0 %v4424
        %4500 = vmatprep.subr.bf16.mxu0 0
        %4501 = vmatpush1.bf16.msra.mxu0 %v4425
        %4502 = vmatprep.subr.bf16.mxu0 0
        %4503 = vmatpush1.bf16.msra.mxu0 %v4426
        %4504 = vmatprep.subr.bf16.mxu0 0
        %4505 = vmatpush1.bf16.msra.mxu0 %v4427
        %4506 = vmatprep.subr.bf16.mxu0 0
        %4507 = vmatpush1.bf16.msra.mxu0 %v4428
        %4508 = vmatprep.subr.bf16.mxu0 0
        %4509 = vmatpush1.bf16.msra.mxu0 %v4429
        %4510 = vmatprep.mubr.bf16.mxu0 %v4279
        %4511 = vmatmul.mubr.bf16.gmra.mrb[0].mxu0 %v4278
        %v4512 = vpop.f32.mrb[0].mxu0
        %v4513 = vadd.f32 %v4285, %v4512
        %v4514 = vpop.f32.mrb[0].mxu0
        %v4515 = vpop.f32.mrb[0].mxu0
        %v4516 = vpop.f32.mrb[0].mxu0
        %4517 = vdwg.mxu0
        %4518 = vmatprep.subr.bf16.mxu0 0
        %4519 = vmatpush1.bf16.msra.mxu0 %v4430
        %4520 = vmatprep.subr.bf16.mxu0 0
        %4521 = vmatpush1.bf16.msra.mxu0 %v4431
        %4522 = vmatprep.subr.bf16.mxu0 0
        %4523 = vmatpush1.bf16.msra.mxu0 %v4432
        %4524 = vmatprep.subr.bf16.mxu0 0
        %4525 = vmatpush1.bf16.msra.mxu0 %v4433
        %4526 = vmatprep.subr.bf16.mxu0 0
        %4527 = vmatpush1.bf16.msra.mxu0 %v4434
        %4528 = vmatprep.subr.bf16.mxu0 0
        %4529 = vmatpush1.bf16.msra.mxu0 %v4435
        %4530 = vmatprep.subr.bf16.mxu0 0
        %4531 = vmatpush1.bf16.msra.mxu0 %v4436
        %4532 = vmatprep.subr.bf16.mxu0 0
        %4533 = vmatpush1.bf16.msra.mxu0 %v4437
        %4534 = vmatprep.subr.bf16.mxu0 0
        %4535 = vmatpush1.bf16.msra.mxu0 %v4438
        %4536 = vmatprep.subr.bf16.mxu0 0
        %4537 = vmatpush1.bf16.msra.mxu0 %v4439
        %4538 = vmatprep.subr.bf16.mxu0 0
        %4539 = vmatpush1.bf16.msra.mxu0 %v4440
        %4540 = vmatprep.subr.bf16.mxu0 0
        %4541 = vmatpush1.bf16.msra.mxu0 %v4441
        %4542 = vmatprep.subr.bf16.mxu0 0
        %4543 = vmatpush1.bf16.msra.mxu0 %v4442
        %4544 = vmatprep.subr.bf16.mxu0 0
        %4545 = vmatpush1.bf16.msra.mxu0 %v4443
        %4546 = vmatprep.subr.bf16.mxu0 0
        %4547 = vmatpush1.bf16.msra.mxu0 %v4444
        %4548 = vmatprep.subr.bf16.mxu0 0
        %4549 = vmatpush1.bf16.msra.mxu0 %v4445
        %4550 = vmatprep.mubr.bf16.mxu0 %v4281
        %4551 = vmatmul.mubr.bf16.gmra.mrb[0].mxu0 %v4280
        %v4552 = vpop.f32.mrb[0].mxu0
        %v4553 = vadd.f32 %v4513, %v4552
        %v4554 = vpop.f32.mrb[0].mxu0
        %v4555 = vpop.f32.mrb[0].mxu0
        %v4556 = vpop.f32.mrb[0].mxu0
        %4557 = vdwg.mxu0
        %v4558 = vadd.f32 %v3889, %v4553
        %v4559 = vld [vmem:[%s12] sm:$0x3f]
        %4560 = vadd.xlane.f32.xlu0 %v4558
        %v4561 = vpop.xlane.xlu0 %4560
        %v4562 = vmul.f32 %v4561, %v770
        %v4563 = vsub.f32 %v4558, %v4562
        %v4564 = vmul.f32 %v4563, %v4563
        %4565 = vadd.xlane.f32.xlu0 %v4564
        %v4566 = vpop.xlane.xlu0 %4565
        %v4567 = vmul.f32 %v4566, %v770
        %v4568 = vadd.f32 %v4567, 1e-05
        %v4569 = vrsqrt.pop %v4568
        %v4570 = vmul.f32 %v4563, %v4569
        %v4571 = vlaneseq
        %v4572 = vshrl.u32 %v4571, 7
        %v4573 = vsub.s32 0, %v4572
        %v4574 = vrot.slane %v4559, %v4573
        %v4575 = vmul.f32 %v4570, %v4574
        %v4576 = vlaneseq
        %v4577 = vshrl.u32 %v4576, 7
        %v4578 = vsub.s32 1, %v4577
        %v4579 = vrot.slane %v4559, %v4578
        %v4580 = vadd.f32 %v4575, %v4579
        %v4581 = vpack.c.bf16 %v4580, %v4580
        %v4582 = vld [vmem:[#allocation16] sm:$0xf]
        %v4583 = vld [vmem:[#allocation16 + $0x4] sm:$0xf]
        %v4584 = vld [vmem:[#allocation16 + $0x8] sm:$0xf]
        %v4585 = vld [vmem:[#allocation16 + $0xc] sm:$0xf]
        %v4586 = vld [vmem:[#allocation16 + $0x10] sm:$0xf]
        %v4587 = vld [vmem:[#allocation16 + $0x14] sm:$0xf]
        %v4588 = vld [vmem:[#allocation16 + $0x18] sm:$0xf]
        %v4589 = vld [vmem:[#allocation16 + $0x1c] sm:$0xf]
        %v4590 = vld [vmem:[#allocation16 + $0x20] sm:$0xf]
        %v4591 = vld [vmem:[#allocation16 + $0x24] sm:$0xf]
        %v4592 = vld [vmem:[#allocation16 + $0x28] sm:$0xf]
        %v4593 = vld [vmem:[#allocation16 + $0x2c] sm:$0xf]
        %v4594 = vld [vmem:[#allocation16 + $0x30] sm:$0xf]
        %v4595 = vld [vmem:[#allocation16 + $0x34] sm:$0xf]
        %v4596 = vld [vmem:[#allocation16 + $0x38] sm:$0xf]
        %v4597 = vld [vmem:[#allocation16 + $0x3c] sm:$0xf]
        %v4598 = vlaneseq
        %v4599 = vshrl.u32 %v4598, 7
        %v4600 = vsub.s32 2, %v4599
        %v4601 = vrot.slane %v4559, %v4600
        %v4618 = vunpack.c.l.b16 %v4582
        %v4619 = vunpack.c.l.b16 %v4583
        %v4620 = vunpack.c.l.b16 %v4584
        %v4621 = vunpack.c.l.b16 %v4585
        %v4622 = vunpack.c.l.b16 %v4586
        %v4623 = vunpack.c.l.b16 %v4587
        %v4624 = vunpack.c.l.b16 %v4588
        %v4625 = vunpack.c.l.b16 %v4589
        %v4626 = vunpack.c.l.b16 %v4590
        %v4627 = vunpack.c.l.b16 %v4591
        %v4628 = vunpack.c.l.b16 %v4592
        %v4629 = vunpack.c.l.b16 %v4593
        %v4630 = vunpack.c.l.b16 %v4594
        %v4631 = vunpack.c.l.b16 %v4595
        %v4632 = vunpack.c.l.b16 %v4596
        %v4633 = vunpack.c.l.b16 %v4597
        %v4634 = vpack.c.b16 %v4619, %v4618
        %v4635 = vpack.c.b16 %v4621, %v4620
        %v4636 = vpack.c.b16 %v4623, %v4622
        %v4637 = vpack.c.b16 %v4625, %v4624
        %v4638 = vpack.c.b16 %v4627, %v4626
        %v4639 = vpack.c.b16 %v4629, %v4628
        %v4640 = vpack.c.b16 %v4631, %v4630
        %v4641 = vpack.c.b16 %v4633, %v4632
        %4650 = vmatprep.subr.bf16.mxu0 0
        %4651 = vmatpush1.bf16.msra.mxu0 %v4634
        %4652 = vmatprep.subr.bf16.mxu0 0
        %4653 = vmatpush1.bf16.msra.mxu0 %v4635
        %4654 = vmatprep.subr.bf16.mxu0 0
        %4655 = vmatpush1.bf16.msra.mxu0 %v4636
        %4656 = vmatprep.subr.bf16.mxu0 0
        %4657 = vmatpush1.bf16.msra.mxu0 %v4637
        %4658 = vmatprep.subr.bf16.mxu0 0
        %4659 = vmatpush1.bf16.msra.mxu0 %v4638
        %4660 = vmatprep.subr.bf16.mxu0 0
        %4661 = vmatpush1.bf16.msra.mxu0 %v4639
        %4662 = vmatprep.subr.bf16.mxu0 0
        %4663 = vmatpush1.bf16.msra.mxu0 %v4640
        %4664 = vmatprep.subr.bf16.mxu0 0
        %4665 = vmatpush1.bf16.msra.mxu0 %v4641
        %4666 = vmatprep.subr.bf16.mxu0 0
        %4667 = vmatpush1.bf16.msra.mxu0 0
        %4668 = vmatprep.subr.bf16.mxu0 0
        %4669 = vmatpush1.bf16.msra.mxu0 0
        %4670 = vmatprep.subr.bf16.mxu0 0
        %4671 = vmatpush1.bf16.msra.mxu0 0
        %4672 = vmatprep.subr.bf16.mxu0 0
        %4673 = vmatpush1.bf16.msra.mxu0 0
        %4674 = vmatprep.subr.bf16.mxu0 0
        %4675 = vmatpush1.bf16.msra.mxu0 0
        %4676 = vmatprep.subr.bf16.mxu0 0
        %4677 = vmatpush1.bf16.msra.mxu0 0
        %4678 = vmatprep.subr.bf16.mxu0 0
        %4679 = vmatpush1.bf16.msra.mxu0 0
        %4680 = vmatprep.subr.bf16.mxu0 0
        %4681 = vmatpush1.bf16.msra.mxu0 0
        %4682 = vmatprep.mubr.bf16.mxu0 0
        %4683 = vmatmul.mubr.bf16.gmra.mrb[0].mxu0 %v4581
        %v4684 = vpop.f32.mrb[0].mxu0
        %v4685 = vadd.f32 %v4601, %v4684
        %v4686 = vpop.f32.mrb[0].mxu0
        %v4687 = vpop.f32.mrb[0].mxu0
        %v4688 = vpop.f32.mrb[0].mxu0
        %4689 = vdwg.mxu0
        %v4690 = vmul.f32 %v4685, 0.5
        %v4691 = vmul.f32 %v4685, 0.70710677
        %vm4692 = vcmp.ge.f32.partialorder %v4691, 0.0
        %v4693 = vsel %vm4692, 1.0, -1.0
        %v4694 = vand.u32 2147483647, %v4691
        %v4695 = vmul.f32 %v4694, 0.3275911
        %v4696 = vadd.f32 %v4695, 1.0
        %v4697 = vrcp.pop %v4696
        %v4698 = vmul.f32 1.0, %v4697
        %v4699 = vmul.f32 %v4698, 1.0614054
        %v4700 = vadd.f32 %v4699, -1.4531521
        %v4701 = vmul.f32 %v4700, %v4698
        %v4702 = vadd.f32 %v4701, 1.4214138
        %v4703 = vmul.f32 %v4702, %v4698
        %v4704 = vadd.f32 %v4703, -0.28449672
        %v4705 = vmul.f32 %v4704, %v4698
        %v4706 = vadd.f32 %v4705, 0.2548296
        %v4707 = vmul.f32 %v4706, %v4698
        %v4708 = vsub.f32 0.0, %v4694
        %v4709 = vmul.f32 %v4708, %v4694
        %v4710 = vmul.f32 %v4709, 1.442695
        %v4711 = vpow.pop %v4710
        %v4712 = vmul.f32 %v4707, %v4711
        %v4713 = vsub.f32 1.0, %v4712
        %v4714 = vmul.f32 %v4693, %v4713
        %v4715 = vadd.f32 %v4714, 1.0
        %v4716 = vmul.f32 %v4690, %v4715
        %4717 = vadd.xlane.f32.xlu0 %v4716
        %v4718 = vpop.xlane.xlu0 %4717
        %v4719 = vmul.f32 %v4718, %v770
        %v4720 = vsub.f32 %v4716, %v4719
        %v4721 = vmul.f32 %v4720, %v4720
        %4722 = vadd.xlane.f32.xlu0 %v4721
        %v4723 = vpop.xlane.xlu0 %4722
        %v4724 = vmul.f32 %v4723, %v770
        %v4725 = vadd.f32 %v4724, 1e-05
        %v4726 = vrsqrt.pop %v4725
        %v4727 = vmul.f32 %v4720, %v4726
        %v4728 = vlaneseq
        %v4729 = vshrl.u32 %v4728, 7
        %v4730 = vsub.s32 3, %v4729
        %v4731 = vrot.slane %v4559, %v4730
        %v4732 = vmul.f32 %v4727, %v4731
        %v4733 = vlaneseq
        %v4734 = vshrl.u32 %v4733, 7
        %v4735 = vsub.s32 4, %v4734
        %v4736 = vrot.slane %v4559, %v4735
        %v4737 = vadd.f32 %v4732, %v4736
        %v4738 = vpack.c.bf16 %v4737, %v4737
        %v4739 = vld [vmem:[#allocation17] sm:$0xf]
        %v4740 = vld [vmem:[#allocation17 + $0x4] sm:$0xf]
        %v4741 = vld [vmem:[#allocation17 + $0x8] sm:$0xf]
        %v4742 = vld [vmem:[#allocation17 + $0xc] sm:$0xf]
        %v4743 = vld [vmem:[#allocation17 + $0x10] sm:$0xf]
        %v4744 = vld [vmem:[#allocation17 + $0x14] sm:$0xf]
        %v4745 = vld [vmem:[#allocation17 + $0x18] sm:$0xf]
        %v4746 = vld [vmem:[#allocation17 + $0x1c] sm:$0xf]
        %v4747 = vld [vmem:[#allocation17 + $0x20] sm:$0xf]
        %v4748 = vld [vmem:[#allocation17 + $0x24] sm:$0xf]
        %v4749 = vld [vmem:[#allocation17 + $0x28] sm:$0xf]
        %v4750 = vld [vmem:[#allocation17 + $0x2c] sm:$0xf]
        %v4751 = vld [vmem:[#allocation17 + $0x30] sm:$0xf]
        %v4752 = vld [vmem:[#allocation17 + $0x34] sm:$0xf]
        %v4753 = vld [vmem:[#allocation17 + $0x38] sm:$0xf]
        %v4754 = vld [vmem:[#allocation17 + $0x3c] sm:$0xf]
        %v4755 = vlaneseq
        %v4756 = vshrl.u32 %v4755, 7
        %v4757 = vsub.s32 5, %v4756
        %v4758 = vrot.slane %v4559, %v4757
        %v4775 = vunpack.c.l.b16 %v4739
        %v4776 = vunpack.c.l.b16 %v4740
        %v4777 = vunpack.c.l.b16 %v4741
        %v4778 = vunpack.c.l.b16 %v4742
        %v4779 = vunpack.c.l.b16 %v4743
        %v4780 = vunpack.c.l.b16 %v4744
        %v4781 = vunpack.c.l.b16 %v4745
        %v4782 = vunpack.c.l.b16 %v4746
        %v4783 = vunpack.c.l.b16 %v4747
        %v4784 = vunpack.c.l.b16 %v4748
        %v4785 = vunpack.c.l.b16 %v4749
        %v4786 = vunpack.c.l.b16 %v4750
        %v4787 = vunpack.c.l.b16 %v4751
        %v4788 = vunpack.c.l.b16 %v4752
        %v4789 = vunpack.c.l.b16 %v4753
        %v4790 = vunpack.c.l.b16 %v4754
        %v4791 = vpack.c.b16 %v4776, %v4775
        %v4792 = vpack.c.b16 %v4778, %v4777
        %v4793 = vpack.c.b16 %v4780, %v4779
        %v4794 = vpack.c.b16 %v4782, %v4781
        %v4795 = vpack.c.b16 %v4784, %v4783
        %v4796 = vpack.c.b16 %v4786, %v4785
        %v4797 = vpack.c.b16 %v4788, %v4787
        %v4798 = vpack.c.b16 %v4790, %v4789
        %4807 = vmatprep.subr.bf16.mxu0 0
        %4808 = vmatpush1.bf16.msra.mxu0 %v4791
        %4809 = vmatprep.subr.bf16.mxu0 0
        %4810 = vmatpush1.bf16.msra.mxu0 %v4792
        %4811 = vmatprep.subr.bf16.mxu0 0
        %4812 = vmatpush1.bf16.msra.mxu0 %v4793
        %4813 = vmatprep.subr.bf16.mxu0 0
        %4814 = vmatpush1.bf16.msra.mxu0 %v4794
        %4815 = vmatprep.subr.bf16.mxu0 0
        %4816 = vmatpush1.bf16.msra.mxu0 %v4795
        %4817 = vmatprep.subr.bf16.mxu0 0
        %4818 = vmatpush1.bf16.msra.mxu0 %v4796
        %4819 = vmatprep.subr.bf16.mxu0 0
        %4820 = vmatpush1.bf16.msra.mxu0 %v4797
        %4821 = vmatprep.subr.bf16.mxu0 0
        %4822 = vmatpush1.bf16.msra.mxu0 %v4798
        %4823 = vmatprep.subr.bf16.mxu0 0
        %4824 = vmatpush1.bf16.msra.mxu0 0
        %4825 = vmatprep.subr.bf16.mxu0 0
        %4826 = vmatpush1.bf16.msra.mxu0 0
        %4827 = vmatprep.subr.bf16.mxu0 0
        %4828 = vmatpush1.bf16.msra.mxu0 0
        %4829 = vmatprep.subr.bf16.mxu0 0
        %4830 = vmatpush1.bf16.msra.mxu0 0
        %4831 = vmatprep.subr.bf16.mxu0 0
        %4832 = vmatpush1.bf16.msra.mxu0 0
        %4833 = vmatprep.subr.bf16.mxu0 0
        %4834 = vmatpush1.bf16.msra.mxu0 0
        %4835 = vmatprep.subr.bf16.mxu0 0
        %4836 = vmatpush1.bf16.msra.mxu0 0
        %4837 = vmatprep.subr.bf16.mxu0 0
        %4838 = vmatpush1.bf16.msra.mxu0 0
        %4839 = vmatprep.mubr.bf16.mxu0 0
        %4840 = vmatmul.mubr.bf16.gmra.mrb[0].mxu0 %v4738
        %v4841 = vpop.f32.mrb[0].mxu0
        %v4842 = vadd.f32 %v4758, %v4841
        %v4843 = vpop.f32.mrb[0].mxu0
        %v4844 = vpop.f32.mrb[0].mxu0
        %v4845 = vpop.f32.mrb[0].mxu0
        %4846 = vdwg.mxu0
        %4847 = vst [vmem:[%s595] sm:$0xff] %v4842
        %s4848 = sand.u32 %s326, 1
        %s4849 = scalar_lea.sflag [#allocation4], %s4848
        %s4850 = sand.u32 %s326, 1
        %s4851 = smul.addr %s4850, 8
        %s4852 = scalar_lea.vmem [#allocation19], %s4851
        // Predicated region
        $region113: #{tpu_custom_call.1} parent=71 // pred_check
          %p4853 = pneg %p336
        $region114: #{tpu_custom_call.1} parent=71 // pred_check_branch
          %4855 = sbr.rel (%p4853) target = $region116
        $region115: #{tpu_custom_call.1} parent=71 // pred_region
          %s4857 = ssub.s32 128, 128
          %4858 = vsyncadd %s4849, %s4857
          %s4859 = smul.addr %s35, 128
          %s4860 = scalar_lea.hbm %s13, %s4859
          %s4862 = sshll.u32 %s4852, 4
          %s4863 = int_to_ptr.vmem [resolvable:$true] %s4862
          %4865 = dma.vmem_to_hbm [thread:$0]  %s4863, 128, %s4860, %s4849
        $region116: #{tpu_custom_call.1} parent=71 // pred_fallthru
          _
      $region72: #{tpu_custom_call.1} parent=5 // pred_fallthru
        _
      %p4866 = scmp.le.s32.totalorder 2, %s30
      // Predicated region
      $region117: #{tpu_custom_call.1} parent=5 // pred_check
        %p4867 = pneg %p4866
      $region118: #{tpu_custom_call.1} parent=5 // pred_check_branch
        %4869 = sbr.rel (%p4867) target = $region120
      $region119: #{tpu_custom_call.1} parent=5 // pred_region
        %s4870 = ssub.s32 %s30, 2
        // Predicated region
        $region121: #{tpu_custom_call.1} parent=119 // pred_check
          %p4871 = pneg %p342
        $region122: #{tpu_custom_call.1} parent=119 // pred_check_branch
          %4873 = sbr.rel (%p4871) target = $region124
        $region123: #{tpu_custom_call.1} parent=119 // pred_region
          %s4874 = sand.u32 %s327, 1
          %s4875 = scalar_lea.sflag [#allocation4], %s4874
          %s4876 = sand.u32 %s327, 1
          %s4877 = smul.addr %s4876, 8
          %s4878 = scalar_lea.vmem [#allocation19], %s4877
          %4879 = dma.done %s4875, 128
        $region124: #{tpu_custom_call.1} parent=119 // pred_fallthru
          _
      $region120: #{tpu_custom_call.1} parent=5 // pred_fallthru
        _
    $region6: #{tpu_custom_call.1} parent=1 // loop_footer
      %s34 = sadd.s32 1, %s30
    $region7: #{tpu_custom_call.1} parent=1 // loop_footer_branch
      %29 = sbr.rel target = $region3
    $region8: #{tpu_custom_call.1} parent=1 // loop_exit
      _
    %4880 = vsyncpa [#allocation3], 1
    %s4881 = scalar_lea.sflag [#allocation3], 1
    %4882 = vsyncpa %s4881, 1
    %4883 = vsyncpa [#allocation6], 1
    %4884 = vsyncpa [#allocation9], 1
    %4885 = vsyncpa [#allocation12], 1
    %4886 = vsyncpa [#allocation15], 1
    %4887 = vsyncpa [#allocation18], 1
    %4888 = vsyncpa [#allocation4], 1
    %s4889 = scalar_lea.sflag [#allocation4], 1
    %4890 = vsyncpa %s4889, 1

</llo_original>
